<compile_context>
chip_gen: v6e
topology: v6e:2x2x1
jax: 0.10.0
libtpu: 0.0.40
codegen_flags: <defaults>
</compile_context>

<pallas_src>
import functools
import math

import jax
import jax.numpy as jnp
from jax.experimental import pallas as pl
from jax.experimental.pallas import tpu as pltpu


CFG = dict(
    vocab_size=100,
    hidden=32,
    num_heads=2,
    head_dim=16,
    intermediate=64,
    num_layers=2,
    max_positions=40,
    pad_token_id=1,
    type_vocab_size=2,
)

LN_EPS = 1e-5


# ------------------- shared math (Pallas kernel + pure-JAX ref) --------------

def _layernorm_math(x, g, b, eps):
    mu = jnp.mean(x, axis=-1, keepdims=True)
    xc = x - mu
    var = jnp.mean(xc * xc, axis=-1, keepdims=True)
    return xc * jax.lax.rsqrt(var + eps) * g + b


def _attention_ffn_math(h, key_valid, wqkv, bqkv, wo, bo, ln1g, ln1b,
                        wi, bi, wf, bf_, ln2g, ln2b, *, num_heads, eps):
    """One encoder layer for a single sequence.

    h:         (S, H)  f32
    key_valid: (1, S)  f32 (1 = attend, 0 = padding)
    wqkv:      (3*nH, H, Dh) bf16  (Q heads pre-scaled by 1/sqrt(Dh))
    wo:        (nH, Dh, H)   bf16
    """
    f32, bf16 = jnp.float32, jnp.bfloat16
    S, H = h.shape
    nH = num_heads
    n3 = wqkv.shape[0]  # 3 * nH

    # additive key-padding bias built in-kernel from the (1, S) validity vector
    key_bias = jnp.where(key_valid > 0.5, 0.0, -1e9).astype(f32)          # (1, S)

    # ---- fused, head-major QKV projection (one batched matmul) ----
    h_bf = h.astype(bf16)
    h_b = jnp.broadcast_to(h_bf[None], (n3, S, H))
    qkv = jnp.einsum("nsh,nhd->nsd", h_b, wqkv,
                     preferred_element_type=f32) + bqkv                   # (3nH, S, Dh)
    q = qkv[:nH]                         # (nH, S, Dh); softmax scale already folded in
    k = qkv[nH:2 * nH]
    v = qkv[2 * nH:]

    # ---- per-head attention (heads = leading batch axis; no lane slicing) ----
    s = jnp.einsum("nqd,nkd->nqk", q.astype(bf16), k.astype(bf16),
                   preferred_element_type=f32)                            # (nH, S, S)
    s = s + key_bias[None]
    s = s - jnp.max(s, axis=-1, keepdims=True)
    p = jnp.exp(s)
    p = p / jnp.sum(p, axis=-1, keepdims=True)
    ctx = jnp.einsum("nqk,nkd->nqd", p.astype(bf16), v.astype(bf16),
                     preferred_element_type=f32)                          # (nH, S, Dh)

    # ---- head-major output projection + residual LayerNorm ----
    attn = jnp.einsum("nqd,ndh->nqh", ctx.astype(bf16), wo,
                      preferred_element_type=f32)                         # (nH, S, H)
    attn = jnp.sum(attn, axis=0) + bo                                     # (S, H)
    h1 = _layernorm_math(attn + h, ln1g, ln1b, eps)

    # ---- FFN (tanh-approx GELU) + residual LayerNorm ----
    inter = jnp.dot(h1.astype(bf16), wi, preferred_element_type=f32) + bi
    inter = jax.nn.gelu(inter, approximate=True)
    ffn = jnp.dot(inter.astype(bf16), wf, preferred_element_type=f32) + bf_
    h2 = _layernorm_math(ffn + h1, ln2g, ln2b, eps)
    return h2


# ----------------------------- Pallas kernels --------------------------------

def _encoder_layer_kernel(*refs, num_heads, eps, fuse_input_ln):
    f32 = jnp.float32
    if fuse_input_ln:
        (h_ref, kmask_ref, inln_g_ref, inln_b_ref,
         wqkv_ref, bqkv_ref, wo_ref, bo_ref, ln1g_ref, ln1b_ref,
         wi_ref, bi_ref, wf_ref, bf_ref, ln2g_ref, ln2b_ref, o_ref) = refs
    else:
        (h_ref, kmask_ref,
         wqkv_ref, bqkv_ref, wo_ref, bo_ref, ln1g_ref, ln1b_ref,
         wi_ref, bi_ref, wf_ref, bf_ref, ln2g_ref, ln2b_ref, o_ref) = refs

    h = h_ref[0].astype(f32)                      # (S, H)
    if fuse_input_ln:
        # embedding LayerNorm fused into the first layer's prologue
        h = _layernorm_math(h, inln_g_ref[...].astype(f32),
                            inln_b_ref[...].astype(f32), eps)
    key_valid = kmask_ref[0].astype(f32)          # (1, S)

    out = _attention_ffn_math(
        h, key_valid,
        wqkv_ref[...], bqkv_ref[...].astype(f32),
        wo_ref[...], bo_ref[...].astype(f32),
        ln1g_ref[...].astype(f32), ln1b_ref[...].astype(f32),
        wi_ref[...], bi_ref[...].astype(f32),
        wf_ref[...], bf_ref[...].astype(f32),
        ln2g_ref[...].astype(f32), ln2b_ref[...].astype(f32),
        num_heads=num_heads, eps=eps)

    o_ref[0] = out.astype(o_ref.dtype)


def encoder_layer(h, key_valid, lyr, *, num_heads, eps=LN_EPS, input_ln=None):
    """One fused encoder layer.  h: (B, S, H) f32; key_valid: (B, 1, S) f32."""
    B, S, H = h.shape

    args = [h, key_valid]
    if input_ln is not None:
        args += [input_ln[0], input_ln[1]]
    args += [lyr["wqkv"], lyr["bqkv"], lyr["wo"], lyr["bo"],
             lyr["ln1_g"], lyr["ln1_b"],
             lyr["wi"], lyr["bi"], lyr["wf"], lyr["bf"],
             lyr["ln2_g"], lyr["ln2_b"]]

    # per-batch activation tiles; weights are whole-array VMEM-resident blocks
    in_specs = [pl.BlockSpec((1, S, H), lambda b: (b, 0, 0)),
                pl.BlockSpec((1, 1, S), lambda b: (b, 0, 0))]
    for a in args[2:]:
        in_specs.append(pl.BlockSpec(a.shape, lambda b, _n=a.ndim: (0,) * _n))
    # TODO(synk): at real sizes H=768 the output is lane-dense (multiple of
    #             128); the toy H=32 necessarily uses masked partial stores.
    out_specs = pl.BlockSpec((1, S, H), lambda b: (b, 0, 0))

    return pl.pallas_call(
        functools.partial(_encoder_layer_kernel, num_heads=num_heads, eps=eps,
                          fuse_input_ln=input_ln is not None),
        out_shape=jax.ShapeDtypeStruct((B, S, H), jnp.float32),
        grid=(B,),
        in_specs=in_specs,
        out_specs=out_specs,
        compiler_params=pltpu.CompilerParams(
            # batch axis parallel -> both v7x TensorCores get work
            dimension_semantics=("parallel",),
            # safe on v5e/v6e/v7x; re-derive for real-size fused layers
            vmem_limit_bytes=32 * 1024 * 1024),
    )(*args)


def _pooler_kernel(x_ref, w_ref, b_ref, o_ref):
    y = jnp.dot(x_ref[...].astype(jnp.bfloat16), w_ref[...],
                preferred_element_type=jnp.float32)
    o_ref[...] = jnp.tanh(y + b_ref[...]).astype(o_ref.dtype)


def pooler(x, w, b):
    """tanh(x @ w + b).  x: (B, H) f32, w: (H, H) bf16, b: (1, H) f32."""
    # TODO(synk): fold into the last encoder layer's epilogue (row 0 of each
    #             sequence) to avoid this extra tiny kernel launch.
    M, _ = x.shape
    N = w.shape[1]
    return pl.pallas_call(
        _pooler_kernel,
        out_shape=jax.ShapeDtypeStruct((M, N), jnp.float32),
    )(x, w, b)


# ------------------------------ parameters -----------------------------------

def init_params(key):
    cfg = CFG
    H, I = cfg["hidden"], cfg["intermediate"]
    nH, Dh = cfg["num_heads"], cfg["head_dim"]
    f32, bf16 = jnp.float32, jnp.bfloat16

    def nrm(k, shape, scale=0.02):
        return (scale * jax.random.normal(k, shape)).astype(f32)

    keys = iter(jax.random.split(key, 8 + cfg["num_layers"] * 10))

    params = {
        "word_emb": nrm(next(keys), (cfg["vocab_size"], H)),
        "pos_emb": nrm(next(keys), (cfg["max_positions"], H)),
        "type_emb": nrm(next(keys), (cfg["type_vocab_size"], H)),
        "emb_ln_g": jnp.ones((1, H), f32),
        "emb_ln_b": jnp.zeros((1, H), f32),
        "pooler_w": nrm(next(keys), (H, H)).astype(bf16),
        "pooler_b": jnp.zeros((1, H), f32),
        "layers": [],
    }

    attn_scale = 1.0 / math.sqrt(Dh)

    def head_major_w(w):               # (H, H) -> (nH, H, Dh)
        return jnp.transpose(w.reshape(H, nH, Dh), (1, 0, 2))

    def head_major_b(b):               # (H,) -> (nH, 1, Dh)
        return b.reshape(nH, Dh)[:, None, :]

    for _ in range(cfg["num_layers"]):
        wq, wk, wv = (nrm(next(keys), (H, H)) for _ in range(3))
        bq, bk, bv = (nrm(next(keys), (H,), 0.01) for _ in range(3))
        layer = {
            # fused head-major QKV; softmax scale folded into Q weights/bias
            "wqkv": jnp.concatenate(
                [head_major_w(wq) * attn_scale, head_major_w(wk),
                 head_major_w(wv)], axis=0).astype(bf16),        # (3nH, H, Dh)
            "bqkv": jnp.concatenate(
                [head_major_b(bq) * attn_scale, head_major_b(bk),
                 head_major_b(bv)], axis=0).astype(f32),         # (3nH, 1, Dh)
            "wo": nrm(next(keys), (H, H)).reshape(nH, Dh, H).astype(bf16),
            "bo": nrm(next(keys), (1, H), 0.01),
            "ln1_g": jnp.ones((1, H), f32),
            "ln1_b": jnp.zeros((1, H), f32),
            "wi": nrm(next(keys), (H, I)).astype(bf16),
            "bi": nrm(next(keys), (1, I), 0.01),
            "wf": nrm(next(keys), (I, H)).astype(bf16),
            "bf": nrm(next(keys), (1, H), 0.01),
            "ln2_g": jnp.ones((1, H), f32),
            "ln2_b": jnp.zeros((1, H), f32),
        }
        params["layers"].append(layer)
    return params


# --------------------------- RoBERTa forward pass ----------------------------

def _embeddings(params, input_ids):
    """Word + position + type embeddings (gathers are plain-JAX glue)."""
    cfg = CFG
    pad = cfg["pad_token_id"]
    not_pad = (input_ids != pad).astype(jnp.int32)
    position_ids = jnp.cumsum(not_pad, axis=1) * not_pad + pad      # RoBERTa-style
    word_e = jnp.take(params["word_emb"], input_ids, axis=0)        # (B, S, H)
    pos_e = jnp.take(params["pos_emb"], position_ids, axis=0)       # (B, S, H)
    type_e = params["type_emb"][0][None, None, :]                   # token_type_ids == 0
    return (word_e + pos_e + type_e).astype(jnp.float32)            # (B, S, H)


def roberta_forward(params, input_ids, attention_mask):
    """Returns (last_hidden_state (B, S, H), pooler_output (B, H))."""
    cfg = CFG
    B, S = input_ids.shape
    nH = cfg["num_heads"]

    h = _embeddings(params, input_ids)                              # (B, S, H)
    key_valid = attention_mask.astype(jnp.float32).reshape(B, 1, S)

    for li, lyr in enumerate(params["layers"]):
        input_ln = (params["emb_ln_g"], params["emb_ln_b"]) if li == 0 else None
        h = encoder_layer(h, key_valid, lyr, num_heads=nH, input_ln=input_ln)

    last_hidden = h
    pooled = pooler(last_hidden[:, 0, :], params["pooler_w"], params["pooler_b"])
    return last_hidden, pooled


def roberta_reference(params, input_ids, attention_mask):
    """Pure-JAX mirror of the Pallas path (same bf16 casts) for validation."""
    cfg = CFG
    B, S = input_ids.shape
    nH = cfg["num_heads"]
    f32, bf16 = jnp.float32, jnp.bfloat16

    h = _embeddings(params, input_ids)
    key_valid = attention_mask.astype(f32).reshape(B, 1, S)

    for li, lyr in enumerate(params["layers"]):
        outs = []
        for b in range(B):
            hb = h[b]
            if li == 0:
                hb = _layernorm_math(hb, params["emb_ln_g"], params["emb_ln_b"],
                                     LN_EPS)
            outs.append(_attention_ffn_math(
                hb, key_valid[b],
                lyr["wqkv"], lyr["bqkv"], lyr["wo"], lyr["bo"],
                lyr["ln1_g"], lyr["ln1_b"],
                lyr["wi"], lyr["bi"], lyr["wf"], lyr["bf"],
                lyr["ln2_g"], lyr["ln2_b"],
                num_heads=nH, eps=LN_EPS))
        h = jnp.stack(outs, axis=0)

    pooled = jnp.tanh(
        jnp.dot(h[:, 0, :].astype(bf16), params["pooler_w"],
                preferred_element_type=f32) + params["pooler_b"])
    return h, pooled


# ----------------------------------- main ------------------------------------

if __name__ == "__main__":
    key = jax.random.PRNGKey(0)
    k_param, k_ids = jax.random.split(key)

    B, S = 2, 8
    params = init_params(k_param)

    input_ids = jax.random.randint(k_ids, (B, S), 3, CFG["vocab_size"],
                                   dtype=jnp.int32)
    attention_mask = jnp.ones((B, S), dtype=jnp.int32)
    # pad out the last two tokens of the second sequence to exercise the mask
    attention_mask = attention_mask.at[1, S - 2:].set(0)
    input_ids = jnp.where(attention_mask == 1, input_ids, CFG["pad_token_id"])

    # Roberta.forward(input_ids, attention_mask) -> top_vec (model outputs)
    last_hidden, pooled = jax.jit(roberta_forward)(params, input_ids,
                                                   attention_mask)
    jax.block_until_ready((last_hidden, pooled))

    ref_hidden, ref_pooled = jax.jit(roberta_reference)(params, input_ids,
                                                        attention_mask)
    jax.block_until_ready((ref_hidden, ref_pooled))

    assert last_hidden.shape == (B, S, CFG["hidden"])
    assert pooled.shape == (B, CFG["hidden"])
    assert bool(jnp.all(jnp.isfinite(last_hidden)))
    assert bool(jnp.all(jnp.isfinite(pooled)))
    assert bool(jnp.allclose(last_hidden, ref_hidden, atol=3e-2, rtol=3e-2))
    assert bool(jnp.allclose(pooled, ref_pooled, atol=3e-2, rtol=3e-2))
    print("KERNEL_OK")
</pallas_src>

<mosaic_0001>
module attributes {stable_mosaic.version = 11 : i64} {
  func.func @_encoder_layer_kernel(%arg0: i32, %arg1: memref<1x8x32xf32, #tpu.memory_space<vmem>>, %arg2: memref<1x1x8xf32, #tpu.memory_space<vmem>>, %arg3: memref<1x32xf32, #tpu.memory_space<vmem>>, %arg4: memref<1x32xf32, #tpu.memory_space<vmem>>, %arg5: memref<6x32x16xbf16, #tpu.memory_space<vmem>>, %arg6: memref<6x1x16xf32, #tpu.memory_space<vmem>>, %arg7: memref<2x16x32xbf16, #tpu.memory_space<vmem>>, %arg8: memref<1x32xf32, #tpu.memory_space<vmem>>, %arg9: memref<1x32xf32, #tpu.memory_space<vmem>>, %arg10: memref<1x32xf32, #tpu.memory_space<vmem>>, %arg11: memref<32x64xbf16, #tpu.memory_space<vmem>>, %arg12: memref<1x64xf32, #tpu.memory_space<vmem>>, %arg13: memref<64x32xbf16, #tpu.memory_space<vmem>>, %arg14: memref<1x32xf32, #tpu.memory_space<vmem>>, %arg15: memref<1x32xf32, #tpu.memory_space<vmem>>, %arg16: memref<1x32xf32, #tpu.memory_space<vmem>>, %arg17: memref<1x8x32xf32, #tpu.memory_space<vmem>>) attributes {dimension_semantics = [#tpu.dimension_semantics<parallel>], iteration_bounds = array<i64: 2>, scalar_prefetch = 0 : i64, scratch_operands = 0 : i64, tpu.core_type = #tpu.core_type<tc>, window_params = [{transform_indices = @transform_0, window_bounds = array<i64: 1, 8, 32>}, {transform_indices = @transform_1, window_bounds = array<i64: 1, 1, 8>}, {pipeline_mode = #tpu.pipeline_mode<synchronous>, transform_indices = @transform_2, window_bounds = array<i64: 1, 32>}, {pipeline_mode = #tpu.pipeline_mode<synchronous>, transform_indices = @transform_3, window_bounds = array<i64: 1, 32>}, {pipeline_mode = #tpu.pipeline_mode<synchronous>, transform_indices = @transform_4, window_bounds = array<i64: 6, 32, 16>}, {pipeline_mode = #tpu.pipeline_mode<synchronous>, transform_indices = @transform_5, window_bounds = array<i64: 6, 1, 16>}, {pipeline_mode = #tpu.pipeline_mode<synchronous>, transform_indices = @transform_6, window_bounds = array<i64: 2, 16, 32>}, {pipeline_mode = #tpu.pipeline_mode<synchronous>, transform_indices = @transform_7, window_bounds = array<i64: 1, 32>}, {pipeline_mode = #tpu.pipeline_mode<synchronous>, transform_indices = @transform_8, window_bounds = array<i64: 1, 32>}, {pipeline_mode = #tpu.pipeline_mode<synchronous>, transform_indices = @transform_9, window_bounds = array<i64: 1, 32>}, {pipeline_mode = #tpu.pipeline_mode<synchronous>, transform_indices = @transform_10, window_bounds = array<i64: 32, 64>}, {pipeline_mode = #tpu.pipeline_mode<synchronous>, transform_indices = @transform_11, window_bounds = array<i64: 1, 64>}, {pipeline_mode = #tpu.pipeline_mode<synchronous>, transform_indices = @transform_12, window_bounds = array<i64: 64, 32>}, {pipeline_mode = #tpu.pipeline_mode<synchronous>, transform_indices = @transform_13, window_bounds = array<i64: 1, 32>}, {pipeline_mode = #tpu.pipeline_mode<synchronous>, transform_indices = @transform_14, window_bounds = array<i64: 1, 32>}, {pipeline_mode = #tpu.pipeline_mode<synchronous>, transform_indices = @transform_15, window_bounds = array<i64: 1, 32>}, {transform_indices = @transform_16, window_bounds = array<i64: 1, 8, 32>}]} {
    %c0 = arith.constant 0 : index
    %c0_0 = arith.constant 0 : index
    %c0_1 = arith.constant 0 : index
    %0 = vector.load %arg1[%c0, %c0_0, %c0_1] : memref<1x8x32xf32, #tpu.memory_space<vmem>>, vector<1x8x32xf32>
    %1 = vector.shape_cast %0 : vector<1x8x32xf32> to vector<8x32xf32>
    %c0_2 = arith.constant 0 : index
    %c0_3 = arith.constant 0 : index
    %2 = vector.load %arg3[%c0_2, %c0_3] : memref<1x32xf32, #tpu.memory_space<vmem>>, vector<1x32xf32>
    %c0_4 = arith.constant 0 : index
    %c0_5 = arith.constant 0 : index
    %3 = vector.load %arg4[%c0_4, %c0_5] : memref<1x32xf32, #tpu.memory_space<vmem>>, vector<1x32xf32>
    %cst = arith.constant dense<0.000000e+00> : vector<8xf32>
    %4 = vector.multi_reduction <add>, %1, %cst [1] : vector<8x32xf32> to vector<8xf32>
    %5 = vector.shape_cast %4 : vector<8xf32> to vector<8x1xf32>
    %cst_6 = arith.constant 3.200000e+01 : f32
    %6 = vector.broadcast %cst_6 : f32 to vector<8x1xf32>
    %7 = arith.divf %5, %6 : vector<8x1xf32>
    %8 = vector.broadcast %7 : vector<8x1xf32> to vector<8x32xf32>
    %9 = arith.subf %1, %8 : vector<8x32xf32>
    %10 = arith.mulf %9, %9 : vector<8x32xf32>
    %cst_7 = arith.constant dense<0.000000e+00> : vector<8xf32>
    %11 = vector.multi_reduction <add>, %10, %cst_7 [1] : vector<8x32xf32> to vector<8xf32>
    %12 = vector.shape_cast %11 : vector<8xf32> to vector<8x1xf32>
    %cst_8 = arith.constant 3.200000e+01 : f32
    %13 = vector.broadcast %cst_8 : f32 to vector<8x1xf32>
    %14 = arith.divf %12, %13 : vector<8x1xf32>
    %cst_9 = arith.constant 9.99999974E-6 : f32
    %15 = vector.broadcast %cst_9 : f32 to vector<8x1xf32>
    %16 = arith.addf %14, %15 : vector<8x1xf32>
    %17 = math.rsqrt %16 : vector<8x1xf32>
    %18 = vector.broadcast %17 : vector<8x1xf32> to vector<8x32xf32>
    %19 = arith.mulf %9, %18 : vector<8x32xf32>
    %20 = vector.broadcast %2 : vector<1x32xf32> to vector<8x32xf32>
    %21 = arith.mulf %19, %20 : vector<8x32xf32>
    %22 = vector.broadcast %3 : vector<1x32xf32> to vector<8x32xf32>
    %23 = arith.addf %21, %22 : vector<8x32xf32>
    %c0_10 = arith.constant 0 : index
    %c0_11 = arith.constant 0 : index
    %c0_12 = arith.constant 0 : index
    %24 = vector.load %arg2[%c0_10, %c0_11, %c0_12] : memref<1x1x8xf32, #tpu.memory_space<vmem>>, vector<1x1x8xf32>
    %25 = vector.shape_cast %24 : vector<1x1x8xf32> to vector<1x8xf32>
    %c0_13 = arith.constant 0 : index
    %c0_14 = arith.constant 0 : index
    %c0_15 = arith.constant 0 : index
    %26 = vector.load %arg5[%c0_13, %c0_14, %c0_15] : memref<6x32x16xbf16, #tpu.memory_space<vmem>>, vector<6x32x16xbf16>
    %c0_16 = arith.constant 0 : index
    %c0_17 = arith.constant 0 : index
    %c0_18 = arith.constant 0 : index
    %27 = vector.load %arg6[%c0_16, %c0_17, %c0_18] : memref<6x1x16xf32, #tpu.memory_space<vmem>>, vector<6x1x16xf32>
    %c0_19 = arith.constant 0 : index
    %c0_20 = arith.constant 0 : index
    %c0_21 = arith.constant 0 : index
    %28 = vector.load %arg7[%c0_19, %c0_20, %c0_21] : memref<2x16x32xbf16, #tpu.memory_space<vmem>>, vector<2x16x32xbf16>
    %c0_22 = arith.constant 0 : index
    %c0_23 = arith.constant 0 : index
    %29 = vector.load %arg8[%c0_22, %c0_23] : memref<1x32xf32, #tpu.memory_space<vmem>>, vector<1x32xf32>
    %c0_24 = arith.constant 0 : index
    %c0_25 = arith.constant 0 : index
    %30 = vector.load %arg9[%c0_24, %c0_25] : memref<1x32xf32, #tpu.memory_space<vmem>>, vector<1x32xf32>
    %c0_26 = arith.constant 0 : index
    %c0_27 = arith.constant 0 : index
    %31 = vector.load %arg10[%c0_26, %c0_27] : memref<1x32xf32, #tpu.memory_space<vmem>>, vector<1x32xf32>
    %c0_28 = arith.constant 0 : index
    %c0_29 = arith.constant 0 : index
    %32 = vector.load %arg11[%c0_28, %c0_29] : memref<32x64xbf16, #tpu.memory_space<vmem>>, vector<32x64xbf16>
    %c0_30 = arith.constant 0 : index
    %c0_31 = arith.constant 0 : index
    %33 = vector.load %arg12[%c0_30, %c0_31] : memref<1x64xf32, #tpu.memory_space<vmem>>, vector<1x64xf32>
    %c0_32 = arith.constant 0 : index
    %c0_33 = arith.constant 0 : index
    %34 = vector.load %arg13[%c0_32, %c0_33] : memref<64x32xbf16, #tpu.memory_space<vmem>>, vector<64x32xbf16>
    %c0_34 = arith.constant 0 : index
    %c0_35 = arith.constant 0 : index
    %35 = vector.load %arg14[%c0_34, %c0_35] : memref<1x32xf32, #tpu.memory_space<vmem>>, vector<1x32xf32>
    %c0_36 = arith.constant 0 : index
    %c0_37 = arith.constant 0 : index
    %36 = vector.load %arg15[%c0_36, %c0_37] : memref<1x32xf32, #tpu.memory_space<vmem>>, vector<1x32xf32>
    %c0_38 = arith.constant 0 : index
    %c0_39 = arith.constant 0 : index
    %37 = vector.load %arg16[%c0_38, %c0_39] : memref<1x32xf32, #tpu.memory_space<vmem>>, vector<1x32xf32>
    %cst_40 = arith.constant 5.000000e-01 : f32
    %38 = vector.broadcast %cst_40 : f32 to vector<1x8xf32>
    %39 = arith.cmpf ogt, %25, %38 : vector<1x8xf32>
    %cst_41 = arith.constant 0.000000e+00 : f32
    %cst_42 = arith.constant -1.000000e+09 : f32
    %40 = vector.broadcast %cst_41 : f32 to vector<1x8xf32>
    %41 = vector.broadcast %cst_42 : f32 to vector<1x8xf32>
    %42 = arith.select %39, %40, %41 : vector<1x8xi1>, vector<1x8xf32>
    %43 = arith.truncf %23 : vector<8x32xf32> to vector<8x32xbf16>
    %44 = vector.shape_cast %43 : vector<8x32xbf16> to vector<1x8x32xbf16>
    %45 = vector.shape_cast %44 : vector<1x8x32xbf16> to vector<1x8x32xbf16>
    %46 = vector.broadcast %45 : vector<1x8x32xbf16> to vector<6x8x32xbf16>
    "tpu.trace_start"() <{level = 10 : i32, message = "nsh,nhd->nsd"}> : () -> ()
    %cst_43 = arith.constant dense<0.000000e+00> : vector<6x8x16xf32>
    %47 = tpu.matmul %46, %26, %cst_43 {dimension_numbers = #tpu.dot_dimension_numbers<[2], [1], [1], [2], [0, 0, 0, 1, 1, 2], [0], [0]>} : vector<6x8x32xbf16>, vector<6x32x16xbf16>, vector<6x8x16xf32> -> vector<6x8x16xf32>
    "tpu.trace_stop"() : () -> ()
    %48 = vector.broadcast %27 : vector<6x1x16xf32> to vector<6x8x16xf32>
    %49 = arith.addf %47, %48 : vector<6x8x16xf32>
    %50 = vector.extract_strided_slice %49 {offsets = [0, 0, 0], sizes = [2, 8, 16], strides = [1, 1, 1]} : vector<6x8x16xf32> to vector<2x8x16xf32>
    %51 = vector.extract_strided_slice %49 {offsets = [2, 0, 0], sizes = [2, 8, 16], strides = [1, 1, 1]} : vector<6x8x16xf32> to vector<2x8x16xf32>
    %52 = vector.extract_strided_slice %49 {offsets = [4, 0, 0], sizes = [2, 8, 16], strides = [1, 1, 1]} : vector<6x8x16xf32> to vector<2x8x16xf32>
    %53 = arith.truncf %50 : vector<2x8x16xf32> to vector<2x8x16xbf16>
    %54 = arith.truncf %51 : vector<2x8x16xf32> to vector<2x8x16xbf16>
    "tpu.trace_start"() <{level = 10 : i32, message = "nqd,nkd->nqk"}> : () -> ()
    %cst_44 = arith.constant dense<0.000000e+00> : vector<2x8x8xf32>
    %55 = tpu.matmul %53, %54, %cst_44 {dimension_numbers = #tpu.dot_dimension_numbers<[2], [2], [1], [1], [0, 0, 0, 1, 1, 1], [0], [0]>} : vector<2x8x16xbf16>, vector<2x8x16xbf16>, vector<2x8x8xf32> -> vector<2x8x8xf32>
    "tpu.trace_stop"() : () -> ()
    %56 = vector.shape_cast %42 : vector<1x8xf32> to vector<1x1x8xf32>
    %57 = vector.broadcast %56 : vector<1x1x8xf32> to vector<2x8x8xf32>
    %58 = arith.addf %55, %57 : vector<2x8x8xf32>
    %cst_45 = arith.constant dense<0xFF800000> : vector<2x8xf32>
    %59 = vector.multi_reduction <maximumf>, %58, %cst_45 [2] : vector<2x8x8xf32> to vector<2x8xf32>
    %60 = vector.shape_cast %59 : vector<2x8xf32> to vector<2x8x1xf32>
    %61 = vector.broadcast %60 : vector<2x8x1xf32> to vector<2x8x8xf32>
    %62 = arith.subf %58, %61 : vector<2x8x8xf32>
    %63 = math.exp %62 : vector<2x8x8xf32>
    %cst_46 = arith.constant dense<0.000000e+00> : vector<2x8xf32>
    %64 = vector.multi_reduction <add>, %63, %cst_46 [2] : vector<2x8x8xf32> to vector<2x8xf32>
    %65 = vector.shape_cast %64 : vector<2x8xf32> to vector<2x8x1xf32>
    %66 = vector.broadcast %65 : vector<2x8x1xf32> to vector<2x8x8xf32>
    %67 = arith.divf %63, %66 : vector<2x8x8xf32>
    %68 = arith.truncf %67 : vector<2x8x8xf32> to vector<2x8x8xbf16>
    %69 = arith.truncf %52 : vector<2x8x16xf32> to vector<2x8x16xbf16>
    "tpu.trace_start"() <{level = 10 : i32, message = "nqk,nkd->nqd"}> : () -> ()
    %cst_47 = arith.constant dense<0.000000e+00> : vector<2x8x16xf32>
    %70 = tpu.matmul %68, %69, %cst_47 {dimension_numbers = #tpu.dot_dimension_numbers<[2], [1], [1], [2], [0, 0, 0, 1, 1, 2], [0], [0]>} : vector<2x8x8xbf16>, vector<2x8x16xbf16>, vector<2x8x16xf32> -> vector<2x8x16xf32>
    "tpu.trace_stop"() : () -> ()
    %71 = arith.truncf %70 : vector<2x8x16xf32> to vector<2x8x16xbf16>
    "tpu.trace_start"() <{level = 10 : i32, message = "nqd,ndh->nqh"}> : () -> ()
    %cst_48 = arith.constant dense<0.000000e+00> : vector<2x8x32xf32>
    %72 = tpu.matmul %71, %28, %cst_48 {dimension_numbers = #tpu.dot_dimension_numbers<[2], [1], [1], [2], [0, 0, 0, 1, 1, 2], [0], [0]>} : vector<2x8x16xbf16>, vector<2x16x32xbf16>, vector<2x8x32xf32> -> vector<2x8x32xf32>
    "tpu.trace_stop"() : () -> ()
    %cst_49 = arith.constant dense<0.000000e+00> : vector<8x32xf32>
    %73 = vector.multi_reduction <add>, %72, %cst_49 [0] : vector<2x8x32xf32> to vector<8x32xf32>
    %74 = vector.broadcast %29 : vector<1x32xf32> to vector<8x32xf32>
    %75 = arith.addf %73, %74 : vector<8x32xf32>
    %76 = arith.addf %75, %23 : vector<8x32xf32>
    %cst_50 = arith.constant dense<0.000000e+00> : vector<8xf32>
    %77 = vector.multi_reduction <add>, %76, %cst_50 [1] : vector<8x32xf32> to vector<8xf32>
    %78 = vector.shape_cast %77 : vector<8xf32> to vector<8x1xf32>
    %cst_51 = arith.constant 3.200000e+01 : f32
    %79 = vector.broadcast %cst_51 : f32 to vector<8x1xf32>
    %80 = arith.divf %78, %79 : vector<8x1xf32>
    %81 = vector.broadcast %80 : vector<8x1xf32> to vector<8x32xf32>
    %82 = arith.subf %76, %81 : vector<8x32xf32>
    %83 = arith.mulf %82, %82 : vector<8x32xf32>
    %cst_52 = arith.constant dense<0.000000e+00> : vector<8xf32>
    %84 = vector.multi_reduction <add>, %83, %cst_52 [1] : vector<8x32xf32> to vector<8xf32>
    %85 = vector.shape_cast %84 : vector<8xf32> to vector<8x1xf32>
    %cst_53 = arith.constant 3.200000e+01 : f32
    %86 = vector.broadcast %cst_53 : f32 to vector<8x1xf32>
    %87 = arith.divf %85, %86 : vector<8x1xf32>
    %cst_54 = arith.constant 9.99999974E-6 : f32
    %88 = vector.broadcast %cst_54 : f32 to vector<8x1xf32>
    %89 = arith.addf %87, %88 : vector<8x1xf32>
    %90 = math.rsqrt %89 : vector<8x1xf32>
    %91 = vector.broadcast %90 : vector<8x1xf32> to vector<8x32xf32>
    %92 = arith.mulf %82, %91 : vector<8x32xf32>
    %93 = vector.broadcast %30 : vector<1x32xf32> to vector<8x32xf32>
    %94 = arith.mulf %92, %93 : vector<8x32xf32>
    %95 = vector.broadcast %31 : vector<1x32xf32> to vector<8x32xf32>
    %96 = arith.addf %94, %95 : vector<8x32xf32>
    %97 = arith.truncf %96 : vector<8x32xf32> to vector<8x32xbf16>
    %cst_55 = arith.constant dense<0.000000e+00> : vector<8x64xf32>
    %98 = tpu.matmul %97, %32, %cst_55 {dimension_numbers = #tpu.dot_dimension_numbers<[1], [0], [0], [1], [0, 0, 1, 1], [], []>} : vector<8x32xbf16>, vector<32x64xbf16>, vector<8x64xf32> -> vector<8x64xf32>
    %99 = vector.broadcast %33 : vector<1x64xf32> to vector<8x64xf32>
    %100 = arith.addf %98, %99 : vector<8x64xf32>
    %101 = arith.mulf %100, %100 : vector<8x64xf32>
    %102 = arith.mulf %100, %101 : vector<8x64xf32>
    %cst_56 = arith.constant 4.471500e-02 : f32
    %103 = vector.broadcast %cst_56 : f32 to vector<8x64xf32>
    %104 = arith.mulf %103, %102 : vector<8x64xf32>
    %105 = arith.addf %100, %104 : vector<8x64xf32>
    %cst_57 = arith.constant 0.797884583 : f32
    %106 = vector.broadcast %cst_57 : f32 to vector<8x64xf32>
    %107 = arith.mulf %106, %105 : vector<8x64xf32>
    %108 = math.tanh %107 : vector<8x64xf32>
    %cst_58 = arith.constant 1.000000e+00 : f32
    %109 = vector.broadcast %cst_58 : f32 to vector<8x64xf32>
    %110 = arith.addf %109, %108 : vector<8x64xf32>
    %cst_59 = arith.constant 5.000000e-01 : f32
    %111 = vector.broadcast %cst_59 : f32 to vector<8x64xf32>
    %112 = arith.mulf %111, %110 : vector<8x64xf32>
    %113 = arith.mulf %100, %112 : vector<8x64xf32>
    %114 = arith.truncf %113 : vector<8x64xf32> to vector<8x64xbf16>
    %cst_60 = arith.constant dense<0.000000e+00> : vector<8x32xf32>
    %115 = tpu.matmul %114, %34, %cst_60 {dimension_numbers = #tpu.dot_dimension_numbers<[1], [0], [0], [1], [0, 0, 1, 1], [], []>} : vector<8x64xbf16>, vector<64x32xbf16>, vector<8x32xf32> -> vector<8x32xf32>
    %116 = vector.broadcast %35 : vector<1x32xf32> to vector<8x32xf32>
    %117 = arith.addf %115, %116 : vector<8x32xf32>
    %118 = arith.addf %117, %96 : vector<8x32xf32>
    %cst_61 = arith.constant dense<0.000000e+00> : vector<8xf32>
    %119 = vector.multi_reduction <add>, %118, %cst_61 [1] : vector<8x32xf32> to vector<8xf32>
    %120 = vector.shape_cast %119 : vector<8xf32> to vector<8x1xf32>
    %cst_62 = arith.constant 3.200000e+01 : f32
    %121 = vector.broadcast %cst_62 : f32 to vector<8x1xf32>
    %122 = arith.divf %120, %121 : vector<8x1xf32>
    %123 = vector.broadcast %122 : vector<8x1xf32> to vector<8x32xf32>
    %124 = arith.subf %118, %123 : vector<8x32xf32>
    %125 = arith.mulf %124, %124 : vector<8x32xf32>
    %cst_63 = arith.constant dense<0.000000e+00> : vector<8xf32>
    %126 = vector.multi_reduction <add>, %125, %cst_63 [1] : vector<8x32xf32> to vector<8xf32>
    %127 = vector.shape_cast %126 : vector<8xf32> to vector<8x1xf32>
    %cst_64 = arith.constant 3.200000e+01 : f32
    %128 = vector.broadcast %cst_64 : f32 to vector<8x1xf32>
    %129 = arith.divf %127, %128 : vector<8x1xf32>
    %cst_65 = arith.constant 9.99999974E-6 : f32
    %130 = vector.broadcast %cst_65 : f32 to vector<8x1xf32>
    %131 = arith.addf %129, %130 : vector<8x1xf32>
    %132 = math.rsqrt %131 : vector<8x1xf32>
    %133 = vector.broadcast %132 : vector<8x1xf32> to vector<8x32xf32>
    %134 = arith.mulf %124, %133 : vector<8x32xf32>
    %135 = vector.broadcast %36 : vector<1x32xf32> to vector<8x32xf32>
    %136 = arith.mulf %134, %135 : vector<8x32xf32>
    %137 = vector.broadcast %37 : vector<1x32xf32> to vector<8x32xf32>
    %138 = arith.addf %136, %137 : vector<8x32xf32>
    %c0_66 = arith.constant 0 : index
    %c0_67 = arith.constant 0 : index
    %c0_68 = arith.constant 0 : index
    %139 = vector.load %arg17[%c0_66, %c0_67, %c0_68] : memref<1x8x32xf32, #tpu.memory_space<vmem>>, vector<1x8x32xf32>
    %140 = vector.shape_cast %139 : vector<1x8x32xf32> to vector<8x32xf32>
    %141 = vector.shape_cast %138 : vector<8x32xf32> to vector<1x8x32xf32>
    tpu.vector_store %arg17[%c0_66, %c0_67, %c0_68], %141 {strides = array<i32>} : memref<1x8x32xf32, #tpu.memory_space<vmem>>, vector<1x8x32xf32>,
    return
  }
  func.func @transform_0(%arg0: i32) -> (i32, i32, i32) {
    %c0_i32 = arith.constant 0 : i32
    %c0_i32_0 = arith.constant 0 : i32
    %c0_i32_1 = arith.constant 0 : i32
    return %arg0, %c0_i32, %c0_i32_0 : i32, i32, i32
  }
  func.func @transform_1(%arg0: i32) -> (i32, i32, i32) {
    %c0_i32 = arith.constant 0 : i32
    %c0_i32_0 = arith.constant 0 : i32
    %c0_i32_1 = arith.constant 0 : i32
    return %arg0, %c0_i32, %c0_i32_0 : i32, i32, i32
  }
  func.func @transform_2(%arg0: i32) -> (i32, i32) {
    %c0_i32 = arith.constant 0 : i32
    %c0_i32_0 = arith.constant 0 : i32
    %c0_i32_1 = arith.constant 0 : i32
    return %c0_i32, %c0_i32_0 : i32, i32
  }
  func.func @transform_3(%arg0: i32) -> (i32, i32) {
    %c0_i32 = arith.constant 0 : i32
    %c0_i32_0 = arith.constant 0 : i32
    %c0_i32_1 = arith.constant 0 : i32
    return %c0_i32, %c0_i32_0 : i32, i32
  }
  func.func @transform_4(%arg0: i32) -> (i32, i32, i32) {
    %c0_i32 = arith.constant 0 : i32
    %c0_i32_0 = arith.constant 0 : i32
    %c0_i32_1 = arith.constant 0 : i32
    %c0_i32_2 = arith.constant 0 : i32
    return %c0_i32, %c0_i32_0, %c0_i32_1 : i32, i32, i32
  }
  func.func @transform_5(%arg0: i32) -> (i32, i32, i32) {
    %c0_i32 = arith.constant 0 : i32
    %c0_i32_0 = arith.constant 0 : i32
    %c0_i32_1 = arith.constant 0 : i32
    %c0_i32_2 = arith.constant 0 : i32
    return %c0_i32, %c0_i32_0, %c0_i32_1 : i32, i32, i32
  }
  func.func @transform_6(%arg0: i32) -> (i32, i32, i32) {
    %c0_i32 = arith.constant 0 : i32
    %c0_i32_0 = arith.constant 0 : i32
    %c0_i32_1 = arith.constant 0 : i32
    %c0_i32_2 = arith.constant 0 : i32
    return %c0_i32, %c0_i32_0, %c0_i32_1 : i32, i32, i32
  }
  func.func @transform_7(%arg0: i32) -> (i32, i32) {
    %c0_i32 = arith.constant 0 : i32
    %c0_i32_0 = arith.constant 0 : i32
    %c0_i32_1 = arith.constant 0 : i32
    return %c0_i32, %c0_i32_0 : i32, i32
  }
  func.func @transform_8(%arg0: i32) -> (i32, i32) {
    %c0_i32 = arith.constant 0 : i32
    %c0_i32_0 = arith.constant 0 : i32
    %c0_i32_1 = arith.constant 0 : i32
    return %c0_i32, %c0_i32_0 : i32, i32
  }
  func.func @transform_9(%arg0: i32) -> (i32, i32) {
    %c0_i32 = arith.constant 0 : i32
    %c0_i32_0 = arith.constant 0 : i32
    %c0_i32_1 = arith.constant 0 : i32
    return %c0_i32, %c0_i32_0 : i32, i32
  }
  func.func @transform_10(%arg0: i32) -> (i32, i32) {
    %c0_i32 = arith.constant 0 : i32
    %c0_i32_0 = arith.constant 0 : i32
    %c0_i32_1 = arith.constant 0 : i32
    return %c0_i32, %c0_i32_0 : i32, i32
  }
  func.func @transform_11(%arg0: i32) -> (i32, i32) {
    %c0_i32 = arith.constant 0 : i32
    %c0_i32_0 = arith.constant 0 : i32
    %c0_i32_1 = arith.constant 0 : i32
    return %c0_i32, %c0_i32_0 : i32, i32
  }
  func.func @transform_12(%arg0: i32) -> (i32, i32) {
    %c0_i32 = arith.constant 0 : i32
    %c0_i32_0 = arith.constant 0 : i32
    %c0_i32_1 = arith.constant 0 : i32
    return %c0_i32, %c0_i32_0 : i32, i32
  }
  func.func @transform_13(%arg0: i32) -> (i32, i32) {
    %c0_i32 = arith.constant 0 : i32
    %c0_i32_0 = arith.constant 0 : i32
    %c0_i32_1 = arith.constant 0 : i32
    return %c0_i32, %c0_i32_0 : i32, i32
  }
  func.func @transform_14(%arg0: i32) -> (i32, i32) {
    %c0_i32 = arith.constant 0 : i32
    %c0_i32_0 = arith.constant 0 : i32
    %c0_i32_1 = arith.constant 0 : i32
    return %c0_i32, %c0_i32_0 : i32, i32
  }
  func.func @transform_15(%arg0: i32) -> (i32, i32) {
    %c0_i32 = arith.constant 0 : i32
    %c0_i32_0 = arith.constant 0 : i32
    %c0_i32_1 = arith.constant 0 : i32
    return %c0_i32, %c0_i32_0 : i32, i32
  }
  func.func @transform_16(%arg0: i32) -> (i32, i32, i32) {
    %c0_i32 = arith.constant 0 : i32
    %c0_i32_0 = arith.constant 0 : i32
    %c0_i32_1 = arith.constant 0 : i32
    return %arg0, %c0_i32, %c0_i32_0 : i32, i32, i32
  }
}

module attributes {stable_mosaic.version = 11 : i64} {
  func.func @_pooler_kernel(%arg0: memref<2x32xf32, #tpu.memory_space<vmem>>, %arg1: memref<32x32xbf16, #tpu.memory_space<vmem>>, %arg2: memref<1x32xf32, #tpu.memory_space<vmem>>, %arg3: memref<2x32xf32, #tpu.memory_space<vmem>>) attributes {dimension_semantics = [], scalar_prefetch = 0 : i64, scratch_operands = 0 : i64, tpu.core_type = #tpu.core_type<tc>} {
    %c0 = arith.constant 0 : index
    %c0_0 = arith.constant 0 : index
    %0 = vector.load %arg0[%c0, %c0_0] : memref<2x32xf32, #tpu.memory_space<vmem>>, vector<2x32xf32>
    %1 = arith.truncf %0 : vector<2x32xf32> to vector<2x32xbf16>
    %c0_1 = arith.constant 0 : index
    %c0_2 = arith.constant 0 : index
    %2 = vector.load %arg1[%c0_1, %c0_2] : memref<32x32xbf16, #tpu.memory_space<vmem>>, vector<32x32xbf16>
    %cst = arith.constant dense<0.000000e+00> : vector<2x32xf32>
    %3 = tpu.matmul %1, %2, %cst {dimension_numbers = #tpu.dot_dimension_numbers<[1], [0], [0], [1], [0, 0, 1, 1], [], []>} : vector<2x32xbf16>, vector<32x32xbf16>, vector<2x32xf32> -> vector<2x32xf32>
    %c0_3 = arith.constant 0 : index
    %c0_4 = arith.constant 0 : index
    %4 = vector.load %arg2[%c0_3, %c0_4] : memref<1x32xf32, #tpu.memory_space<vmem>>, vector<1x32xf32>
    %5 = vector.broadcast %4 : vector<1x32xf32> to vector<2x32xf32>
    %6 = arith.addf %3, %5 : vector<2x32xf32>
    %7 = math.tanh %6 : vector<2x32xf32>
    %c0_5 = arith.constant 0 : index
    %c0_6 = arith.constant 0 : index
    %8 = vector.load %arg3[%c0_5, %c0_6] : memref<2x32xf32, #tpu.memory_space<vmem>>, vector<2x32xf32>
    tpu.vector_store %arg3[%c0_5, %c0_6], %7 {strides = array<i32>} : memref<2x32xf32, #tpu.memory_space<vmem>>, vector<2x32xf32>,
    return
  }
}

module attributes {stable_mosaic.version = 11 : i64} {
  func.func @_encoder_layer_kernel(%arg0: i32, %arg1: memref<1x8x32xf32, #tpu.memory_space<vmem>>, %arg2: memref<1x1x8xf32, #tpu.memory_space<vmem>>, %arg3: memref<6x32x16xbf16, #tpu.memory_space<vmem>>, %arg4: memref<6x1x16xf32, #tpu.memory_space<vmem>>, %arg5: memref<2x16x32xbf16, #tpu.memory_space<vmem>>, %arg6: memref<1x32xf32, #tpu.memory_space<vmem>>, %arg7: memref<1x32xf32, #tpu.memory_space<vmem>>, %arg8: memref<1x32xf32, #tpu.memory_space<vmem>>, %arg9: memref<32x64xbf16, #tpu.memory_space<vmem>>, %arg10: memref<1x64xf32, #tpu.memory_space<vmem>>, %arg11: memref<64x32xbf16, #tpu.memory_space<vmem>>, %arg12: memref<1x32xf32, #tpu.memory_space<vmem>>, %arg13: memref<1x32xf32, #tpu.memory_space<vmem>>, %arg14: memref<1x32xf32, #tpu.memory_space<vmem>>, %arg15: memref<1x8x32xf32, #tpu.memory_space<vmem>>) attributes {dimension_semantics = [#tpu.dimension_semantics<parallel>], iteration_bounds = array<i64: 2>, scalar_prefetch = 0 : i64, scratch_operands = 0 : i64, tpu.core_type = #tpu.core_type<tc>, window_params = [{transform_indices = @transform_0, window_bounds = array<i64: 1, 8, 32>}, {transform_indices = @transform_1, window_bounds = array<i64: 1, 1, 8>}, {pipeline_mode = #tpu.pipeline_mode<synchronous>, transform_indices = @transform_2, window_bounds = array<i64: 6, 32, 16>}, {pipeline_mode = #tpu.pipeline_mode<synchronous>, transform_indices = @transform_3, window_bounds = array<i64: 6, 1, 16>}, {pipeline_mode = #tpu.pipeline_mode<synchronous>, transform_indices = @transform_4, window_bounds = array<i64: 2, 16, 32>}, {pipeline_mode = #tpu.pipeline_mode<synchronous>, transform_indices = @transform_5, window_bounds = array<i64: 1, 32>}, {pipeline_mode = #tpu.pipeline_mode<synchronous>, transform_indices = @transform_6, window_bounds = array<i64: 1, 32>}, {pipeline_mode = #tpu.pipeline_mode<synchronous>, transform_indices = @transform_7, window_bounds = array<i64: 1, 32>}, {pipeline_mode = #tpu.pipeline_mode<synchronous>, transform_indices = @transform_8, window_bounds = array<i64: 32, 64>}, {pipeline_mode = #tpu.pipeline_mode<synchronous>, transform_indices = @transform_9, window_bounds = array<i64: 1, 64>}, {pipeline_mode = #tpu.pipeline_mode<synchronous>, transform_indices = @transform_10, window_bounds = array<i64: 64, 32>}, {pipeline_mode = #tpu.pipeline_mode<synchronous>, transform_indices = @transform_11, window_bounds = array<i64: 1, 32>}, {pipeline_mode = #tpu.pipeline_mode<synchronous>, transform_indices = @transform_12, window_bounds = array<i64: 1, 32>}, {pipeline_mode = #tpu.pipeline_mode<synchronous>, transform_indices = @transform_13, window_bounds = array<i64: 1, 32>}, {transform_indices = @transform_14, window_bounds = array<i64: 1, 8, 32>}]} {
    %c0 = arith.constant 0 : index
    %c0_0 = arith.constant 0 : index
    %c0_1 = arith.constant 0 : index
    %0 = vector.load %arg1[%c0, %c0_0, %c0_1] : memref<1x8x32xf32, #tpu.memory_space<vmem>>, vector<1x8x32xf32>
    %1 = vector.shape_cast %0 : vector<1x8x32xf32> to vector<8x32xf32>
    %c0_2 = arith.constant 0 : index
    %c0_3 = arith.constant 0 : index
    %c0_4 = arith.constant 0 : index
    %2 = vector.load %arg2[%c0_2, %c0_3, %c0_4] : memref<1x1x8xf32, #tpu.memory_space<vmem>>, vector<1x1x8xf32>
    %3 = vector.shape_cast %2 : vector<1x1x8xf32> to vector<1x8xf32>
    %c0_5 = arith.constant 0 : index
    %c0_6 = arith.constant 0 : index
    %c0_7 = arith.constant 0 : index
    %4 = vector.load %arg3[%c0_5, %c0_6, %c0_7] : memref<6x32x16xbf16, #tpu.memory_space<vmem>>, vector<6x32x16xbf16>
    %c0_8 = arith.constant 0 : index
    %c0_9 = arith.constant 0 : index
    %c0_10 = arith.constant 0 : index
    %5 = vector.load %arg4[%c0_8, %c0_9, %c0_10] : memref<6x1x16xf32, #tpu.memory_space<vmem>>, vector<6x1x16xf32>
    %c0_11 = arith.constant 0 : index
    %c0_12 = arith.constant 0 : index
    %c0_13 = arith.constant 0 : index
    %6 = vector.load %arg5[%c0_11, %c0_12, %c0_13] : memref<2x16x32xbf16, #tpu.memory_space<vmem>>, vector<2x16x32xbf16>
    %c0_14 = arith.constant 0 : index
    %c0_15 = arith.constant 0 : index
    %7 = vector.load %arg6[%c0_14, %c0_15] : memref<1x32xf32, #tpu.memory_space<vmem>>, vector<1x32xf32>
    %c0_16 = arith.constant 0 : index
    %c0_17 = arith.constant 0 : index
    %8 = vector.load %arg7[%c0_16, %c0_17] : memref<1x32xf32, #tpu.memory_space<vmem>>, vector<1x32xf32>
    %c0_18 = arith.constant 0 : index
    %c0_19 = arith.constant 0 : index
    %9 = vector.load %arg8[%c0_18, %c0_19] : memref<1x32xf32, #tpu.memory_space<vmem>>, vector<1x32xf32>
    %c0_20 = arith.constant 0 : index
    %c0_21 = arith.constant 0 : index
    %10 = vector.load %arg9[%c0_20, %c0_21] : memref<32x64xbf16, #tpu.memory_space<vmem>>, vector<32x64xbf16>
    %c0_22 = arith.constant 0 : index
    %c0_23 = arith.constant 0 : index
    %11 = vector.load %arg10[%c0_22, %c0_23] : memref<1x64xf32, #tpu.memory_space<vmem>>, vector<1x64xf32>
    %c0_24 = arith.constant 0 : index
    %c0_25 = arith.constant 0 : index
    %12 = vector.load %arg11[%c0_24, %c0_25] : memref<64x32xbf16, #tpu.memory_space<vmem>>, vector<64x32xbf16>
    %c0_26 = arith.constant 0 : index
    %c0_27 = arith.constant 0 : index
    %13 = vector.load %arg12[%c0_26, %c0_27] : memref<1x32xf32, #tpu.memory_space<vmem>>, vector<1x32xf32>
    %c0_28 = arith.constant 0 : index
    %c0_29 = arith.constant 0 : index
    %14 = vector.load %arg13[%c0_28, %c0_29] : memref<1x32xf32, #tpu.memory_space<vmem>>, vector<1x32xf32>
    %c0_30 = arith.constant 0 : index
    %c0_31 = arith.constant 0 : index
    %15 = vector.load %arg14[%c0_30, %c0_31] : memref<1x32xf32, #tpu.memory_space<vmem>>, vector<1x32xf32>
    %cst = arith.constant 5.000000e-01 : f32
    %16 = vector.broadcast %cst : f32 to vector<1x8xf32>
    %17 = arith.cmpf ogt, %3, %16 : vector<1x8xf32>
    %cst_32 = arith.constant 0.000000e+00 : f32
    %cst_33 = arith.constant -1.000000e+09 : f32
    %18 = vector.broadcast %cst_32 : f32 to vector<1x8xf32>
    %19 = vector.broadcast %cst_33 : f32 to vector<1x8xf32>
    %20 = arith.select %17, %18, %19 : vector<1x8xi1>, vector<1x8xf32>
    %21 = arith.truncf %1 : vector<8x32xf32> to vector<8x32xbf16>
    %22 = vector.shape_cast %21 : vector<8x32xbf16> to vector<1x8x32xbf16>
    %23 = vector.shape_cast %22 : vector<1x8x32xbf16> to vector<1x8x32xbf16>
    %24 = vector.broadcast %23 : vector<1x8x32xbf16> to vector<6x8x32xbf16>
    "tpu.trace_start"() <{level = 10 : i32, message = "nsh,nhd->nsd"}> : () -> ()
    %cst_34 = arith.constant dense<0.000000e+00> : vector<6x8x16xf32>
    %25 = tpu.matmul %24, %4, %cst_34 {dimension_numbers = #tpu.dot_dimension_numbers<[2], [1], [1], [2], [0, 0, 0, 1, 1, 2], [0], [0]>} : vector<6x8x32xbf16>, vector<6x32x16xbf16>, vector<6x8x16xf32> -> vector<6x8x16xf32>
    "tpu.trace_stop"() : () -> ()
    %26 = vector.broadcast %5 : vector<6x1x16xf32> to vector<6x8x16xf32>
    %27 = arith.addf %25, %26 : vector<6x8x16xf32>
    %28 = vector.extract_strided_slice %27 {offsets = [0, 0, 0], sizes = [2, 8, 16], strides = [1, 1, 1]} : vector<6x8x16xf32> to vector<2x8x16xf32>
    %29 = vector.extract_strided_slice %27 {offsets = [2, 0, 0], sizes = [2, 8, 16], strides = [1, 1, 1]} : vector<6x8x16xf32> to vector<2x8x16xf32>
    %30 = vector.extract_strided_slice %27 {offsets = [4, 0, 0], sizes = [2, 8, 16], strides = [1, 1, 1]} : vector<6x8x16xf32> to vector<2x8x16xf32>
    %31 = arith.truncf %28 : vector<2x8x16xf32> to vector<2x8x16xbf16>
    %32 = arith.truncf %29 : vector<2x8x16xf32> to vector<2x8x16xbf16>
    "tpu.trace_start"() <{level = 10 : i32, message = "nqd,nkd->nqk"}> : () -> ()
    %cst_35 = arith.constant dense<0.000000e+00> : vector<2x8x8xf32>
    %33 = tpu.matmul %31, %32, %cst_35 {dimension_numbers = #tpu.dot_dimension_numbers<[2], [2], [1], [1], [0, 0, 0, 1, 1, 1], [0], [0]>} : vector<2x8x16xbf16>, vector<2x8x16xbf16>, vector<2x8x8xf32> -> vector<2x8x8xf32>
    "tpu.trace_stop"() : () -> ()
    %34 = vector.shape_cast %20 : vector<1x8xf32> to vector<1x1x8xf32>
    %35 = vector.broadcast %34 : vector<1x1x8xf32> to vector<2x8x8xf32>
    %36 = arith.addf %33, %35 : vector<2x8x8xf32>
    %cst_36 = arith.constant dense<0xFF800000> : vector<2x8xf32>
    %37 = vector.multi_reduction <maximumf>, %36, %cst_36 [2] : vector<2x8x8xf32> to vector<2x8xf32>
    %38 = vector.shape_cast %37 : vector<2x8xf32> to vector<2x8x1xf32>
    %39 = vector.broadcast %38 : vector<2x8x1xf32> to vector<2x8x8xf32>
    %40 = arith.subf %36, %39 : vector<2x8x8xf32>
    %41 = math.exp %40 : vector<2x8x8xf32>
    %cst_37 = arith.constant dense<0.000000e+00> : vector<2x8xf32>
    %42 = vector.multi_reduction <add>, %41, %cst_37 [2] : vector<2x8x8xf32> to vector<2x8xf32>
    %43 = vector.shape_cast %42 : vector<2x8xf32> to vector<2x8x1xf32>
    %44 = vector.broadcast %43 : vector<2x8x1xf32> to vector<2x8x8xf32>
    %45 = arith.divf %41, %44 : vector<2x8x8xf32>
    %46 = arith.truncf %45 : vector<2x8x8xf32> to vector<2x8x8xbf16>
    %47 = arith.truncf %30 : vector<2x8x16xf32> to vector<2x8x16xbf16>
    "tpu.trace_start"() <{level = 10 : i32, message = "nqk,nkd->nqd"}> : () -> ()
    %cst_38 = arith.constant dense<0.000000e+00> : vector<2x8x16xf32>
    %48 = tpu.matmul %46, %47, %cst_38 {dimension_numbers = #tpu.dot_dimension_numbers<[2], [1], [1], [2], [0, 0, 0, 1, 1, 2], [0], [0]>} : vector<2x8x8xbf16>, vector<2x8x16xbf16>, vector<2x8x16xf32> -> vector<2x8x16xf32>
    "tpu.trace_stop"() : () -> ()
    %49 = arith.truncf %48 : vector<2x8x16xf32> to vector<2x8x16xbf16>
    "tpu.trace_start"() <{level = 10 : i32, message = "nqd,ndh->nqh"}> : () -> ()
    %cst_39 = arith.constant dense<0.000000e+00> : vector<2x8x32xf32>
    %50 = tpu.matmul %49, %6, %cst_39 {dimension_numbers = #tpu.dot_dimension_numbers<[2], [1], [1], [2], [0, 0, 0, 1, 1, 2], [0], [0]>} : vector<2x8x16xbf16>, vector<2x16x32xbf16>, vector<2x8x32xf32> -> vector<2x8x32xf32>
    "tpu.trace_stop"() : () -> ()
    %cst_40 = arith.constant dense<0.000000e+00> : vector<8x32xf32>
    %51 = vector.multi_reduction <add>, %50, %cst_40 [0] : vector<2x8x32xf32> to vector<8x32xf32>
    %52 = vector.broadcast %7 : vector<1x32xf32> to vector<8x32xf32>
    %53 = arith.addf %51, %52 : vector<8x32xf32>
    %54 = arith.addf %53, %1 : vector<8x32xf32>
    %cst_41 = arith.constant dense<0.000000e+00> : vector<8xf32>
    %55 = vector.multi_reduction <add>, %54, %cst_41 [1] : vector<8x32xf32> to vector<8xf32>
    %56 = vector.shape_cast %55 : vector<8xf32> to vector<8x1xf32>
    %cst_42 = arith.constant 3.200000e+01 : f32
    %57 = vector.broadcast %cst_42 : f32 to vector<8x1xf32>
    %58 = arith.divf %56, %57 : vector<8x1xf32>
    %59 = vector.broadcast %58 : vector<8x1xf32> to vector<8x32xf32>
    %60 = arith.subf %54, %59 : vector<8x32xf32>
    %61 = arith.mulf %60, %60 : vector<8x32xf32>
    %cst_43 = arith.constant dense<0.000000e+00> : vector<8xf32>
    %62 = vector.multi_reduction <add>, %61, %cst_43 [1] : vector<8x32xf32> to vector<8xf32>
    %63 = vector.shape_cast %62 : vector<8xf32> to vector<8x1xf32>
    %cst_44 = arith.constant 3.200000e+01 : f32
    %64 = vector.broadcast %cst_44 : f32 to vector<8x1xf32>
    %65 = arith.divf %63, %64 : vector<8x1xf32>
    %cst_45 = arith.constant 9.99999974E-6 : f32
    %66 = vector.broadcast %cst_45 : f32 to vector<8x1xf32>
    %67 = arith.addf %65, %66 : vector<8x1xf32>
    %68 = math.rsqrt %67 : vector<8x1xf32>
    %69 = vector.broadcast %68 : vector<8x1xf32> to vector<8x32xf32>
    %70 = arith.mulf %60, %69 : vector<8x32xf32>
    %71 = vector.broadcast %8 : vector<1x32xf32> to vector<8x32xf32>
    %72 = arith.mulf %70, %71 : vector<8x32xf32>
    %73 = vector.broadcast %9 : vector<1x32xf32> to vector<8x32xf32>
    %74 = arith.addf %72, %73 : vector<8x32xf32>
    %75 = arith.truncf %74 : vector<8x32xf32> to vector<8x32xbf16>
    %cst_46 = arith.constant dense<0.000000e+00> : vector<8x64xf32>
    %76 = tpu.matmul %75, %10, %cst_46 {dimension_numbers = #tpu.dot_dimension_numbers<[1], [0], [0], [1], [0, 0, 1, 1], [], []>} : vector<8x32xbf16>, vector<32x64xbf16>, vector<8x64xf32> -> vector<8x64xf32>
    %77 = vector.broadcast %11 : vector<1x64xf32> to vector<8x64xf32>
    %78 = arith.addf %76, %77 : vector<8x64xf32>
    %79 = arith.mulf %78, %78 : vector<8x64xf32>
    %80 = arith.mulf %78, %79 : vector<8x64xf32>
    %cst_47 = arith.constant 4.471500e-02 : f32
    %81 = vector.broadcast %cst_47 : f32 to vector<8x64xf32>
    %82 = arith.mulf %81, %80 : vector<8x64xf32>
    %83 = arith.addf %78, %82 : vector<8x64xf32>
    %cst_48 = arith.constant 0.797884583 : f32
    %84 = vector.broadcast %cst_48 : f32 to vector<8x64xf32>
    %85 = arith.mulf %84, %83 : vector<8x64xf32>
    %86 = math.tanh %85 : vector<8x64xf32>
    %cst_49 = arith.constant 1.000000e+00 : f32
    %87 = vector.broadcast %cst_49 : f32 to vector<8x64xf32>
    %88 = arith.addf %87, %86 : vector<8x64xf32>
    %cst_50 = arith.constant 5.000000e-01 : f32
    %89 = vector.broadcast %cst_50 : f32 to vector<8x64xf32>
    %90 = arith.mulf %89, %88 : vector<8x64xf32>
    %91 = arith.mulf %78, %90 : vector<8x64xf32>
    %92 = arith.truncf %91 : vector<8x64xf32> to vector<8x64xbf16>
    %cst_51 = arith.constant dense<0.000000e+00> : vector<8x32xf32>
    %93 = tpu.matmul %92, %12, %cst_51 {dimension_numbers = #tpu.dot_dimension_numbers<[1], [0], [0], [1], [0, 0, 1, 1], [], []>} : vector<8x64xbf16>, vector<64x32xbf16>, vector<8x32xf32> -> vector<8x32xf32>
    %94 = vector.broadcast %13 : vector<1x32xf32> to vector<8x32xf32>
    %95 = arith.addf %93, %94 : vector<8x32xf32>
    %96 = arith.addf %95, %74 : vector<8x32xf32>
    %cst_52 = arith.constant dense<0.000000e+00> : vector<8xf32>
    %97 = vector.multi_reduction <add>, %96, %cst_52 [1] : vector<8x32xf32> to vector<8xf32>
    %98 = vector.shape_cast %97 : vector<8xf32> to vector<8x1xf32>
    %cst_53 = arith.constant 3.200000e+01 : f32
    %99 = vector.broadcast %cst_53 : f32 to vector<8x1xf32>
    %100 = arith.divf %98, %99 : vector<8x1xf32>
    %101 = vector.broadcast %100 : vector<8x1xf32> to vector<8x32xf32>
    %102 = arith.subf %96, %101 : vector<8x32xf32>
    %103 = arith.mulf %102, %102 : vector<8x32xf32>
    %cst_54 = arith.constant dense<0.000000e+00> : vector<8xf32>
    %104 = vector.multi_reduction <add>, %103, %cst_54 [1] : vector<8x32xf32> to vector<8xf32>
    %105 = vector.shape_cast %104 : vector<8xf32> to vector<8x1xf32>
    %cst_55 = arith.constant 3.200000e+01 : f32
    %106 = vector.broadcast %cst_55 : f32 to vector<8x1xf32>
    %107 = arith.divf %105, %106 : vector<8x1xf32>
    %cst_56 = arith.constant 9.99999974E-6 : f32
    %108 = vector.broadcast %cst_56 : f32 to vector<8x1xf32>
    %109 = arith.addf %107, %108 : vector<8x1xf32>
    %110 = math.rsqrt %109 : vector<8x1xf32>
    %111 = vector.broadcast %110 : vector<8x1xf32> to vector<8x32xf32>
    %112 = arith.mulf %102, %111 : vector<8x32xf32>
    %113 = vector.broadcast %14 : vector<1x32xf32> to vector<8x32xf32>
    %114 = arith.mulf %112, %113 : vector<8x32xf32>
    %115 = vector.broadcast %15 : vector<1x32xf32> to vector<8x32xf32>
    %116 = arith.addf %114, %115 : vector<8x32xf32>
    %c0_57 = arith.constant 0 : index
    %c0_58 = arith.constant 0 : index
    %c0_59 = arith.constant 0 : index
    %117 = vector.load %arg15[%c0_57, %c0_58, %c0_59] : memref<1x8x32xf32, #tpu.memory_space<vmem>>, vector<1x8x32xf32>
    %118 = vector.shape_cast %117 : vector<1x8x32xf32> to vector<8x32xf32>
    %119 = vector.shape_cast %116 : vector<8x32xf32> to vector<1x8x32xf32>
    tpu.vector_store %arg15[%c0_57, %c0_58, %c0_59], %119 {strides = array<i32>} : memref<1x8x32xf32, #tpu.memory_space<vmem>>, vector<1x8x32xf32>,
    return
  }
  func.func @transform_0(%arg0: i32) -> (i32, i32, i32) {
    %c0_i32 = arith.constant 0 : i32
    %c0_i32_0 = arith.constant 0 : i32
    %c0_i32_1 = arith.constant 0 : i32
    return %arg0, %c0_i32, %c0_i32_0 : i32, i32, i32
  }
  func.func @transform_1(%arg0: i32) -> (i32, i32, i32) {
    %c0_i32 = arith.constant 0 : i32
    %c0_i32_0 = arith.constant 0 : i32
    %c0_i32_1 = arith.constant 0 : i32
    return %arg0, %c0_i32, %c0_i32_0 : i32, i32, i32
  }
  func.func @transform_2(%arg0: i32) -> (i32, i32, i32) {
    %c0_i32 = arith.constant 0 : i32
    %c0_i32_0 = arith.constant 0 : i32
    %c0_i32_1 = arith.constant 0 : i32
    %c0_i32_2 = arith.constant 0 : i32
    return %c0_i32, %c0_i32_0, %c0_i32_1 : i32, i32, i32
  }
  func.func @transform_3(%arg0: i32) -> (i32, i32, i32) {
    %c0_i32 = arith.constant 0 : i32
    %c0_i32_0 = arith.constant 0 : i32
    %c0_i32_1 = arith.constant 0 : i32
    %c0_i32_2 = arith.constant 0 : i32
    return %c0_i32, %c0_i32_0, %c0_i32_1 : i32, i32, i32
  }
  func.func @transform_4(%arg0: i32) -> (i32, i32, i32) {
    %c0_i32 = arith.constant 0 : i32
    %c0_i32_0 = arith.constant 0 : i32
    %c0_i32_1 = arith.constant 0 : i32
    %c0_i32_2 = arith.constant 0 : i32
    return %c0_i32, %c0_i32_0, %c0_i32_1 : i32, i32, i32
  }
  func.func @transform_5(%arg0: i32) -> (i32, i32) {
    %c0_i32 = arith.constant 0 : i32
    %c0_i32_0 = arith.constant 0 : i32
    %c0_i32_1 = arith.constant 0 : i32
    return %c0_i32, %c0_i32_0 : i32, i32
  }
  func.func @transform_6(%arg0: i32) -> (i32, i32) {
    %c0_i32 = arith.constant 0 : i32
    %c0_i32_0 = arith.constant 0 : i32
    %c0_i32_1 = arith.constant 0 : i32
    return %c0_i32, %c0_i32_0 : i32, i32
  }
  func.func @transform_7(%arg0: i32) -> (i32, i32) {
    %c0_i32 = arith.constant 0 : i32
    %c0_i32_0 = arith.constant 0 : i32
    %c0_i32_1 = arith.constant 0 : i32
    return %c0_i32, %c0_i32_0 : i32, i32
  }
  func.func @transform_8(%arg0: i32) -> (i32, i32) {
    %c0_i32 = arith.constant 0 : i32
    %c0_i32_0 = arith.constant 0 : i32
    %c0_i32_1 = arith.constant 0 : i32
    return %c0_i32, %c0_i32_0 : i32, i32
  }
  func.func @transform_9(%arg0: i32) -> (i32, i32) {
    %c0_i32 = arith.constant 0 : i32
    %c0_i32_0 = arith.constant 0 : i32
    %c0_i32_1 = arith.constant 0 : i32
    return %c0_i32, %c0_i32_0 : i32, i32
  }
  func.func @transform_10(%arg0: i32) -> (i32, i32) {
    %c0_i32 = arith.constant 0 : i32
    %c0_i32_0 = arith.constant 0 : i32
    %c0_i32_1 = arith.constant 0 : i32
    return %c0_i32, %c0_i32_0 : i32, i32
  }
  func.func @transform_11(%arg0: i32) -> (i32, i32) {
    %c0_i32 = arith.constant 0 : i32
    %c0_i32_0 = arith.constant 0 : i32
    %c0_i32_1 = arith.constant 0 : i32
    return %c0_i32, %c0_i32_0 : i32, i32
  }
  func.func @transform_12(%arg0: i32) -> (i32, i32) {
    %c0_i32 = arith.constant 0 : i32
    %c0_i32_0 = arith.constant 0 : i32
    %c0_i32_1 = arith.constant 0 : i32
    return %c0_i32, %c0_i32_0 : i32, i32
  }
  func.func @transform_13(%arg0: i32) -> (i32, i32) {
    %c0_i32 = arith.constant 0 : i32
    %c0_i32_0 = arith.constant 0 : i32
    %c0_i32_1 = arith.constant 0 : i32
    return %c0_i32, %c0_i32_0 : i32, i32
  }
  func.func @transform_14(%arg0: i32) -> (i32, i32, i32) {
    %c0_i32 = arith.constant 0 : i32
    %c0_i32_0 = arith.constant 0 : i32
    %c0_i32_1 = arith.constant 0 : i32
    return %arg0, %c0_i32, %c0_i32_0 : i32, i32, i32
  }
}

</mosaic_0001>

<llo_original>
// kernel: roberta_forward.5
$region0: #{roberta_forward.5}
  #allocation0 [shape = 'u32[]', space=smem, size = 0x4, offset = 0x4, fixed_abs, tag = 'smem constant byte address 0x4 - core index']
  #allocation1 [shape = 'u32[144,128]{1,0:T(1,128)}', space=vmem, size = 0x12000, scoped, tag = 'internal scratch']
  %s0 = inlined_call_operand.vmem [shape: f32[2,32], index: 0, kind: input, shape index: {}]
  %s1 = inlined_call_operand.vmem [shape: bf16[32,32], index: 1, kind: input, shape index: {}]
  %s2 = inlined_call_operand.vmem [shape: f32[1,32], index: 2, kind: input, shape index: {}]
  %s3 = inlined_call_operand.hbm [shape: f32[2,32], index: 3, kind: output, shape index: {}]
  %s4 = sld [smem:[#allocation0]]
  $region22: #{roberta_forward.5} parent=0
    _
  %s6 = ssub.s32 1, %s4
  %s7 = scalar_select 0, %s6, %s4
  $region1: #{roberta_forward.5} parent=0
    #allocation2 [shape = 'u8[1024]{0}', space=vmem, size = 0x400, scoped, tag = 'output window, operand 0, single buffered']
    #allocation3 [shape = 's32[1]{0}', space=sflag, size = 0x4, scoped, tag = 'scoped memory for roberta_forward.5']
    %8 = vsyncpa [#allocation3], 0
    // Predicated region
    $region2: #{roberta_forward.5} parent=1 // pred_check
      _
    $region3: #{roberta_forward.5} parent=1 // pred_check_branch
      %10 = sbr.rel (0) target = $region5
    $region4: #{roberta_forward.5} parent=1 // pred_region
      _
    $region5: #{roberta_forward.5} parent=1 // pred_fallthru
      _
    // Predicated region
    $region6: #{roberta_forward.5} parent=1 // pred_check
      _
    $region7: #{roberta_forward.5} parent=1 // pred_check_branch
      %12 = sbr.rel (0) target = $region9
    $region8: #{roberta_forward.5} parent=1 // pred_region
      _
    $region9: #{roberta_forward.5} parent=1 // pred_fallthru
      _
    // Predicated region
    $region10: #{roberta_forward.5} parent=1 // pred_check
      _
    $region11: #{roberta_forward.5} parent=1 // pred_check_branch
      %14 = sbr.rel (0) target = $region13
    $region12: #{roberta_forward.5} parent=1 // pred_region
      _
    $region13: #{roberta_forward.5} parent=1 // pred_fallthru
      _
    %v16 = vld [vmem:[%s0] sm:$0x3]
    %v17 = vpack.c.bf16 %v16, %v16
    %v18 = vld [vmem:[%s1] sm:$0xf]
    %v19 = vld [vmem:[%s1 + $0x4] sm:$0xf]
    %v20 = vld [vmem:[%s1 + $0x8] sm:$0xf]
    %v21 = vld [vmem:[%s1 + $0xc] sm:$0xf]
    %v22 = vld [vmem:[%s2] sm:$0x1]
    %v24 = vlaneseq
    %v25 = vshrl.u32 %v24, 7
    %v26 = vsub.s32 0, %v25
    %v27 = vrot.slane %v22, %v26
    %v33 = vunpack.c.l.b16 %v18
    %v34 = vunpack.c.l.b16 %v19
    %v35 = vunpack.c.l.b16 %v20
    %v36 = vunpack.c.l.b16 %v21
    %v37 = vpack.c.b16 %v34, %v33
    %v38 = vpack.c.b16 %v36, %v35
    %vm41 = vcmask 261120
    %v43 = vsel %vm41, %v17, 0
    %45 = vmatprep.subr.bf16.mxu0 0
    %46 = vmatpush1.bf16.msra.mxu0 0
    %47 = vmatprep.subr.bf16.mxu0 0
    %48 = vmatpush1.bf16.msra.mxu0 0
    %49 = vmatprep.subr.bf16.mxu0 0
    %50 = vmatpush1.bf16.msra.mxu0 0
    %51 = vmatprep.subr.bf16.mxu0 0
    %52 = vmatpush1.bf16.msra.mxu0 0
    %53 = vmatprep.subr.bf16.mxu0 0
    %54 = vmatpush1.bf16.msra.mxu0 0
    %55 = vmatprep.subr.bf16.mxu0 0
    %56 = vmatpush1.bf16.msra.mxu0 0
    %57 = vmatprep.subr.bf16.mxu0 0
    %58 = vmatpush1.bf16.msra.mxu0 %v38
    %59 = vmatprep.subr.bf16.mxu0 0
    %60 = vmatpush1.bf16.msra.mxu0 %v37
    %61 = vmatprep.subr.bf16.mxu0 0
    %62 = vmatpush2.bf16.msra.mxu0 0
    %63 = vmatprep.subr.bf16.mxu0 0
    %64 = vmatpush2.bf16.msra.mxu0 0
    %65 = vmatprep.subr.bf16.mxu0 0
    %66 = vmatpush2.bf16.msra.mxu0 0
    %67 = vmatprep.subr.bf16.mxu0 0
    %68 = vmatpush2.bf16.msra.mxu0 0
    %69 = vmatprep.subr.bf16.mxu0 0
    %70 = vmatpush2.bf16.msra.mxu0 0
    %71 = vmatprep.subr.bf16.mxu0 0
    %72 = vmatpush2.bf16.msra.mxu0 0
    %73 = vmatprep.subr.bf16.mxu0 0
    %74 = vmatpush2.bf16.msra.mxu0 0
    %75 = vmatprep.subr.bf16.mxu0 0
    %76 = vmatpush2.bf16.msra.mxu0 0
    %77 = vmatprep.mubr.bf16.mxu0 0
    %78 = vmatmul.mubr.bf16.gmra.mxu0 %v43
    %v79 = vpop.f32.mrf.mxu0
    %v80 = vadd.f32 %v27, %v79
    %v81 = vpop.f32.mrf.mxu0
    %v82 = vpop.f32.mrf.mxu0
    %v83 = vpop.f32.mrf.mxu0
    %84 = vdwg.mxu0
    %v85 = vtanh.pop %v80
    %vm86 = vcmask 254976
    %87 = vst.msk [vmem:[#allocation2] sm:$0x3] %vm86, %v85
    // Predicated region
    $region14: #{roberta_forward.5} parent=1 // pred_check
      _
    $region15: #{roberta_forward.5} parent=1 // pred_check_branch
      %89 = sbr.rel (0) target = $region17
    $region16: #{roberta_forward.5} parent=1 // pred_region
      %s91 = ssub.s32 32, 32
      %92 = vsyncadd [#allocation3], %s91
      %s94 = sshll.u32 [#allocation2], 4
      %s95 = int_to_ptr.vmem [resolvable:$true] %s94
      %97 = dma.vmem_to_hbm [thread:$0]  %s95, 32, %s3, [#allocation3]
    $region17: #{roberta_forward.5} parent=1 // pred_fallthru
      _
    // Predicated region
    $region18: #{roberta_forward.5} parent=1 // pred_check
      _
    $region19: #{roberta_forward.5} parent=1 // pred_check_branch
      %99 = sbr.rel (0) target = $region21
    $region20: #{roberta_forward.5} parent=1 // pred_region
      %100 = dma.done [#allocation3], 32
    $region21: #{roberta_forward.5} parent=1 // pred_fallthru
      _
    %101 = vsyncpa [#allocation3], 1

// kernel: roberta_forward.4
$region0: #{roberta_forward.4}
  #allocation0 [shape = 'u32[]', space=smem, size = 0x4, offset = 0x4, fixed_abs, tag = 'smem constant byte address 0x4 - core index']
  #allocation1 [shape = 'u32[144,128]{1,0:T(1,128)}', space=vmem, size = 0x12000, scoped, tag = 'internal scratch']
  %s0 = inlined_call_operand.vmem [shape: f32[2,8,32], index: 0, kind: input, shape index: {}]
  %s1 = inlined_call_operand.vmem [shape: f32[2,1,8], index: 1, kind: input, shape index: {}]
  %s2 = inlined_call_operand.vmem [shape: bf16[6,32,16], index: 2, kind: input, shape index: {}]
  %s3 = inlined_call_operand.vmem [shape: f32[6,1,16], index: 3, kind: input, shape index: {}]
  %s4 = inlined_call_operand.vmem [shape: bf16[2,16,32], index: 4, kind: input, shape index: {}]
  %s5 = inlined_call_operand.vmem [shape: f32[1,32], index: 5, kind: input, shape index: {}]
  %s6 = inlined_call_operand.vmem [shape: f32[1,32], index: 6, kind: input, shape index: {}]
  %s7 = inlined_call_operand.vmem [shape: f32[1,32], index: 7, kind: input, shape index: {}]
  %s8 = inlined_call_operand.vmem [shape: bf16[32,64], index: 8, kind: input, shape index: {}]
  %s9 = inlined_call_operand.vmem [shape: f32[1,64], index: 9, kind: input, shape index: {}]
  %s10 = inlined_call_operand.vmem [shape: bf16[64,32], index: 10, kind: input, shape index: {}]
  %s11 = inlined_call_operand.vmem [shape: f32[1,32], index: 11, kind: input, shape index: {}]
  %s12 = inlined_call_operand.vmem [shape: f32[1,32], index: 12, kind: input, shape index: {}]
  %s13 = inlined_call_operand.vmem [shape: f32[1,32], index: 13, kind: input, shape index: {}]
  %s14 = inlined_call_operand.vmem [shape: f32[2,8,32], index: 14, kind: output, shape index: {}]
  %s15 = sld [smem:[#allocation0]]
  $region89: #{roberta_forward.4} parent=0
    _
  %s17 = ssub.s32 1, %s15
  %s18 = scalar_select 0, %s17, %s15
  loop: start=0, step=1, limit=4
  $region2: #{roberta_forward.4} parent=0 // loop_pre_header
    _
  $region3: #{roberta_forward.4} parent=0 // loop_header
    %s20 = sphi 0, %s24
    %p21 = scmp.ge.s32.totalorder %s20, 4
    %s30 = sphi 0, %s32
    %s33 = sphi 0, %s30
    %s34 = sphi 0, %s33
    %s50 = sphi 0, %s34
    %s56 = sphi 0, %s58
    %s59 = sphi 0, %s56
    %s60 = sphi 0, %s59
    %s76 = sphi 0, %s60
    %s80 = sphi 0, %s80
    %s82 = sphi 0, %s80
    %s83 = sphi 0, %s82
    %s97 = sphi 0, %s83
    %s101 = sphi 0, %s101
    %s103 = sphi 0, %s101
    %s104 = sphi 0, %s103
    %s118 = sphi 0, %s104
    %s122 = sphi 0, %s122
    %s124 = sphi 0, %s122
    %s125 = sphi 0, %s124
    %s139 = sphi 0, %s125
    %s143 = sphi 0, %s143
    %s145 = sphi 0, %s143
    %s146 = sphi 0, %s145
    %s160 = sphi 0, %s146
    %s164 = sphi 0, %s164
    %s166 = sphi 0, %s164
    %s167 = sphi 0, %s166
    %s181 = sphi 0, %s167
    %s185 = sphi 0, %s185
    %s187 = sphi 0, %s185
    %s188 = sphi 0, %s187
    %s202 = sphi 0, %s188
    %s206 = sphi 0, %s206
    %s208 = sphi 0, %s206
    %s209 = sphi 0, %s208
    %s223 = sphi 0, %s209
    %s227 = sphi 0, %s227
    %s229 = sphi 0, %s227
    %s230 = sphi 0, %s229
    %s244 = sphi 0, %s230
    %s248 = sphi 0, %s248
    %s250 = sphi 0, %s248
    %s251 = sphi 0, %s250
    %s265 = sphi 0, %s251
    %s269 = sphi 0, %s269
    %s271 = sphi 0, %s269
    %s272 = sphi 0, %s271
    %s286 = sphi 0, %s272
    %s290 = sphi 0, %s290
    %s292 = sphi 0, %s290
    %s293 = sphi 0, %s292
    %s307 = sphi 0, %s293
    %s311 = sphi 0, %s311
    %s313 = sphi 0, %s311
    %s314 = sphi 0, %s313
    %s328 = sphi 0, %s314
    %s334 = sphi 0, %s336
    %s337 = sphi 0, %s334
    %s338 = sphi 0, %s337
    %s354 = sphi 0, %s338
  $region4: #{roberta_forward.4} parent=0 // loop_header_branch
    %23 = sbr.rel (%p21) target = $region8
  $region5: #{roberta_forward.4} parent=0 // loop_body
    %s25 = ssub.s32 %s20, 1
    %s26 = ssub.s32 %s20, 2
    %s27 = sadd.s32 %s20, 1
    %s28 = ssub.s32 %s20, %s27
    %p29 = scmp.eq.s32.totalorder %s28, 0
    %s31 = sadd.s32 %s30, 1
    %s32 = scalar_select %p29, %s30, %s31
    %p35 = pneg %p29
    %p36 = scmp.eq.s32.totalorder %s20, 1
    %p37 = por %p35, %p36
    %p38 = scmp.ne.s32.totalorder %s30, %s33
    %p39 = scmp.eq.s32.totalorder %s20, 0
    %p40 = por %p38, %p39
    %p41 = scmp.ne.s32.totalorder %s30, %s33
    %p42 = scmp.eq.s32.totalorder %s25, 1
    %p43 = por %p41, %p42
    %p44 = scmp.ne.s32.totalorder %s33, %s34
    %p45 = scmp.eq.s32.totalorder %s25, 0
    %p46 = por %p44, %p45
    %p47 = scmp.ne.s32.totalorder %s33, %s34
    %p48 = scmp.eq.s32.totalorder %s26, 1
    %p49 = por %p47, %p48
    %p51 = scmp.ne.s32.totalorder %s34, %s50
    %p52 = scmp.eq.s32.totalorder %s26, 0
    %p53 = por %p51, %p52
    %s54 = ssub.s32 %s20, %s27
    %p55 = scmp.eq.s32.totalorder %s54, 0
    %s57 = sadd.s32 %s56, 1
    %s58 = scalar_select %p55, %s56, %s57
    %p61 = pneg %p55
    %p62 = scmp.eq.s32.totalorder %s20, 1
    %p63 = por %p61, %p62
    %p64 = scmp.ne.s32.totalorder %s56, %s59
    %p65 = scmp.eq.s32.totalorder %s20, 0
    %p66 = por %p64, %p65
    %p67 = scmp.ne.s32.totalorder %s56, %s59
    %p68 = scmp.eq.s32.totalorder %s25, 1
    %p69 = por %p67, %p68
    %p70 = scmp.ne.s32.totalorder %s59, %s60
    %p71 = scmp.eq.s32.totalorder %s25, 0
    %p72 = por %p70, %p71
    %p73 = scmp.ne.s32.totalorder %s59, %s60
    %p74 = scmp.eq.s32.totalorder %s26, 1
    %p75 = por %p73, %p74
    %p77 = scmp.ne.s32.totalorder %s60, %s76
    %p78 = scmp.eq.s32.totalorder %s26, 0
    %p79 = por %p77, %p78
    %s81 = sadd.s32 %s80, 1
    %p84 = scmp.eq.s32.totalorder %s20, 1
    %p85 = scmp.ne.s32.totalorder %s80, %s82
    %p86 = scmp.eq.s32.totalorder %s20, 0
    %p87 = por %p85, %p86
    %p88 = scmp.ne.s32.totalorder %s80, %s82
    %p89 = scmp.eq.s32.totalorder %s25, 1
    %p90 = por %p88, %p89
    %p91 = scmp.ne.s32.totalorder %s82, %s83
    %p92 = scmp.eq.s32.totalorder %s25, 0
    %p93 = por %p91, %p92
    %p94 = scmp.ne.s32.totalorder %s82, %s83
    %p95 = scmp.eq.s32.totalorder %s26, 1
    %p96 = por %p94, %p95
    %p98 = scmp.ne.s32.totalorder %s83, %s97
    %p99 = scmp.eq.s32.totalorder %s26, 0
    %p100 = por %p98, %p99
    %s102 = sadd.s32 %s101, 1
    %p105 = scmp.eq.s32.totalorder %s20, 1
    %p106 = scmp.ne.s32.totalorder %s101, %s103
    %p107 = scmp.eq.s32.totalorder %s20, 0
    %p108 = por %p106, %p107
    %p109 = scmp.ne.s32.totalorder %s101, %s103
    %p110 = scmp.eq.s32.totalorder %s25, 1
    %p111 = por %p109, %p110
    %p112 = scmp.ne.s32.totalorder %s103, %s104
    %p113 = scmp.eq.s32.totalorder %s25, 0
    %p114 = por %p112, %p113
    %p115 = scmp.ne.s32.totalorder %s103, %s104
    %p116 = scmp.eq.s32.totalorder %s26, 1
    %p117 = por %p115, %p116
    %p119 = scmp.ne.s32.totalorder %s104, %s118
    %p120 = scmp.eq.s32.totalorder %s26, 0
    %p121 = por %p119, %p120
    %s123 = sadd.s32 %s122, 1
    %p126 = scmp.eq.s32.totalorder %s20, 1
    %p127 = scmp.ne.s32.totalorder %s122, %s124
    %p128 = scmp.eq.s32.totalorder %s20, 0
    %p129 = por %p127, %p128
    %p130 = scmp.ne.s32.totalorder %s122, %s124
    %p131 = scmp.eq.s32.totalorder %s25, 1
    %p132 = por %p130, %p131
    %p133 = scmp.ne.s32.totalorder %s124, %s125
    %p134 = scmp.eq.s32.totalorder %s25, 0
    %p135 = por %p133, %p134
    %p136 = scmp.ne.s32.totalorder %s124, %s125
    %p137 = scmp.eq.s32.totalorder %s26, 1
    %p138 = por %p136, %p137
    %p140 = scmp.ne.s32.totalorder %s125, %s139
    %p141 = scmp.eq.s32.totalorder %s26, 0
    %p142 = por %p140, %p141
    %s144 = sadd.s32 %s143, 1
    %p147 = scmp.eq.s32.totalorder %s20, 1
    %p148 = scmp.ne.s32.totalorder %s143, %s145
    %p149 = scmp.eq.s32.totalorder %s20, 0
    %p150 = por %p148, %p149
    %p151 = scmp.ne.s32.totalorder %s143, %s145
    %p152 = scmp.eq.s32.totalorder %s25, 1
    %p153 = por %p151, %p152
    %p154 = scmp.ne.s32.totalorder %s145, %s146
    %p155 = scmp.eq.s32.totalorder %s25, 0
    %p156 = por %p154, %p155
    %p157 = scmp.ne.s32.totalorder %s145, %s146
    %p158 = scmp.eq.s32.totalorder %s26, 1
    %p159 = por %p157, %p158
    %p161 = scmp.ne.s32.totalorder %s146, %s160
    %p162 = scmp.eq.s32.totalorder %s26, 0
    %p163 = por %p161, %p162
    %s165 = sadd.s32 %s164, 1
    %p168 = scmp.eq.s32.totalorder %s20, 1
    %p169 = scmp.ne.s32.totalorder %s164, %s166
    %p170 = scmp.eq.s32.totalorder %s20, 0
    %p171 = por %p169, %p170
    %p172 = scmp.ne.s32.totalorder %s164, %s166
    %p173 = scmp.eq.s32.totalorder %s25, 1
    %p174 = por %p172, %p173
    %p175 = scmp.ne.s32.totalorder %s166, %s167
    %p176 = scmp.eq.s32.totalorder %s25, 0
    %p177 = por %p175, %p176
    %p178 = scmp.ne.s32.totalorder %s166, %s167
    %p179 = scmp.eq.s32.totalorder %s26, 1
    %p180 = por %p178, %p179
    %p182 = scmp.ne.s32.totalorder %s167, %s181
    %p183 = scmp.eq.s32.totalorder %s26, 0
    %p184 = por %p182, %p183
    %s186 = sadd.s32 %s185, 1
    %p189 = scmp.eq.s32.totalorder %s20, 1
    %p190 = scmp.ne.s32.totalorder %s185, %s187
    %p191 = scmp.eq.s32.totalorder %s20, 0
    %p192 = por %p190, %p191
    %p193 = scmp.ne.s32.totalorder %s185, %s187
    %p194 = scmp.eq.s32.totalorder %s25, 1
    %p195 = por %p193, %p194
    %p196 = scmp.ne.s32.totalorder %s187, %s188
    %p197 = scmp.eq.s32.totalorder %s25, 0
    %p198 = por %p196, %p197
    %p199 = scmp.ne.s32.totalorder %s187, %s188
    %p200 = scmp.eq.s32.totalorder %s26, 1
    %p201 = por %p199, %p200
    %p203 = scmp.ne.s32.totalorder %s188, %s202
    %p204 = scmp.eq.s32.totalorder %s26, 0
    %p205 = por %p203, %p204
    %s207 = sadd.s32 %s206, 1
    %p210 = scmp.eq.s32.totalorder %s20, 1
    %p211 = scmp.ne.s32.totalorder %s206, %s208
    %p212 = scmp.eq.s32.totalorder %s20, 0
    %p213 = por %p211, %p212
    %p214 = scmp.ne.s32.totalorder %s206, %s208
    %p215 = scmp.eq.s32.totalorder %s25, 1
    %p216 = por %p214, %p215
    %p217 = scmp.ne.s32.totalorder %s208, %s209
    %p218 = scmp.eq.s32.totalorder %s25, 0
    %p219 = por %p217, %p218
    %p220 = scmp.ne.s32.totalorder %s208, %s209
    %p221 = scmp.eq.s32.totalorder %s26, 1
    %p222 = por %p220, %p221
    %p224 = scmp.ne.s32.totalorder %s209, %s223
    %p225 = scmp.eq.s32.totalorder %s26, 0
    %p226 = por %p224, %p225
    %s228 = sadd.s32 %s227, 1
    %p231 = scmp.eq.s32.totalorder %s20, 1
    %p232 = scmp.ne.s32.totalorder %s227, %s229
    %p233 = scmp.eq.s32.totalorder %s20, 0
    %p234 = por %p232, %p233
    %p235 = scmp.ne.s32.totalorder %s227, %s229
    %p236 = scmp.eq.s32.totalorder %s25, 1
    %p237 = por %p235, %p236
    %p238 = scmp.ne.s32.totalorder %s229, %s230
    %p239 = scmp.eq.s32.totalorder %s25, 0
    %p240 = por %p238, %p239
    %p241 = scmp.ne.s32.totalorder %s229, %s230
    %p242 = scmp.eq.s32.totalorder %s26, 1
    %p243 = por %p241, %p242
    %p245 = scmp.ne.s32.totalorder %s230, %s244
    %p246 = scmp.eq.s32.totalorder %s26, 0
    %p247 = por %p245, %p246
    %s249 = sadd.s32 %s248, 1
    %p252 = scmp.eq.s32.totalorder %s20, 1
    %p253 = scmp.ne.s32.totalorder %s248, %s250
    %p254 = scmp.eq.s32.totalorder %s20, 0
    %p255 = por %p253, %p254
    %p256 = scmp.ne.s32.totalorder %s248, %s250
    %p257 = scmp.eq.s32.totalorder %s25, 1
    %p258 = por %p256, %p257
    %p259 = scmp.ne.s32.totalorder %s250, %s251
    %p260 = scmp.eq.s32.totalorder %s25, 0
    %p261 = por %p259, %p260
    %p262 = scmp.ne.s32.totalorder %s250, %s251
    %p263 = scmp.eq.s32.totalorder %s26, 1
    %p264 = por %p262, %p263
    %p266 = scmp.ne.s32.totalorder %s251, %s265
    %p267 = scmp.eq.s32.totalorder %s26, 0
    %p268 = por %p266, %p267
    %s270 = sadd.s32 %s269, 1
    %p273 = scmp.eq.s32.totalorder %s20, 1
    %p274 = scmp.ne.s32.totalorder %s269, %s271
    %p275 = scmp.eq.s32.totalorder %s20, 0
    %p276 = por %p274, %p275
    %p277 = scmp.ne.s32.totalorder %s269, %s271
    %p278 = scmp.eq.s32.totalorder %s25, 1
    %p279 = por %p277, %p278
    %p280 = scmp.ne.s32.totalorder %s271, %s272
    %p281 = scmp.eq.s32.totalorder %s25, 0
    %p282 = por %p280, %p281
    %p283 = scmp.ne.s32.totalorder %s271, %s272
    %p284 = scmp.eq.s32.totalorder %s26, 1
    %p285 = por %p283, %p284
    %p287 = scmp.ne.s32.totalorder %s272, %s286
    %p288 = scmp.eq.s32.totalorder %s26, 0
    %p289 = por %p287, %p288
    %s291 = sadd.s32 %s290, 1
    %p294 = scmp.eq.s32.totalorder %s20, 1
    %p295 = scmp.ne.s32.totalorder %s290, %s292
    %p296 = scmp.eq.s32.totalorder %s20, 0
    %p297 = por %p295, %p296
    %p298 = scmp.ne.s32.totalorder %s290, %s292
    %p299 = scmp.eq.s32.totalorder %s25, 1
    %p300 = por %p298, %p299
    %p301 = scmp.ne.s32.totalorder %s292, %s293
    %p302 = scmp.eq.s32.totalorder %s25, 0
    %p303 = por %p301, %p302
    %p304 = scmp.ne.s32.totalorder %s292, %s293
    %p305 = scmp.eq.s32.totalorder %s26, 1
    %p306 = por %p304, %p305
    %p308 = scmp.ne.s32.totalorder %s293, %s307
    %p309 = scmp.eq.s32.totalorder %s26, 0
    %p310 = por %p308, %p309
    %s312 = sadd.s32 %s311, 1
    %p315 = scmp.eq.s32.totalorder %s20, 1
    %p316 = scmp.ne.s32.totalorder %s311, %s313
    %p317 = scmp.eq.s32.totalorder %s20, 0
    %p318 = por %p316, %p317
    %p319 = scmp.ne.s32.totalorder %s311, %s313
    %p320 = scmp.eq.s32.totalorder %s25, 1
    %p321 = por %p319, %p320
    %p322 = scmp.ne.s32.totalorder %s313, %s314
    %p323 = scmp.eq.s32.totalorder %s25, 0
    %p324 = por %p322, %p323
    %p325 = scmp.ne.s32.totalorder %s313, %s314
    %p326 = scmp.eq.s32.totalorder %s26, 1
    %p327 = por %p325, %p326
    %p329 = scmp.ne.s32.totalorder %s314, %s328
    %p330 = scmp.eq.s32.totalorder %s26, 0
    %p331 = por %p329, %p330
    %s332 = ssub.s32 %s20, %s27
    %p333 = scmp.eq.s32.totalorder %s332, 0
    %s335 = sadd.s32 %s334, 1
    %s336 = scalar_select %p333, %s334, %s335
    %p339 = pneg %p333
    %p340 = scmp.eq.s32.totalorder %s20, 1
    %p341 = por %p339, %p340
    %p342 = scmp.ne.s32.totalorder %s334, %s337
    %p343 = scmp.eq.s32.totalorder %s20, 0
    %p344 = por %p342, %p343
    %p345 = scmp.ne.s32.totalorder %s334, %s337
    %p346 = scmp.eq.s32.totalorder %s25, 1
    %p347 = por %p345, %p346
    %p348 = scmp.ne.s32.totalorder %s337, %s338
    %p349 = scmp.eq.s32.totalorder %s25, 0
    %p350 = por %p348, %p349
    %p351 = scmp.ne.s32.totalorder %s337, %s338
    %p352 = scmp.eq.s32.totalorder %s26, 1
    %p353 = por %p351, %p352
    %p355 = scmp.ne.s32.totalorder %s338, %s354
    %p356 = scmp.eq.s32.totalorder %s26, 0
    %p357 = por %p355, %p356
    %p358 = scmp.le.s32.totalorder 1, %s20
    %p359 = scmp.lt.s32.totalorder %s20, 3
    %p360 = pnand %p358, %p359
    %p361 = pneg %p360
    // Predicated region
    $region9: #{roberta_forward.4} parent=5 // pred_check
      _
    $region10: #{roberta_forward.4} parent=5 // pred_check_branch
      %363 = sbr.rel (%p360) target = $region12
    $region11: #{roberta_forward.4} parent=5 // pred_region
      %s364 = ssub.s32 %s20, 1
      // Predicated region
      $region13: #{roberta_forward.4} parent=11 // pred_check
        %p365 = pneg %p93
      $region14: #{roberta_forward.4} parent=11 // pred_check_branch
        %367 = sbr.rel (%p365) target = $region16
      $region15: #{roberta_forward.4} parent=11 // pred_region
        _
      $region16: #{roberta_forward.4} parent=11 // pred_fallthru
        _
      // Predicated region
      $region17: #{roberta_forward.4} parent=11 // pred_check
        %p368 = pneg %p114
      $region18: #{roberta_forward.4} parent=11 // pred_check_branch
        %370 = sbr.rel (%p368) target = $region20
      $region19: #{roberta_forward.4} parent=11 // pred_region
        _
      $region20: #{roberta_forward.4} parent=11 // pred_fallthru
        _
      // Predicated region
      $region21: #{roberta_forward.4} parent=11 // pred_check
        %p371 = pneg %p135
      $region22: #{roberta_forward.4} parent=11 // pred_check_branch
        %373 = sbr.rel (%p371) target = $region24
      $region23: #{roberta_forward.4} parent=11 // pred_region
        _
      $region24: #{roberta_forward.4} parent=11 // pred_fallthru
        _
      // Predicated region
      $region25: #{roberta_forward.4} parent=11 // pred_check
        %p374 = pneg %p156
      $region26: #{roberta_forward.4} parent=11 // pred_check_branch
        %376 = sbr.rel (%p374) target = $region28
      $region27: #{roberta_forward.4} parent=11 // pred_region
        _
      $region28: #{roberta_forward.4} parent=11 // pred_fallthru
        _
      // Predicated region
      $region29: #{roberta_forward.4} parent=11 // pred_check
        %p377 = pneg %p177
      $region30: #{roberta_forward.4} parent=11 // pred_check_branch
        %379 = sbr.rel (%p377) target = $region32
      $region31: #{roberta_forward.4} parent=11 // pred_region
        _
      $region32: #{roberta_forward.4} parent=11 // pred_fallthru
        _
      // Predicated region
      $region33: #{roberta_forward.4} parent=11 // pred_check
        %p380 = pneg %p198
      $region34: #{roberta_forward.4} parent=11 // pred_check_branch
        %382 = sbr.rel (%p380) target = $region36
      $region35: #{roberta_forward.4} parent=11 // pred_region
        _
      $region36: #{roberta_forward.4} parent=11 // pred_fallthru
        _
      // Predicated region
      $region37: #{roberta_forward.4} parent=11 // pred_check
        %p383 = pneg %p219
      $region38: #{roberta_forward.4} parent=11 // pred_check_branch
        %385 = sbr.rel (%p383) target = $region40
      $region39: #{roberta_forward.4} parent=11 // pred_region
        _
      $region40: #{roberta_forward.4} parent=11 // pred_fallthru
        _
      // Predicated region
      $region41: #{roberta_forward.4} parent=11 // pred_check
        %p386 = pneg %p240
      $region42: #{roberta_forward.4} parent=11 // pred_check_branch
        %388 = sbr.rel (%p386) target = $region44
      $region43: #{roberta_forward.4} parent=11 // pred_region
        _
      $region44: #{roberta_forward.4} parent=11 // pred_fallthru
        _
      // Predicated region
      $region45: #{roberta_forward.4} parent=11 // pred_check
        %p389 = pneg %p261
      $region46: #{roberta_forward.4} parent=11 // pred_check_branch
        %391 = sbr.rel (%p389) target = $region48
      $region47: #{roberta_forward.4} parent=11 // pred_region
        _
      $region48: #{roberta_forward.4} parent=11 // pred_fallthru
        _
      // Predicated region
      $region49: #{roberta_forward.4} parent=11 // pred_check
        %p392 = pneg %p282
      $region50: #{roberta_forward.4} parent=11 // pred_check_branch
        %394 = sbr.rel (%p392) target = $region52
      $region51: #{roberta_forward.4} parent=11 // pred_region
        _
      $region52: #{roberta_forward.4} parent=11 // pred_fallthru
        _
      // Predicated region
      $region53: #{roberta_forward.4} parent=11 // pred_check
        %p395 = pneg %p303
      $region54: #{roberta_forward.4} parent=11 // pred_check_branch
        %397 = sbr.rel (%p395) target = $region56
      $region55: #{roberta_forward.4} parent=11 // pred_region
        _
      $region56: #{roberta_forward.4} parent=11 // pred_fallthru
        _
      // Predicated region
      $region57: #{roberta_forward.4} parent=11 // pred_check
        %p398 = pneg %p324
      $region58: #{roberta_forward.4} parent=11 // pred_check_branch
        %400 = sbr.rel (%p398) target = $region60
      $region59: #{roberta_forward.4} parent=11 // pred_region
        _
      $region60: #{roberta_forward.4} parent=11 // pred_fallthru
        _
    $region12: #{roberta_forward.4} parent=5 // pred_fallthru
      _
    %p401 = scmp.lt.s32.totalorder %s20, 2
    // Predicated region
    $region61: #{roberta_forward.4} parent=5 // pred_check
      %p402 = pneg %p401
    $region62: #{roberta_forward.4} parent=5 // pred_check_branch
      %404 = sbr.rel (%p402) target = $region64
    $region63: #{roberta_forward.4} parent=5 // pred_region
      // Predicated region
      $region65: #{roberta_forward.4} parent=63 // pred_check
        %p405 = pneg %p40
      $region66: #{roberta_forward.4} parent=63 // pred_check_branch
        %407 = sbr.rel (%p405) target = $region68
      $region67: #{roberta_forward.4} parent=63 // pred_region
        %p408 = scmp.lt.s32.totalorder %s20, 1
        %s409 = scalar_select %p408, %s20, 1
        %s410 = smul.addr %s409, 8
        %s411 = scalar_lea.vmem %s0, %s410
      $region68: #{roberta_forward.4} parent=63 // pred_fallthru
        _
      // Predicated region
      $region69: #{roberta_forward.4} parent=63 // pred_check
        %p412 = pneg %p66
      $region70: #{roberta_forward.4} parent=63 // pred_check_branch
        %414 = sbr.rel (%p412) target = $region72
      $region71: #{roberta_forward.4} parent=63 // pred_region
        %p415 = scmp.lt.s32.totalorder %s20, 1
        %s416 = scalar_select %p415, %s20, 1
        %s417 = scalar_lea.vmem %s1, %s416
      $region72: #{roberta_forward.4} parent=63 // pred_fallthru
        _
    $region64: #{roberta_forward.4} parent=5 // pred_fallthru
      _
    %p418 = scmp.le.s32.totalorder 1, %s20
    %p419 = scmp.lt.s32.totalorder %s20, 3
    %p420 = pnand %p418, %p419
    %p421 = pneg %p420
    // Predicated region
    $region73: #{roberta_forward.4} parent=5 // pred_check
      _
    $region74: #{roberta_forward.4} parent=5 // pred_check_branch
      %423 = sbr.rel (%p420) target = $region76
    $region75: #{roberta_forward.4} parent=5 // pred_region
      %s424 = ssub.s32 %s20, 1
      %p425 = scmp.lt.s32.totalorder %s25, 1
      %s426 = scalar_select %p425, %s25, 1
      %s427 = smul.addr %s426, 8
      %s428 = scalar_lea.vmem %s0, %s427
      %p429 = pneg %p46
      %p430 = pneg %p43
      %p431 = scmp.lt.s32.totalorder %s25, 1
      %s432 = scalar_select %p431, %s25, 1
      %s433 = scalar_lea.vmem %s1, %s432
      %p434 = pneg %p72
      %p435 = pneg %p69
      %p436 = pneg %p93
      %p437 = pneg %p90
      %p438 = pneg %p114
      %p439 = pneg %p111
      %p440 = pneg %p135
      %p441 = pneg %p132
      %p442 = pneg %p156
      %p443 = pneg %p153
      %p444 = pneg %p177
      %p445 = pneg %p174
      %p446 = pneg %p198
      %p447 = pneg %p195
      %p448 = pneg %p219
      %p449 = pneg %p216
      %p450 = pneg %p240
      %p451 = pneg %p237
      %p452 = pneg %p261
      %p453 = pneg %p258
      %p454 = pneg %p282
      %p455 = pneg %p279
      %p456 = pneg %p303
      %p457 = pneg %p300
      %p458 = pneg %p324
      %p459 = pneg %p321
      %p460 = pneg %p350
      %p461 = pneg %p347
      %p462 = scmp.lt.s32.totalorder %s25, 1
      %s463 = scalar_select %p462, %s25, 1
      %s464 = smul.addr %s463, 8
      %s465 = scalar_lea.vmem %s14, %s464
      %p466 = scmp.lt.s32.totalorder %s25, 1
      %s467 = scalar_select %p466, %s25, 1
      %s468 = smul.addr %s467, 8
      %s469 = scalar_lea.vmem %s0, %s468
      %p470 = scmp.lt.s32.totalorder %s25, 1
      %s471 = scalar_select %p470, %s25, 1
      %s472 = scalar_lea.vmem %s1, %s471
      %p473 = scmp.lt.s32.totalorder %s25, 1
      %s474 = scalar_select %p473, %s25, 1
      %s475 = smul.addr %s474, 8
      %s476 = scalar_lea.vmem %s14, %s475
      %v478 = vld [vmem:[%s469] sm:$0xff]
      %v479 = vld [vmem:[%s472] sm:$0x1]
      %v480 = vld [vmem:[%s2] sm:$0xf]
      %v481 = vld [vmem:[%s2 + $0x4] sm:$0xf]
      %v482 = vld [vmem:[%s2 + $0x8] sm:$0xf]
      %v483 = vld [vmem:[%s2 + $0xc] sm:$0xf]
      %v484 = vld [vmem:[%s2 + $0x10] sm:$0xf]
      %v485 = vld [vmem:[%s2 + $0x14] sm:$0xf]
      %v486 = vld [vmem:[%s2 + $0x18] sm:$0xf]
      %v487 = vld [vmem:[%s2 + $0x1c] sm:$0xf]
      %v488 = vld [vmem:[%s2 + $0x20] sm:$0xf]
      %v489 = vld [vmem:[%s2 + $0x24] sm:$0xf]
      %v490 = vld [vmem:[%s2 + $0x28] sm:$0xf]
      %v491 = vld [vmem:[%s2 + $0x2c] sm:$0xf]
      %v492 = vld [vmem:[%s2 + $0x30] sm:$0xf]
      %v493 = vld [vmem:[%s2 + $0x34] sm:$0xf]
      %v494 = vld [vmem:[%s2 + $0x38] sm:$0xf]
      %v495 = vld [vmem:[%s2 + $0x3c] sm:$0xf]
      %v496 = vld [vmem:[%s2 + $0x40] sm:$0xf]
      %v497 = vld [vmem:[%s2 + $0x44] sm:$0xf]
      %v498 = vld [vmem:[%s2 + $0x48] sm:$0xf]
      %v499 = vld [vmem:[%s2 + $0x4c] sm:$0xf]
      %v500 = vld [vmem:[%s2 + $0x50] sm:$0xf]
      %v501 = vld [vmem:[%s2 + $0x54] sm:$0xf]
      %v502 = vld [vmem:[%s2 + $0x58] sm:$0xf]
      %v503 = vld [vmem:[%s2 + $0x5c] sm:$0xf]
      %v504 = vld [vmem:[%s3] sm:$0x1]
      %v505 = vld [vmem:[%s3 + $0x1] sm:$0x1]
      %v506 = vld [vmem:[%s3 + $0x2] sm:$0x1]
      %v507 = vld [vmem:[%s3 + $0x3] sm:$0x1]
      %v508 = vld [vmem:[%s3 + $0x4] sm:$0x1]
      %v509 = vld [vmem:[%s3 + $0x5] sm:$0x1]
      %v510 = vld [vmem:[%s4] sm:$0xf]
      %v511 = vld [vmem:[%s4 + $0x4] sm:$0xf]
      %v512 = vld [vmem:[%s4 + $0x8] sm:$0xf]
      %v513 = vld [vmem:[%s4 + $0xc] sm:$0xf]
      %v514 = vld [vmem:[%s5] sm:$0x1]
      %v515 = vld [vmem:[%s6] sm:$0x1]
      %v516 = vld [vmem:[%s7] sm:$0x1]
      %v517 = vld [vmem:[%s8] sm:$0xf]
      %v518 = vld [vmem:[%s8 + $0x4] sm:$0xf]
      %v519 = vld [vmem:[%s8 + $0x8] sm:$0xf]
      %v520 = vld [vmem:[%s8 + $0xc] sm:$0xf]
      %v521 = vld [vmem:[%s9] sm:$0x1]
      %v522 = vld [vmem:[%s10] sm:$0xf]
      %v523 = vld [vmem:[%s10 + $0x4] sm:$0xf]
      %v524 = vld [vmem:[%s10 + $0x8] sm:$0xf]
      %v525 = vld [vmem:[%s10 + $0xc] sm:$0xf]
      %v526 = vld [vmem:[%s10 + $0x10] sm:$0xf]
      %v527 = vld [vmem:[%s10 + $0x14] sm:$0xf]
      %v528 = vld [vmem:[%s10 + $0x18] sm:$0xf]
      %v529 = vld [vmem:[%s10 + $0x1c] sm:$0xf]
      %v530 = vld [vmem:[%s11] sm:$0x1]
      %v531 = vld [vmem:[%s12] sm:$0x1]
      %v532 = vld [vmem:[%s13] sm:$0x1]
      %vm533 = vcmp.gt.f32.partialorder %v479, 0.5
      %v534 = vsel %vm533, 0.0, -1e+09
      %v535 = vpack.c.bf16 %v478, %v478
      %v542 = vlaneseq
      %v543 = vshrl.u32 %v542, 7
      %v544 = vsub.s32 0, %v543
      %v545 = vrot.slane %v504, %v544
      %v546 = vlaneseq
      %v547 = vshrl.u32 %v546, 7
      %v548 = vsub.s32 0, %v547
      %v549 = vrot.slane %v505, %v548
      %v550 = vlaneseq
      %v551 = vshrl.u32 %v550, 7
      %v552 = vsub.s32 0, %v551
      %v553 = vrot.slane %v506, %v552
      %v554 = vlaneseq
      %v555 = vshrl.u32 %v554, 7
      %v556 = vsub.s32 0, %v555
      %v557 = vrot.slane %v507, %v556
      %v558 = vlaneseq
      %v559 = vshrl.u32 %v558, 7
      %v560 = vsub.s32 0, %v559
      %v561 = vrot.slane %v508, %v560
      %v562 = vlaneseq
      %v563 = vshrl.u32 %v562, 7
      %v564 = vsub.s32 0, %v563
      %v565 = vrot.slane %v509, %v564
      %v576 = vunpack.c.l.b16 %v480
      %v577 = vunpack.c.l.b16 %v481
      %v578 = vunpack.c.l.b16 %v482
      %v579 = vunpack.c.l.b16 %v483
      %v580 = vpack.c.b16 %v577, %v576
      %v581 = vpack.c.b16 %v579, %v578
      %vm584 = vcmask 261120
      %v586 = vsel %vm584, %v535, 0
      %588 = vmatprep.subr.bf16.mxu0 0
      %589 = vmatpush1.bf16.msra.mxu0 0
      %590 = vmatprep.subr.bf16.mxu0 0
      %591 = vmatpush1.bf16.msra.mxu0 0
      %592 = vmatprep.subr.bf16.mxu0 0
      %593 = vmatpush1.bf16.msra.mxu0 0
      %594 = vmatprep.subr.bf16.mxu0 0
      %595 = vmatpush1.bf16.msra.mxu0 0
      %596 = vmatprep.subr.bf16.mxu0 0
      %597 = vmatpush1.bf16.msra.mxu0 0
      %598 = vmatprep.subr.bf16.mxu0 0
      %599 = vmatpush1.bf16.msra.mxu0 0
      %600 = vmatprep.subr.bf16.mxu0 0
      %601 = vmatpush1.bf16.msra.mxu0 %v581
      %602 = vmatprep.subr.bf16.mxu0 0
      %603 = vmatpush1.bf16.msra.mxu0 %v580
      %604 = vmatprep.subr.bf16.mxu0 0
      %605 = vmatpush2.bf16.msra.mxu0 0
      %606 = vmatprep.subr.bf16.mxu0 0
      %607 = vmatpush2.bf16.msra.mxu0 0
      %608 = vmatprep.subr.bf16.mxu0 0
      %609 = vmatpush2.bf16.msra.mxu0 0
      %610 = vmatprep.subr.bf16.mxu0 0
      %611 = vmatpush2.bf16.msra.mxu0 0
      %612 = vmatprep.subr.bf16.mxu0 0
      %613 = vmatpush2.bf16.msra.mxu0 0
      %614 = vmatprep.subr.bf16.mxu0 0
      %615 = vmatpush2.bf16.msra.mxu0 0
      %616 = vmatprep.subr.bf16.mxu0 0
      %617 = vmatpush2.bf16.msra.mxu0 0
      %618 = vmatprep.subr.bf16.mxu0 0
      %619 = vmatpush2.bf16.msra.mxu0 0
      %620 = vmatprep.mubr.bf16.mxu0 0
      %621 = vmatmul.mubr.bf16.gmra.mxu0 %v586
      %v622 = vpop.f32.mrf.mxu0
      %v623 = vadd.f32 %v545, %v622
      %v624 = vpop.f32.mrf.mxu0
      %v625 = vpop.f32.mrf.mxu0
      %v626 = vpop.f32.mrf.mxu0
      %627 = vdwg.mxu0
      %v632 = vunpack.c.l.b16 %v484
      %v633 = vunpack.c.l.b16 %v485
      %v634 = vunpack.c.l.b16 %v486
      %v635 = vunpack.c.l.b16 %v487
      %v636 = vpack.c.b16 %v633, %v632
      %v637 = vpack.c.b16 %v635, %v634
      %640 = vmatprep.subr.bf16.mxu0 0
      %641 = vmatpush1.bf16.msra.mxu0 0
      %642 = vmatprep.subr.bf16.mxu0 0
      %643 = vmatpush1.bf16.msra.mxu0 0
      %644 = vmatprep.subr.bf16.mxu0 0
      %645 = vmatpush1.bf16.msra.mxu0 0
      %646 = vmatprep.subr.bf16.mxu0 0
      %647 = vmatpush1.bf16.msra.mxu0 0
      %648 = vmatprep.subr.bf16.mxu0 0
      %649 = vmatpush1.bf16.msra.mxu0 0
      %650 = vmatprep.subr.bf16.mxu0 0
      %651 = vmatpush1.bf16.msra.mxu0 0
      %652 = vmatprep.subr.bf16.mxu0 0
      %653 = vmatpush1.bf16.msra.mxu0 %v637
      %654 = vmatprep.subr.bf16.mxu0 0
      %655 = vmatpush1.bf16.msra.mxu0 %v636
      %656 = vmatprep.subr.bf16.mxu0 0
      %657 = vmatpush2.bf16.msra.mxu0 0
      %658 = vmatprep.subr.bf16.mxu0 0
      %659 = vmatpush2.bf16.msra.mxu0 0
      %660 = vmatprep.subr.bf16.mxu0 0
      %661 = vmatpush2.bf16.msra.mxu0 0
      %662 = vmatprep.subr.bf16.mxu0 0
      %663 = vmatpush2.bf16.msra.mxu0 0
      %664 = vmatprep.subr.bf16.mxu0 0
      %665 = vmatpush2.bf16.msra.mxu0 0
      %666 = vmatprep.subr.bf16.mxu0 0
      %667 = vmatpush2.bf16.msra.mxu0 0
      %668 = vmatprep.subr.bf16.mxu0 0
      %669 = vmatpush2.bf16.msra.mxu0 0
      %670 = vmatprep.subr.bf16.mxu0 0
      %671 = vmatpush2.bf16.msra.mxu0 0
      %672 = vmatprep.mubr.bf16.mxu0 0
      %673 = vmatmul.mubr.bf16.gmra.mxu0 %v586
      %v674 = vpop.f32.mrf.mxu0
      %v675 = vadd.f32 %v549, %v674
      %v676 = vpop.f32.mrf.mxu0
      %v677 = vpop.f32.mrf.mxu0
      %v678 = vpop.f32.mrf.mxu0
      %679 = vdwg.mxu0
      %v684 = vunpack.c.l.b16 %v488
      %v685 = vunpack.c.l.b16 %v489
      %v686 = vunpack.c.l.b16 %v490
      %v687 = vunpack.c.l.b16 %v491
      %v688 = vpack.c.b16 %v685, %v684
      %v689 = vpack.c.b16 %v687, %v686
      %692 = vmatprep.subr.bf16.mxu0 0
      %693 = vmatpush1.bf16.msra.mxu0 0
      %694 = vmatprep.subr.bf16.mxu0 0
      %695 = vmatpush1.bf16.msra.mxu0 0
      %696 = vmatprep.subr.bf16.mxu0 0
      %697 = vmatpush1.bf16.msra.mxu0 0
      %698 = vmatprep.subr.bf16.mxu0 0
      %699 = vmatpush1.bf16.msra.mxu0 0
      %700 = vmatprep.subr.bf16.mxu0 0
      %701 = vmatpush1.bf16.msra.mxu0 0
      %702 = vmatprep.subr.bf16.mxu0 0
      %703 = vmatpush1.bf16.msra.mxu0 0
      %704 = vmatprep.subr.bf16.mxu0 0
      %705 = vmatpush1.bf16.msra.mxu0 %v689
      %706 = vmatprep.subr.bf16.mxu0 0
      %707 = vmatpush1.bf16.msra.mxu0 %v688
      %708 = vmatprep.subr.bf16.mxu0 0
      %709 = vmatpush2.bf16.msra.mxu0 0
      %710 = vmatprep.subr.bf16.mxu0 0
      %711 = vmatpush2.bf16.msra.mxu0 0
      %712 = vmatprep.subr.bf16.mxu0 0
      %713 = vmatpush2.bf16.msra.mxu0 0
      %714 = vmatprep.subr.bf16.mxu0 0
      %715 = vmatpush2.bf16.msra.mxu0 0
      %716 = vmatprep.subr.bf16.mxu0 0
      %717 = vmatpush2.bf16.msra.mxu0 0
      %718 = vmatprep.subr.bf16.mxu0 0
      %719 = vmatpush2.bf16.msra.mxu0 0
      %720 = vmatprep.subr.bf16.mxu0 0
      %721 = vmatpush2.bf16.msra.mxu0 0
      %722 = vmatprep.subr.bf16.mxu0 0
      %723 = vmatpush2.bf16.msra.mxu0 0
      %724 = vmatprep.mubr.bf16.mxu0 0
      %725 = vmatmul.mubr.bf16.gmra.mxu0 %v586
      %v726 = vpop.f32.mrf.mxu0
      %v727 = vadd.f32 %v553, %v726
      %v728 = vpop.f32.mrf.mxu0
      %v729 = vpop.f32.mrf.mxu0
      %v730 = vpop.f32.mrf.mxu0
      %731 = vdwg.mxu0
      %v736 = vunpack.c.l.b16 %v492
      %v737 = vunpack.c.l.b16 %v493
      %v738 = vunpack.c.l.b16 %v494
      %v739 = vunpack.c.l.b16 %v495
      %v740 = vpack.c.b16 %v737, %v736
      %v741 = vpack.c.b16 %v739, %v738
      %744 = vmatprep.subr.bf16.mxu0 0
      %745 = vmatpush1.bf16.msra.mxu0 0
      %746 = vmatprep.subr.bf16.mxu0 0
      %747 = vmatpush1.bf16.msra.mxu0 0
      %748 = vmatprep.subr.bf16.mxu0 0
      %749 = vmatpush1.bf16.msra.mxu0 0
      %750 = vmatprep.subr.bf16.mxu0 0
      %751 = vmatpush1.bf16.msra.mxu0 0
      %752 = vmatprep.subr.bf16.mxu0 0
      %753 = vmatpush1.bf16.msra.mxu0 0
      %754 = vmatprep.subr.bf16.mxu0 0
      %755 = vmatpush1.bf16.msra.mxu0 0
      %756 = vmatprep.subr.bf16.mxu0 0
      %757 = vmatpush1.bf16.msra.mxu0 %v741
      %758 = vmatprep.subr.bf16.mxu0 0
      %759 = vmatpush1.bf16.msra.mxu0 %v740
      %760 = vmatprep.subr.bf16.mxu0 0
      %761 = vmatpush2.bf16.msra.mxu0 0
      %762 = vmatprep.subr.bf16.mxu0 0
      %763 = vmatpush2.bf16.msra.mxu0 0
      %764 = vmatprep.subr.bf16.mxu0 0
      %765 = vmatpush2.bf16.msra.mxu0 0
      %766 = vmatprep.subr.bf16.mxu0 0
      %767 = vmatpush2.bf16.msra.mxu0 0
      %768 = vmatprep.subr.bf16.mxu0 0
      %769 = vmatpush2.bf16.msra.mxu0 0
      %770 = vmatprep.subr.bf16.mxu0 0
      %771 = vmatpush2.bf16.msra.mxu0 0
      %772 = vmatprep.subr.bf16.mxu0 0
      %773 = vmatpush2.bf16.msra.mxu0 0
      %774 = vmatprep.subr.bf16.mxu0 0
      %775 = vmatpush2.bf16.msra.mxu0 0
      %776 = vmatprep.mubr.bf16.mxu0 0
      %777 = vmatmul.mubr.bf16.gmra.mxu0 %v586
      %v778 = vpop.f32.mrf.mxu0
      %v779 = vadd.f32 %v557, %v778
      %v780 = vpop.f32.mrf.mxu0
      %v781 = vpop.f32.mrf.mxu0
      %v782 = vpop.f32.mrf.mxu0
      %783 = vdwg.mxu0
      %v788 = vunpack.c.l.b16 %v496
      %v789 = vunpack.c.l.b16 %v497
      %v790 = vunpack.c.l.b16 %v498
      %v791 = vunpack.c.l.b16 %v499
      %v792 = vpack.c.b16 %v789, %v788
      %v793 = vpack.c.b16 %v791, %v790
      %796 = vmatprep.subr.bf16.mxu0 0
      %797 = vmatpush1.bf16.msra.mxu0 0
      %798 = vmatprep.subr.bf16.mxu0 0
      %799 = vmatpush1.bf16.msra.mxu0 0
      %800 = vmatprep.subr.bf16.mxu0 0
      %801 = vmatpush1.bf16.msra.mxu0 0
      %802 = vmatprep.subr.bf16.mxu0 0
      %803 = vmatpush1.bf16.msra.mxu0 0
      %804 = vmatprep.subr.bf16.mxu0 0
      %805 = vmatpush1.bf16.msra.mxu0 0
      %806 = vmatprep.subr.bf16.mxu0 0
      %807 = vmatpush1.bf16.msra.mxu0 0
      %808 = vmatprep.subr.bf16.mxu0 0
      %809 = vmatpush1.bf16.msra.mxu0 %v793
      %810 = vmatprep.subr.bf16.mxu0 0
      %811 = vmatpush1.bf16.msra.mxu0 %v792
      %812 = vmatprep.subr.bf16.mxu0 0
      %813 = vmatpush2.bf16.msra.mxu0 0
      %814 = vmatprep.subr.bf16.mxu0 0
      %815 = vmatpush2.bf16.msra.mxu0 0
      %816 = vmatprep.subr.bf16.mxu0 0
      %817 = vmatpush2.bf16.msra.mxu0 0
      %818 = vmatprep.subr.bf16.mxu0 0
      %819 = vmatpush2.bf16.msra.mxu0 0
      %820 = vmatprep.subr.bf16.mxu0 0
      %821 = vmatpush2.bf16.msra.mxu0 0
      %822 = vmatprep.subr.bf16.mxu0 0
      %823 = vmatpush2.bf16.msra.mxu0 0
      %824 = vmatprep.subr.bf16.mxu0 0
      %825 = vmatpush2.bf16.msra.mxu0 0
      %826 = vmatprep.subr.bf16.mxu0 0
      %827 = vmatpush2.bf16.msra.mxu0 0
      %828 = vmatprep.mubr.bf16.mxu0 0
      %829 = vmatmul.mubr.bf16.gmra.mxu0 %v586
      %v830 = vpop.f32.mrf.mxu0
      %v831 = vadd.f32 %v561, %v830
      %v832 = vpop.f32.mrf.mxu0
      %v833 = vpop.f32.mrf.mxu0
      %v834 = vpop.f32.mrf.mxu0
      %835 = vdwg.mxu0
      %v840 = vunpack.c.l.b16 %v500
      %v841 = vunpack.c.l.b16 %v501
      %v842 = vunpack.c.l.b16 %v502
      %v843 = vunpack.c.l.b16 %v503
      %v844 = vpack.c.b16 %v841, %v840
      %v845 = vpack.c.b16 %v843, %v842
      %848 = vmatprep.subr.bf16.mxu0 0
      %849 = vmatpush1.bf16.msra.mxu0 0
      %850 = vmatprep.subr.bf16.mxu0 0
      %851 = vmatpush1.bf16.msra.mxu0 0
      %852 = vmatprep.subr.bf16.mxu0 0
      %853 = vmatpush1.bf16.msra.mxu0 0
      %854 = vmatprep.subr.bf16.mxu0 0
      %855 = vmatpush1.bf16.msra.mxu0 0
      %856 = vmatprep.subr.bf16.mxu0 0
      %857 = vmatpush1.bf16.msra.mxu0 0
      %858 = vmatprep.subr.bf16.mxu0 0
      %859 = vmatpush1.bf16.msra.mxu0 0
      %860 = vmatprep.subr.bf16.mxu0 0
      %861 = vmatpush1.bf16.msra.mxu0 %v845
      %862 = vmatprep.subr.bf16.mxu0 0
      %863 = vmatpush1.bf16.msra.mxu0 %v844
      %864 = vmatprep.subr.bf16.mxu0 0
      %865 = vmatpush2.bf16.msra.mxu0 0
      %866 = vmatprep.subr.bf16.mxu0 0
      %867 = vmatpush2.bf16.msra.mxu0 0
      %868 = vmatprep.subr.bf16.mxu0 0
      %869 = vmatpush2.bf16.msra.mxu0 0
      %870 = vmatprep.subr.bf16.mxu0 0
      %871 = vmatpush2.bf16.msra.mxu0 0
      %872 = vmatprep.subr.bf16.mxu0 0
      %873 = vmatpush2.bf16.msra.mxu0 0
      %874 = vmatprep.subr.bf16.mxu0 0
      %875 = vmatpush2.bf16.msra.mxu0 0
      %876 = vmatprep.subr.bf16.mxu0 0
      %877 = vmatpush2.bf16.msra.mxu0 0
      %878 = vmatprep.subr.bf16.mxu0 0
      %879 = vmatpush2.bf16.msra.mxu0 0
      %880 = vmatprep.mubr.bf16.mxu0 0
      %881 = vmatmul.mubr.bf16.gmra.mxu0 %v586
      %v882 = vpop.f32.mrf.mxu0
      %v883 = vadd.f32 %v565, %v882
      %v884 = vpop.f32.mrf.mxu0
      %v885 = vpop.f32.mrf.mxu0
      %v886 = vpop.f32.mrf.mxu0
      %887 = vdwg.mxu0
      %v888 = vpack.c.bf16 %v623, %v623
      %v889 = vpack.c.bf16 %v675, %v675
      %v890 = vpack.c.bf16 %v727, %v727
      %v891 = vpack.c.bf16 %v779, %v779
      %v893 = vlaneseq
      %v894 = vshrl.u32 %v893, 7
      %v895 = vsub.s32 0, %v894
      %v896 = vrot.slane %v534, %v895
      %vm898 = vcmask 130048
      %v900 = vsel %vm898, %v888, 0
      %v903 = vsel %vm898, %v890, 0
      %905 = vmatprep.subr.bf16.mxu0 0
      %906 = vmatpush1.bf16.xpose.msra.mxu0 0
      %907 = vmatprep.subr.bf16.mxu0 0
      %908 = vmatpush1.bf16.xpose.msra.mxu0 0
      %909 = vmatprep.subr.bf16.mxu0 0
      %910 = vmatpush1.bf16.xpose.msra.mxu0 0
      %911 = vmatprep.subr.bf16.mxu0 0
      %912 = vmatpush1.bf16.xpose.msra.mxu0 0
      %913 = vmatprep.subr.bf16.mxu0 0
      %914 = vmatpush1.bf16.xpose.msra.mxu0 0
      %915 = vmatprep.subr.bf16.mxu0 0
      %916 = vmatpush1.bf16.xpose.msra.mxu0 0
      %917 = vmatprep.subr.bf16.mxu0 0
      %918 = vmatpush1.bf16.xpose.msra.mxu0 0
      %919 = vmatprep.subr.bf16.mxu0 0
      %920 = vmatpush1.bf16.xpose.msra.mxu0 %v903
      %921 = vmatprep.subr.bf16.mxu0 0
      %922 = vmatpush2.bf16.xpose.msra.mxu0 0
      %923 = vmatprep.subr.bf16.mxu0 0
      %924 = vmatpush2.bf16.xpose.msra.mxu0 0
      %925 = vmatprep.subr.bf16.mxu0 0
      %926 = vmatpush2.bf16.xpose.msra.mxu0 0
      %927 = vmatprep.subr.bf16.mxu0 0
      %928 = vmatpush2.bf16.xpose.msra.mxu0 0
      %929 = vmatprep.subr.bf16.mxu0 0
      %930 = vmatpush2.bf16.xpose.msra.mxu0 0
      %931 = vmatprep.subr.bf16.mxu0 0
      %932 = vmatpush2.bf16.xpose.msra.mxu0 0
      %933 = vmatprep.subr.bf16.mxu0 0
      %934 = vmatpush2.bf16.xpose.msra.mxu0 0
      %935 = vmatprep.subr.bf16.mxu0 0
      %936 = vmatpush2.bf16.xpose.msra.mxu0 0
      %937 = vmatprep.mubr.bf16.mxu0 0
      %938 = vmatmul.mubr.bf16.gmra.mxu0 %v900
      %v939 = vpop.f32.mrf.mxu0
      %v940 = vadd.f32 %v896, %v939
      %v941 = vpop.f32.mrf.mxu0
      %v942 = vpop.f32.mrf.mxu0
      %v943 = vpop.f32.mrf.mxu0
      %944 = vdwg.mxu0
      %v946 = vsel %vm898, %v889, 0
      %v949 = vsel %vm898, %v891, 0
      %951 = vmatprep.subr.bf16.mxu0 0
      %952 = vmatpush1.bf16.xpose.msra.mxu0 0
      %953 = vmatprep.subr.bf16.mxu0 0
      %954 = vmatpush1.bf16.xpose.msra.mxu0 0
      %955 = vmatprep.subr.bf16.mxu0 0
      %956 = vmatpush1.bf16.xpose.msra.mxu0 0
      %957 = vmatprep.subr.bf16.mxu0 0
      %958 = vmatpush1.bf16.xpose.msra.mxu0 0
      %959 = vmatprep.subr.bf16.mxu0 0
      %960 = vmatpush1.bf16.xpose.msra.mxu0 0
      %961 = vmatprep.subr.bf16.mxu0 0
      %962 = vmatpush1.bf16.xpose.msra.mxu0 0
      %963 = vmatprep.subr.bf16.mxu0 0
      %964 = vmatpush1.bf16.xpose.msra.mxu0 0
      %965 = vmatprep.subr.bf16.mxu0 0
      %966 = vmatpush1.bf16.xpose.msra.mxu0 %v949
      %967 = vmatprep.subr.bf16.mxu0 0
      %968 = vmatpush2.bf16.xpose.msra.mxu0 0
      %969 = vmatprep.subr.bf16.mxu0 0
      %970 = vmatpush2.bf16.xpose.msra.mxu0 0
      %971 = vmatprep.subr.bf16.mxu0 0
      %972 = vmatpush2.bf16.xpose.msra.mxu0 0
      %973 = vmatprep.subr.bf16.mxu0 0
      %974 = vmatpush2.bf16.xpose.msra.mxu0 0
      %975 = vmatprep.subr.bf16.mxu0 0
      %976 = vmatpush2.bf16.xpose.msra.mxu0 0
      %977 = vmatprep.subr.bf16.mxu0 0
      %978 = vmatpush2.bf16.xpose.msra.mxu0 0
      %979 = vmatprep.subr.bf16.mxu0 0
      %980 = vmatpush2.bf16.xpose.msra.mxu0 0
      %981 = vmatprep.subr.bf16.mxu0 0
      %982 = vmatpush2.bf16.xpose.msra.mxu0 0
      %983 = vmatprep.mubr.bf16.mxu0 0
      %984 = vmatmul.mubr.bf16.gmra.mxu0 %v946
      %v985 = vpop.f32.mrf.mxu0
      %v986 = vadd.f32 %v896, %v985
      %v987 = vpop.f32.mrf.mxu0
      %v988 = vpop.f32.mrf.mxu0
      %v989 = vpop.f32.mrf.mxu0
      %990 = vdwg.mxu0
      %vm991 = vcmask 64512
      %v992 = vsel %vm991, %v940, -inf
      %993 = vmax.xlane.f32.xlu0 %v992
      %v994 = vpop.xlane.xlu0 %993
      %v995 = vsel %vm991, %v986, -inf
      %996 = vmax.xlane.f32.xlu0 %v995
      %v997 = vpop.xlane.xlu0 %996
      %v998 = vsub.f32 %v940, %v994
      %v999 = vsub.f32 %v986, %v997
      %v1000 = vmul.f32 %v998, 1.442695
      %v1001 = vpow.pop %v1000
      %v1002 = vmul.f32 %v999, 1.442695
      %v1003 = vpow.pop %v1002
      %v1004 = vsel %vm991, %v1001, 0.0
      %1005 = vadd.xlane.f32.xlu0 %v1004
      %v1006 = vpop.xlane.xlu0 %1005
      %v1007 = vsel %vm991, %v1003, 0.0
      %1008 = vadd.xlane.f32.xlu0 %v1007
      %v1009 = vpop.xlane.xlu0 %1008
      %v1010 = vrcp.pop %v1006
      %v1011 = vmul.f32 %v1001, %v1010
      %v1012 = vrcp.pop %v1009
      %v1013 = vmul.f32 %v1003, %v1012
      %v1014 = vpack.c.bf16 %v1011, %v1011
      %v1015 = vpack.c.bf16 %v1013, %v1013
      %v1016 = vpack.c.bf16 %v831, %v831
      %v1017 = vpack.c.bf16 %v883, %v883
      %v1019 = vsel %vm991, %v1014, 0
      %vm1021 = vcmask 1043456
      %v1023 = vsel %vm1021, %v1016, 0
      %1025 = vmatprep.subr.bf16.mxu0 0
      %1026 = vmatpush1.bf16.msra.mxu0 0
      %1027 = vmatprep.subr.bf16.mxu0 0
      %1028 = vmatpush1.bf16.msra.mxu0 0
      %1029 = vmatprep.subr.bf16.mxu0 0
      %1030 = vmatpush1.bf16.msra.mxu0 0
      %1031 = vmatprep.subr.bf16.mxu0 0
      %1032 = vmatpush1.bf16.msra.mxu0 0
      %1033 = vmatprep.subr.bf16.mxu0 0
      %1034 = vmatpush1.bf16.msra.mxu0 0
      %1035 = vmatprep.subr.bf16.mxu0 0
      %1036 = vmatpush1.bf16.msra.mxu0 0
      %1037 = vmatprep.subr.bf16.mxu0 0
      %1038 = vmatpush1.bf16.msra.mxu0 0
      %1039 = vmatprep.subr.bf16.mxu0 0
      %1040 = vmatpush1.bf16.msra.mxu0 %v1023
      %1041 = vmatprep.subr.bf16.mxu0 0
      %1042 = vmatpush2.bf16.msra.mxu0 0
      %1043 = vmatprep.subr.bf16.mxu0 0
      %1044 = vmatpush2.bf16.msra.mxu0 0
      %1045 = vmatprep.subr.bf16.mxu0 0
      %1046 = vmatpush2.bf16.msra.mxu0 0
      %1047 = vmatprep.subr.bf16.mxu0 0
      %1048 = vmatpush2.bf16.msra.mxu0 0
      %1049 = vmatprep.subr.bf16.mxu0 0
      %1050 = vmatpush2.bf16.msra.mxu0 0
      %1051 = vmatprep.subr.bf16.mxu0 0
      %1052 = vmatpush2.bf16.msra.mxu0 0
      %1053 = vmatprep.subr.bf16.mxu0 0
      %1054 = vmatpush2.bf16.msra.mxu0 0
      %1055 = vmatprep.subr.bf16.mxu0 0
      %1056 = vmatpush2.bf16.msra.mxu0 0
      %1057 = vmatprep.mubr.bf16.mxu0 0
      %1058 = vmatmul.mubr.bf16.gmra.mxu0 %v1019
      %v1059 = vpop.f32.mrf.mxu0
      %v1060 = vadd.f32 0.0, %v1059
      %v1061 = vpop.f32.mrf.mxu0
      %v1062 = vpop.f32.mrf.mxu0
      %v1063 = vpop.f32.mrf.mxu0
      %1064 = vdwg.mxu0
      %v1066 = vsel %vm991, %v1015, 0
      %v1069 = vsel %vm1021, %v1017, 0
      %1071 = vmatprep.subr.bf16.mxu0 0
      %1072 = vmatpush1.bf16.msra.mxu0 0
      %1073 = vmatprep.subr.bf16.mxu0 0
      %1074 = vmatpush1.bf16.msra.mxu0 0
      %1075 = vmatprep.subr.bf16.mxu0 0
      %1076 = vmatpush1.bf16.msra.mxu0 0
      %1077 = vmatprep.subr.bf16.mxu0 0
      %1078 = vmatpush1.bf16.msra.mxu0 0
      %1079 = vmatprep.subr.bf16.mxu0 0
      %1080 = vmatpush1.bf16.msra.mxu0 0
      %1081 = vmatprep.subr.bf16.mxu0 0
      %1082 = vmatpush1.bf16.msra.mxu0 0
      %1083 = vmatprep.subr.bf16.mxu0 0
      %1084 = vmatpush1.bf16.msra.mxu0 0
      %1085 = vmatprep.subr.bf16.mxu0 0
      %1086 = vmatpush1.bf16.msra.mxu0 %v1069
      %1087 = vmatprep.subr.bf16.mxu0 0
      %1088 = vmatpush2.bf16.msra.mxu0 0
      %1089 = vmatprep.subr.bf16.mxu0 0
      %1090 = vmatpush2.bf16.msra.mxu0 0
      %1091 = vmatprep.subr.bf16.mxu0 0
      %1092 = vmatpush2.bf16.msra.mxu0 0
      %1093 = vmatprep.subr.bf16.mxu0 0
      %1094 = vmatpush2.bf16.msra.mxu0 0
      %1095 = vmatprep.subr.bf16.mxu0 0
      %1096 = vmatpush2.bf16.msra.mxu0 0
      %1097 = vmatprep.subr.bf16.mxu0 0
      %1098 = vmatpush2.bf16.msra.mxu0 0
      %1099 = vmatprep.subr.bf16.mxu0 0
      %1100 = vmatpush2.bf16.msra.mxu0 0
      %1101 = vmatprep.subr.bf16.mxu0 0
      %1102 = vmatpush2.bf16.msra.mxu0 0
      %1103 = vmatprep.mubr.bf16.mxu0 0
      %1104 = vmatmul.mubr.bf16.gmra.mxu0 %v1066
      %v1105 = vpop.f32.mrf.mxu0
      %v1106 = vadd.f32 0.0, %v1105
      %v1107 = vpop.f32.mrf.mxu0
      %v1108 = vpop.f32.mrf.mxu0
      %v1109 = vpop.f32.mrf.mxu0
      %1110 = vdwg.mxu0
      %v1111 = vpack.c.bf16 %v1060, %v1060
      %v1112 = vpack.c.bf16 %v1106, %v1106
      %v1115 = vunpack.c.l.b16 %v510
      %v1116 = vunpack.c.l.b16 %v511
      %v1117 = vpack.c.b16 %v1116, %v1115
      %v1120 = vsel %vm898, %v1111, 0
      %1122 = vmatprep.subr.bf16.mxu0 0
      %1123 = vmatpush1.bf16.msra.mxu0 0
      %1124 = vmatprep.subr.bf16.mxu0 0
      %1125 = vmatpush1.bf16.msra.mxu0 0
      %1126 = vmatprep.subr.bf16.mxu0 0
      %1127 = vmatpush1.bf16.msra.mxu0 0
      %1128 = vmatprep.subr.bf16.mxu0 0
      %1129 = vmatpush1.bf16.msra.mxu0 0
      %1130 = vmatprep.subr.bf16.mxu0 0
      %1131 = vmatpush1.bf16.msra.mxu0 0
      %1132 = vmatprep.subr.bf16.mxu0 0
      %1133 = vmatpush1.bf16.msra.mxu0 0
      %1134 = vmatprep.subr.bf16.mxu0 0
      %1135 = vmatpush1.bf16.msra.mxu0 0
      %1136 = vmatprep.subr.bf16.mxu0 0
      %1137 = vmatpush1.bf16.msra.mxu0 %v1117
      %1138 = vmatprep.subr.bf16.mxu0 0
      %1139 = vmatpush2.bf16.msra.mxu0 0
      %1140 = vmatprep.subr.bf16.mxu0 0
      %1141 = vmatpush2.bf16.msra.mxu0 0
      %1142 = vmatprep.subr.bf16.mxu0 0
      %1143 = vmatpush2.bf16.msra.mxu0 0
      %1144 = vmatprep.subr.bf16.mxu0 0
      %1145 = vmatpush2.bf16.msra.mxu0 0
      %1146 = vmatprep.subr.bf16.mxu0 0
      %1147 = vmatpush2.bf16.msra.mxu0 0
      %1148 = vmatprep.subr.bf16.mxu0 0
      %1149 = vmatpush2.bf16.msra.mxu0 0
      %1150 = vmatprep.subr.bf16.mxu0 0
      %1151 = vmatpush2.bf16.msra.mxu0 0
      %1152 = vmatprep.subr.bf16.mxu0 0
      %1153 = vmatpush2.bf16.msra.mxu0 0
      %1154 = vmatprep.mubr.bf16.mxu0 0
      %1155 = vmatmul.mubr.bf16.gmra.mxu0 %v1120
      %v1156 = vpop.f32.mrf.mxu0
      %v1157 = vadd.f32 0.0, %v1156
      %v1158 = vpop.f32.mrf.mxu0
      %v1159 = vpop.f32.mrf.mxu0
      %v1160 = vpop.f32.mrf.mxu0
      %1161 = vdwg.mxu0
      %v1164 = vunpack.c.l.b16 %v512
      %v1165 = vunpack.c.l.b16 %v513
      %v1166 = vpack.c.b16 %v1165, %v1164
      %v1169 = vsel %vm898, %v1112, 0
      %1171 = vmatprep.subr.bf16.mxu0 0
      %1172 = vmatpush1.bf16.msra.mxu0 0
      %1173 = vmatprep.subr.bf16.mxu0 0
      %1174 = vmatpush1.bf16.msra.mxu0 0
      %1175 = vmatprep.subr.bf16.mxu0 0
      %1176 = vmatpush1.bf16.msra.mxu0 0
      %1177 = vmatprep.subr.bf16.mxu0 0
      %1178 = vmatpush1.bf16.msra.mxu0 0
      %1179 = vmatprep.subr.bf16.mxu0 0
      %1180 = vmatpush1.bf16.msra.mxu0 0
      %1181 = vmatprep.subr.bf16.mxu0 0
      %1182 = vmatpush1.bf16.msra.mxu0 0
      %1183 = vmatprep.subr.bf16.mxu0 0
      %1184 = vmatpush1.bf16.msra.mxu0 0
      %1185 = vmatprep.subr.bf16.mxu0 0
      %1186 = vmatpush1.bf16.msra.mxu0 %v1166
      %1187 = vmatprep.subr.bf16.mxu0 0
      %1188 = vmatpush2.bf16.msra.mxu0 0
      %1189 = vmatprep.subr.bf16.mxu0 0
      %1190 = vmatpush2.bf16.msra.mxu0 0
      %1191 = vmatprep.subr.bf16.mxu0 0
      %1192 = vmatpush2.bf16.msra.mxu0 0
      %1193 = vmatprep.subr.bf16.mxu0 0
      %1194 = vmatpush2.bf16.msra.mxu0 0
      %1195 = vmatprep.subr.bf16.mxu0 0
      %1196 = vmatpush2.bf16.msra.mxu0 0
      %1197 = vmatprep.subr.bf16.mxu0 0
      %1198 = vmatpush2.bf16.msra.mxu0 0
      %1199 = vmatprep.subr.bf16.mxu0 0
      %1200 = vmatpush2.bf16.msra.mxu0 0
      %1201 = vmatprep.subr.bf16.mxu0 0
      %1202 = vmatpush2.bf16.msra.mxu0 0
      %1203 = vmatprep.mubr.bf16.mxu0 0
      %1204 = vmatmul.mubr.bf16.gmra.mxu0 %v1169
      %v1205 = vpop.f32.mrf.mxu0
      %v1206 = vadd.f32 0.0, %v1205
      %v1207 = vpop.f32.mrf.mxu0
      %v1208 = vpop.f32.mrf.mxu0
      %v1209 = vpop.f32.mrf.mxu0
      %1210 = vdwg.mxu0
      %v1211 = vsel %vm584, %v1157, 0.0
      %v1212 = vsel %vm584, %v1206, 0.0
      %v1213 = vadd.f32 %v1211, %v1212
      %v1215 = vlaneseq
      %v1216 = vshrl.u32 %v1215, 7
      %v1217 = vsub.s32 0, %v1216
      %v1218 = vrot.slane %v514, %v1217
      %v1220 = vadd.f32 %v1213, %v1218
      %v1221 = vadd.f32 %v1220, %v478
      %v1222 = vsel %vm584, %v1221, 0.0
      %1223 = vadd.xlane.f32.xlu0 %v1222
      %v1224 = vpop.xlane.xlu0 %1223
      %v1225 = vrcp.pop 32.0
      %v1226 = vmul.f32 %v1224, %v1225
      %v1227 = vsub.f32 %v1221, %v1226
      %v1228 = vmul.f32 %v1227, %v1227
      %v1229 = vsel %vm584, %v1228, 0.0
      %1230 = vadd.xlane.f32.xlu0 %v1229
      %v1231 = vpop.xlane.xlu0 %1230
      %v1232 = vmul.f32 %v1231, %v1225
      %v1233 = vadd.f32 %v1232, 1e-05
      %v1234 = vrsqrt.pop %v1233
      %v1235 = vmul.f32 %v1227, %v1234
      %v1237 = vlaneseq
      %v1238 = vshrl.u32 %v1237, 7
      %v1239 = vsub.s32 0, %v1238
      %v1240 = vrot.slane %v515, %v1239
      %v1242 = vmul.f32 %v1235, %v1240
      %v1244 = vlaneseq
      %v1245 = vshrl.u32 %v1244, 7
      %v1246 = vsub.s32 0, %v1245
      %v1247 = vrot.slane %v516, %v1246
      %v1249 = vadd.f32 %v1242, %v1247
      %v1250 = vpack.c.bf16 %v1249, %v1249
      %v1252 = vlaneseq
      %v1253 = vshrl.u32 %v1252, 7
      %v1254 = vsub.s32 0, %v1253
      %v1255 = vrot.slane %v521, %v1254
      %v1261 = vunpack.c.l.b16 %v517
      %v1262 = vunpack.c.l.b16 %v518
      %v1263 = vunpack.c.l.b16 %v519
      %v1264 = vunpack.c.l.b16 %v520
      %v1265 = vpack.c.b16 %v1262, %v1261
      %v1266 = vpack.c.b16 %v1264, %v1263
      %v1270 = vsel %vm584, %v1250, 0
      %1272 = vmatprep.subr.bf16.mxu0 0
      %1273 = vmatpush1.bf16.msra.mxu0 0
      %1274 = vmatprep.subr.bf16.mxu0 0
      %1275 = vmatpush1.bf16.msra.mxu0 0
      %1276 = vmatprep.subr.bf16.mxu0 0
      %1277 = vmatpush1.bf16.msra.mxu0 0
      %1278 = vmatprep.subr.bf16.mxu0 0
      %1279 = vmatpush1.bf16.msra.mxu0 0
      %1280 = vmatprep.subr.bf16.mxu0 0
      %1281 = vmatpush1.bf16.msra.mxu0 0
      %1282 = vmatprep.subr.bf16.mxu0 0
      %1283 = vmatpush1.bf16.msra.mxu0 0
      %1284 = vmatprep.subr.bf16.mxu0 0
      %1285 = vmatpush1.bf16.msra.mxu0 %v1266
      %1286 = vmatprep.subr.bf16.mxu0 0
      %1287 = vmatpush1.bf16.msra.mxu0 %v1265
      %1288 = vmatprep.subr.bf16.mxu0 0
      %1289 = vmatpush2.bf16.msra.mxu0 0
      %1290 = vmatprep.subr.bf16.mxu0 0
      %1291 = vmatpush2.bf16.msra.mxu0 0
      %1292 = vmatprep.subr.bf16.mxu0 0
      %1293 = vmatpush2.bf16.msra.mxu0 0
      %1294 = vmatprep.subr.bf16.mxu0 0
      %1295 = vmatpush2.bf16.msra.mxu0 0
      %1296 = vmatprep.subr.bf16.mxu0 0
      %1297 = vmatpush2.bf16.msra.mxu0 0
      %1298 = vmatprep.subr.bf16.mxu0 0
      %1299 = vmatpush2.bf16.msra.mxu0 0
      %1300 = vmatprep.subr.bf16.mxu0 0
      %1301 = vmatpush2.bf16.msra.mxu0 0
      %1302 = vmatprep.subr.bf16.mxu0 0
      %1303 = vmatpush2.bf16.msra.mxu0 0
      %1304 = vmatprep.mubr.bf16.mxu0 0
      %1305 = vmatmul.mubr.bf16.gmra.mxu0 %v1270
      %v1306 = vpop.f32.mrf.mxu0
      %v1307 = vadd.f32 %v1255, %v1306
      %v1308 = vpop.f32.mrf.mxu0
      %v1309 = vpop.f32.mrf.mxu0
      %v1310 = vpop.f32.mrf.mxu0
      %1311 = vdwg.mxu0
      %v1312 = vmul.f32 %v1307, %v1307
      %v1313 = vmul.f32 %v1307, %v1312
      %v1314 = vmul.f32 %v1313, 0.044715
      %v1315 = vadd.f32 %v1307, %v1314
      %v1316 = vmul.f32 %v1315, 0.7978846
      %v1317 = vtanh.pop %v1316
      %v1318 = vadd.f32 %v1317, 1.0
      %v1319 = vmul.f32 %v1318, 0.5
      %v1320 = vmul.f32 %v1307, %v1319
      %v1321 = vpack.c.bf16 %v1320, %v1320
      %v1323 = vlaneseq
      %v1324 = vshrl.u32 %v1323, 7
      %v1325 = vsub.s32 0, %v1324
      %v1326 = vrot.slane %v530, %v1325
      %v1336 = vunpack.c.l.b16 %v522
      %v1337 = vunpack.c.l.b16 %v523
      %v1338 = vunpack.c.l.b16 %v524
      %v1339 = vunpack.c.l.b16 %v525
      %v1340 = vunpack.c.l.b16 %v526
      %v1341 = vunpack.c.l.b16 %v527
      %v1342 = vunpack.c.l.b16 %v528
      %v1343 = vunpack.c.l.b16 %v529
      %v1344 = vpack.c.b16 %v1337, %v1336
      %v1345 = vpack.c.b16 %v1339, %v1338
      %v1346 = vpack.c.b16 %v1341, %v1340
      %v1347 = vpack.c.b16 %v1343, %v1342
      %vm1352 = vcmask 523264
      %v1354 = vsel %vm1352, %v1321, 0
      %1356 = vmatprep.subr.bf16.mxu0 0
      %1357 = vmatpush1.bf16.msra.mxu0 0
      %1358 = vmatprep.subr.bf16.mxu0 0
      %1359 = vmatpush1.bf16.msra.mxu0 0
      %1360 = vmatprep.subr.bf16.mxu0 0
      %1361 = vmatpush1.bf16.msra.mxu0 0
      %1362 = vmatprep.subr.bf16.mxu0 0
      %1363 = vmatpush1.bf16.msra.mxu0 0
      %1364 = vmatprep.subr.bf16.mxu0 0
      %1365 = vmatpush1.bf16.msra.mxu0 %v1347
      %1366 = vmatprep.subr.bf16.mxu0 0
      %1367 = vmatpush1.bf16.msra.mxu0 %v1346
      %1368 = vmatprep.subr.bf16.mxu0 0
      %1369 = vmatpush1.bf16.msra.mxu0 %v1345
      %1370 = vmatprep.subr.bf16.mxu0 0
      %1371 = vmatpush1.bf16.msra.mxu0 %v1344
      %1372 = vmatprep.subr.bf16.mxu0 0
      %1373 = vmatpush2.bf16.msra.mxu0 0
      %1374 = vmatprep.subr.bf16.mxu0 0
      %1375 = vmatpush2.bf16.msra.mxu0 0
      %1376 = vmatprep.subr.bf16.mxu0 0
      %1377 = vmatpush2.bf16.msra.mxu0 0
      %1378 = vmatprep.subr.bf16.mxu0 0
      %1379 = vmatpush2.bf16.msra.mxu0 0
      %1380 = vmatprep.subr.bf16.mxu0 0
      %1381 = vmatpush2.bf16.msra.mxu0 0
      %1382 = vmatprep.subr.bf16.mxu0 0
      %1383 = vmatpush2.bf16.msra.mxu0 0
      %1384 = vmatprep.subr.bf16.mxu0 0
      %1385 = vmatpush2.bf16.msra.mxu0 0
      %1386 = vmatprep.subr.bf16.mxu0 0
      %1387 = vmatpush2.bf16.msra.mxu0 0
      %1388 = vmatprep.mubr.bf16.mxu0 0
      %1389 = vmatmul.mubr.bf16.gmra.mxu0 %v1354
      %v1390 = vpop.f32.mrf.mxu0
      %v1391 = vadd.f32 %v1326, %v1390
      %v1392 = vpop.f32.mrf.mxu0
      %v1393 = vpop.f32.mrf.mxu0
      %v1394 = vpop.f32.mrf.mxu0
      %1395 = vdwg.mxu0
      %v1396 = vadd.f32 %v1391, %v1249
      %v1397 = vsel %vm584, %v1396, 0.0
      %1398 = vadd.xlane.f32.xlu0 %v1397
      %v1399 = vpop.xlane.xlu0 %1398
      %v1400 = vmul.f32 %v1399, %v1225
      %v1401 = vsub.f32 %v1396, %v1400
      %v1402 = vmul.f32 %v1401, %v1401
      %v1403 = vsel %vm584, %v1402, 0.0
      %1404 = vadd.xlane.f32.xlu0 %v1403
      %v1405 = vpop.xlane.xlu0 %1404
      %v1406 = vmul.f32 %v1405, %v1225
      %v1407 = vadd.f32 %v1406, 1e-05
      %v1408 = vrsqrt.pop %v1407
      %v1409 = vmul.f32 %v1401, %v1408
      %v1411 = vlaneseq
      %v1412 = vshrl.u32 %v1411, 7
      %v1413 = vsub.s32 0, %v1412
      %v1414 = vrot.slane %v531, %v1413
      %v1416 = vmul.f32 %v1409, %v1414
      %v1418 = vlaneseq
      %v1419 = vshrl.u32 %v1418, 7
      %v1420 = vsub.s32 0, %v1419
      %v1421 = vrot.slane %v532, %v1420
      %v1423 = vadd.f32 %v1416, %v1421
      %1424 = vst.msk [vmem:[%s476] sm:$0xff] %vm584, %v1423
      %p1425 = scmp.lt.s32.totalorder %s25, 1
      %s1426 = scalar_select %p1425, %s25, 1
      %s1427 = smul.addr %s1426, 8
      %s1428 = scalar_lea.vmem %s14, %s1427
      // Predicated region
      $region77: #{roberta_forward.4} parent=75 // pred_check
        %p1429 = pneg %p347
      $region78: #{roberta_forward.4} parent=75 // pred_check_branch
        %1431 = sbr.rel (%p1429) target = $region80
      $region79: #{roberta_forward.4} parent=75 // pred_region
        _
      $region80: #{roberta_forward.4} parent=75 // pred_fallthru
        _
    $region76: #{roberta_forward.4} parent=5 // pred_fallthru
      _
    %p1432 = scmp.le.s32.totalorder 2, %s20
    // Predicated region
    $region81: #{roberta_forward.4} parent=5 // pred_check
      %p1433 = pneg %p1432
    $region82: #{roberta_forward.4} parent=5 // pred_check_branch
      %1435 = sbr.rel (%p1433) target = $region84
    $region83: #{roberta_forward.4} parent=5 // pred_region
      %s1436 = ssub.s32 %s20, 2
      // Predicated region
      $region85: #{roberta_forward.4} parent=83 // pred_check
        %p1437 = pneg %p353
      $region86: #{roberta_forward.4} parent=83 // pred_check_branch
        %1439 = sbr.rel (%p1437) target = $region88
      $region87: #{roberta_forward.4} parent=83 // pred_region
        %p1440 = scmp.lt.s32.totalorder %s26, 1
        %s1441 = scalar_select %p1440, %s26, 1
        %s1442 = smul.addr %s1441, 8
        %s1443 = scalar_lea.vmem %s14, %s1442
      $region88: #{roberta_forward.4} parent=83 // pred_fallthru
        _
    $region84: #{roberta_forward.4} parent=5 // pred_fallthru
      _
  $region6: #{roberta_forward.4} parent=0 // loop_footer
    %s24 = sadd.s32 1, %s20
  $region7: #{roberta_forward.4} parent=0 // loop_footer_branch
    %19 = sbr.rel target = $region3
  $region8: #{roberta_forward.4} parent=0 // loop_exit
    _

// kernel: roberta_forward.3
$region0: #{roberta_forward.3}
  #allocation0 [shape = 'u32[]', space=smem, size = 0x4, offset = 0x4, fixed_abs, tag = 'smem constant byte address 0x4 - core index']
  #allocation1 [shape = 'u32[144,128]{1,0:T(1,128)}', space=vmem, size = 0x12000, scoped, tag = 'internal scratch']
  %s0 = inlined_call_operand.vmem [shape: f32[2,8,32], index: 0, kind: input, shape index: {}]
  %s1 = inlined_call_operand.vmem [shape: f32[2,1,8], index: 1, kind: input, shape index: {}]
  %s2 = inlined_call_operand.vmem [shape: f32[1,32], index: 2, kind: input, shape index: {}]
  %s3 = inlined_call_operand.vmem [shape: f32[1,32], index: 3, kind: input, shape index: {}]
  %s4 = inlined_call_operand.vmem [shape: bf16[6,32,16], index: 4, kind: input, shape index: {}]
  %s5 = inlined_call_operand.vmem [shape: f32[6,1,16], index: 5, kind: input, shape index: {}]
  %s6 = inlined_call_operand.vmem [shape: bf16[2,16,32], index: 6, kind: input, shape index: {}]
  %s7 = inlined_call_operand.vmem [shape: f32[1,32], index: 7, kind: input, shape index: {}]
  %s8 = inlined_call_operand.vmem [shape: f32[1,32], index: 8, kind: input, shape index: {}]
  %s9 = inlined_call_operand.vmem [shape: f32[1,32], index: 9, kind: input, shape index: {}]
  %s10 = inlined_call_operand.vmem [shape: bf16[32,64], index: 10, kind: input, shape index: {}]
  %s11 = inlined_call_operand.vmem [shape: f32[1,64], index: 11, kind: input, shape index: {}]
  %s12 = inlined_call_operand.vmem [shape: bf16[64,32], index: 12, kind: input, shape index: {}]
  %s13 = inlined_call_operand.vmem [shape: f32[1,32], index: 13, kind: input, shape index: {}]
  %s14 = inlined_call_operand.vmem [shape: f32[1,32], index: 14, kind: input, shape index: {}]
  %s15 = inlined_call_operand.vmem [shape: f32[1,32], index: 15, kind: input, shape index: {}]
  %s16 = inlined_call_operand.vmem [shape: f32[2,8,32], index: 16, kind: output, shape index: {}]
  %s17 = sld [smem:[#allocation0]]
  $region97: #{roberta_forward.3} parent=0
    _
  %s19 = ssub.s32 1, %s17
  %s20 = scalar_select 0, %s19, %s17
  loop: start=0, step=1, limit=4
  $region2: #{roberta_forward.3} parent=0 // loop_pre_header
    _
  $region3: #{roberta_forward.3} parent=0 // loop_header
    %s22 = sphi 0, %s26
    %p23 = scmp.ge.s32.totalorder %s22, 4
    %s32 = sphi 0, %s34
    %s35 = sphi 0, %s32
    %s36 = sphi 0, %s35
    %s52 = sphi 0, %s36
    %s58 = sphi 0, %s60
    %s61 = sphi 0, %s58
    %s62 = sphi 0, %s61
    %s78 = sphi 0, %s62
    %s82 = sphi 0, %s82
    %s84 = sphi 0, %s82
    %s85 = sphi 0, %s84
    %s99 = sphi 0, %s85
    %s103 = sphi 0, %s103
    %s105 = sphi 0, %s103
    %s106 = sphi 0, %s105
    %s120 = sphi 0, %s106
    %s124 = sphi 0, %s124
    %s126 = sphi 0, %s124
    %s127 = sphi 0, %s126
    %s141 = sphi 0, %s127
    %s145 = sphi 0, %s145
    %s147 = sphi 0, %s145
    %s148 = sphi 0, %s147
    %s162 = sphi 0, %s148
    %s166 = sphi 0, %s166
    %s168 = sphi 0, %s166
    %s169 = sphi 0, %s168
    %s183 = sphi 0, %s169
    %s187 = sphi 0, %s187
    %s189 = sphi 0, %s187
    %s190 = sphi 0, %s189
    %s204 = sphi 0, %s190
    %s208 = sphi 0, %s208
    %s210 = sphi 0, %s208
    %s211 = sphi 0, %s210
    %s225 = sphi 0, %s211
    %s229 = sphi 0, %s229
    %s231 = sphi 0, %s229
    %s232 = sphi 0, %s231
    %s246 = sphi 0, %s232
    %s250 = sphi 0, %s250
    %s252 = sphi 0, %s250
    %s253 = sphi 0, %s252
    %s267 = sphi 0, %s253
    %s271 = sphi 0, %s271
    %s273 = sphi 0, %s271
    %s274 = sphi 0, %s273
    %s288 = sphi 0, %s274
    %s292 = sphi 0, %s292
    %s294 = sphi 0, %s292
    %s295 = sphi 0, %s294
    %s309 = sphi 0, %s295
    %s313 = sphi 0, %s313
    %s315 = sphi 0, %s313
    %s316 = sphi 0, %s315
    %s330 = sphi 0, %s316
    %s334 = sphi 0, %s334
    %s336 = sphi 0, %s334
    %s337 = sphi 0, %s336
    %s351 = sphi 0, %s337
    %s355 = sphi 0, %s355
    %s357 = sphi 0, %s355
    %s358 = sphi 0, %s357
    %s372 = sphi 0, %s358
    %s378 = sphi 0, %s380
    %s381 = sphi 0, %s378
    %s382 = sphi 0, %s381
    %s398 = sphi 0, %s382
  $region4: #{roberta_forward.3} parent=0 // loop_header_branch
    %25 = sbr.rel (%p23) target = $region8
  $region5: #{roberta_forward.3} parent=0 // loop_body
    %s27 = ssub.s32 %s22, 1
    %s28 = ssub.s32 %s22, 2
    %s29 = sadd.s32 %s22, 1
    %s30 = ssub.s32 %s22, %s29
    %p31 = scmp.eq.s32.totalorder %s30, 0
    %s33 = sadd.s32 %s32, 1
    %s34 = scalar_select %p31, %s32, %s33
    %p37 = pneg %p31
    %p38 = scmp.eq.s32.totalorder %s22, 1
    %p39 = por %p37, %p38
    %p40 = scmp.ne.s32.totalorder %s32, %s35
    %p41 = scmp.eq.s32.totalorder %s22, 0
    %p42 = por %p40, %p41
    %p43 = scmp.ne.s32.totalorder %s32, %s35
    %p44 = scmp.eq.s32.totalorder %s27, 1
    %p45 = por %p43, %p44
    %p46 = scmp.ne.s32.totalorder %s35, %s36
    %p47 = scmp.eq.s32.totalorder %s27, 0
    %p48 = por %p46, %p47
    %p49 = scmp.ne.s32.totalorder %s35, %s36
    %p50 = scmp.eq.s32.totalorder %s28, 1
    %p51 = por %p49, %p50
    %p53 = scmp.ne.s32.totalorder %s36, %s52
    %p54 = scmp.eq.s32.totalorder %s28, 0
    %p55 = por %p53, %p54
    %s56 = ssub.s32 %s22, %s29
    %p57 = scmp.eq.s32.totalorder %s56, 0
    %s59 = sadd.s32 %s58, 1
    %s60 = scalar_select %p57, %s58, %s59
    %p63 = pneg %p57
    %p64 = scmp.eq.s32.totalorder %s22, 1
    %p65 = por %p63, %p64
    %p66 = scmp.ne.s32.totalorder %s58, %s61
    %p67 = scmp.eq.s32.totalorder %s22, 0
    %p68 = por %p66, %p67
    %p69 = scmp.ne.s32.totalorder %s58, %s61
    %p70 = scmp.eq.s32.totalorder %s27, 1
    %p71 = por %p69, %p70
    %p72 = scmp.ne.s32.totalorder %s61, %s62
    %p73 = scmp.eq.s32.totalorder %s27, 0
    %p74 = por %p72, %p73
    %p75 = scmp.ne.s32.totalorder %s61, %s62
    %p76 = scmp.eq.s32.totalorder %s28, 1
    %p77 = por %p75, %p76
    %p79 = scmp.ne.s32.totalorder %s62, %s78
    %p80 = scmp.eq.s32.totalorder %s28, 0
    %p81 = por %p79, %p80
    %s83 = sadd.s32 %s82, 1
    %p86 = scmp.eq.s32.totalorder %s22, 1
    %p87 = scmp.ne.s32.totalorder %s82, %s84
    %p88 = scmp.eq.s32.totalorder %s22, 0
    %p89 = por %p87, %p88
    %p90 = scmp.ne.s32.totalorder %s82, %s84
    %p91 = scmp.eq.s32.totalorder %s27, 1
    %p92 = por %p90, %p91
    %p93 = scmp.ne.s32.totalorder %s84, %s85
    %p94 = scmp.eq.s32.totalorder %s27, 0
    %p95 = por %p93, %p94
    %p96 = scmp.ne.s32.totalorder %s84, %s85
    %p97 = scmp.eq.s32.totalorder %s28, 1
    %p98 = por %p96, %p97
    %p100 = scmp.ne.s32.totalorder %s85, %s99
    %p101 = scmp.eq.s32.totalorder %s28, 0
    %p102 = por %p100, %p101
    %s104 = sadd.s32 %s103, 1
    %p107 = scmp.eq.s32.totalorder %s22, 1
    %p108 = scmp.ne.s32.totalorder %s103, %s105
    %p109 = scmp.eq.s32.totalorder %s22, 0
    %p110 = por %p108, %p109
    %p111 = scmp.ne.s32.totalorder %s103, %s105
    %p112 = scmp.eq.s32.totalorder %s27, 1
    %p113 = por %p111, %p112
    %p114 = scmp.ne.s32.totalorder %s105, %s106
    %p115 = scmp.eq.s32.totalorder %s27, 0
    %p116 = por %p114, %p115
    %p117 = scmp.ne.s32.totalorder %s105, %s106
    %p118 = scmp.eq.s32.totalorder %s28, 1
    %p119 = por %p117, %p118
    %p121 = scmp.ne.s32.totalorder %s106, %s120
    %p122 = scmp.eq.s32.totalorder %s28, 0
    %p123 = por %p121, %p122
    %s125 = sadd.s32 %s124, 1
    %p128 = scmp.eq.s32.totalorder %s22, 1
    %p129 = scmp.ne.s32.totalorder %s124, %s126
    %p130 = scmp.eq.s32.totalorder %s22, 0
    %p131 = por %p129, %p130
    %p132 = scmp.ne.s32.totalorder %s124, %s126
    %p133 = scmp.eq.s32.totalorder %s27, 1
    %p134 = por %p132, %p133
    %p135 = scmp.ne.s32.totalorder %s126, %s127
    %p136 = scmp.eq.s32.totalorder %s27, 0
    %p137 = por %p135, %p136
    %p138 = scmp.ne.s32.totalorder %s126, %s127
    %p139 = scmp.eq.s32.totalorder %s28, 1
    %p140 = por %p138, %p139
    %p142 = scmp.ne.s32.totalorder %s127, %s141
    %p143 = scmp.eq.s32.totalorder %s28, 0
    %p144 = por %p142, %p143
    %s146 = sadd.s32 %s145, 1
    %p149 = scmp.eq.s32.totalorder %s22, 1
    %p150 = scmp.ne.s32.totalorder %s145, %s147
    %p151 = scmp.eq.s32.totalorder %s22, 0
    %p152 = por %p150, %p151
    %p153 = scmp.ne.s32.totalorder %s145, %s147
    %p154 = scmp.eq.s32.totalorder %s27, 1
    %p155 = por %p153, %p154
    %p156 = scmp.ne.s32.totalorder %s147, %s148
    %p157 = scmp.eq.s32.totalorder %s27, 0
    %p158 = por %p156, %p157
    %p159 = scmp.ne.s32.totalorder %s147, %s148
    %p160 = scmp.eq.s32.totalorder %s28, 1
    %p161 = por %p159, %p160
    %p163 = scmp.ne.s32.totalorder %s148, %s162
    %p164 = scmp.eq.s32.totalorder %s28, 0
    %p165 = por %p163, %p164
    %s167 = sadd.s32 %s166, 1
    %p170 = scmp.eq.s32.totalorder %s22, 1
    %p171 = scmp.ne.s32.totalorder %s166, %s168
    %p172 = scmp.eq.s32.totalorder %s22, 0
    %p173 = por %p171, %p172
    %p174 = scmp.ne.s32.totalorder %s166, %s168
    %p175 = scmp.eq.s32.totalorder %s27, 1
    %p176 = por %p174, %p175
    %p177 = scmp.ne.s32.totalorder %s168, %s169
    %p178 = scmp.eq.s32.totalorder %s27, 0
    %p179 = por %p177, %p178
    %p180 = scmp.ne.s32.totalorder %s168, %s169
    %p181 = scmp.eq.s32.totalorder %s28, 1
    %p182 = por %p180, %p181
    %p184 = scmp.ne.s32.totalorder %s169, %s183
    %p185 = scmp.eq.s32.totalorder %s28, 0
    %p186 = por %p184, %p185
    %s188 = sadd.s32 %s187, 1
    %p191 = scmp.eq.s32.totalorder %s22, 1
    %p192 = scmp.ne.s32.totalorder %s187, %s189
    %p193 = scmp.eq.s32.totalorder %s22, 0
    %p194 = por %p192, %p193
    %p195 = scmp.ne.s32.totalorder %s187, %s189
    %p196 = scmp.eq.s32.totalorder %s27, 1
    %p197 = por %p195, %p196
    %p198 = scmp.ne.s32.totalorder %s189, %s190
    %p199 = scmp.eq.s32.totalorder %s27, 0
    %p200 = por %p198, %p199
    %p201 = scmp.ne.s32.totalorder %s189, %s190
    %p202 = scmp.eq.s32.totalorder %s28, 1
    %p203 = por %p201, %p202
    %p205 = scmp.ne.s32.totalorder %s190, %s204
    %p206 = scmp.eq.s32.totalorder %s28, 0
    %p207 = por %p205, %p206
    %s209 = sadd.s32 %s208, 1
    %p212 = scmp.eq.s32.totalorder %s22, 1
    %p213 = scmp.ne.s32.totalorder %s208, %s210
    %p214 = scmp.eq.s32.totalorder %s22, 0
    %p215 = por %p213, %p214
    %p216 = scmp.ne.s32.totalorder %s208, %s210
    %p217 = scmp.eq.s32.totalorder %s27, 1
    %p218 = por %p216, %p217
    %p219 = scmp.ne.s32.totalorder %s210, %s211
    %p220 = scmp.eq.s32.totalorder %s27, 0
    %p221 = por %p219, %p220
    %p222 = scmp.ne.s32.totalorder %s210, %s211
    %p223 = scmp.eq.s32.totalorder %s28, 1
    %p224 = por %p222, %p223
    %p226 = scmp.ne.s32.totalorder %s211, %s225
    %p227 = scmp.eq.s32.totalorder %s28, 0
    %p228 = por %p226, %p227
    %s230 = sadd.s32 %s229, 1
    %p233 = scmp.eq.s32.totalorder %s22, 1
    %p234 = scmp.ne.s32.totalorder %s229, %s231
    %p235 = scmp.eq.s32.totalorder %s22, 0
    %p236 = por %p234, %p235
    %p237 = scmp.ne.s32.totalorder %s229, %s231
    %p238 = scmp.eq.s32.totalorder %s27, 1
    %p239 = por %p237, %p238
    %p240 = scmp.ne.s32.totalorder %s231, %s232
    %p241 = scmp.eq.s32.totalorder %s27, 0
    %p242 = por %p240, %p241
    %p243 = scmp.ne.s32.totalorder %s231, %s232
    %p244 = scmp.eq.s32.totalorder %s28, 1
    %p245 = por %p243, %p244
    %p247 = scmp.ne.s32.totalorder %s232, %s246
    %p248 = scmp.eq.s32.totalorder %s28, 0
    %p249 = por %p247, %p248
    %s251 = sadd.s32 %s250, 1
    %p254 = scmp.eq.s32.totalorder %s22, 1
    %p255 = scmp.ne.s32.totalorder %s250, %s252
    %p256 = scmp.eq.s32.totalorder %s22, 0
    %p257 = por %p255, %p256
    %p258 = scmp.ne.s32.totalorder %s250, %s252
    %p259 = scmp.eq.s32.totalorder %s27, 1
    %p260 = por %p258, %p259
    %p261 = scmp.ne.s32.totalorder %s252, %s253
    %p262 = scmp.eq.s32.totalorder %s27, 0
    %p263 = por %p261, %p262
    %p264 = scmp.ne.s32.totalorder %s252, %s253
    %p265 = scmp.eq.s32.totalorder %s28, 1
    %p266 = por %p264, %p265
    %p268 = scmp.ne.s32.totalorder %s253, %s267
    %p269 = scmp.eq.s32.totalorder %s28, 0
    %p270 = por %p268, %p269
    %s272 = sadd.s32 %s271, 1
    %p275 = scmp.eq.s32.totalorder %s22, 1
    %p276 = scmp.ne.s32.totalorder %s271, %s273
    %p277 = scmp.eq.s32.totalorder %s22, 0
    %p278 = por %p276, %p277
    %p279 = scmp.ne.s32.totalorder %s271, %s273
    %p280 = scmp.eq.s32.totalorder %s27, 1
    %p281 = por %p279, %p280
    %p282 = scmp.ne.s32.totalorder %s273, %s274
    %p283 = scmp.eq.s32.totalorder %s27, 0
    %p284 = por %p282, %p283
    %p285 = scmp.ne.s32.totalorder %s273, %s274
    %p286 = scmp.eq.s32.totalorder %s28, 1
    %p287 = por %p285, %p286
    %p289 = scmp.ne.s32.totalorder %s274, %s288
    %p290 = scmp.eq.s32.totalorder %s28, 0
    %p291 = por %p289, %p290
    %s293 = sadd.s32 %s292, 1
    %p296 = scmp.eq.s32.totalorder %s22, 1
    %p297 = scmp.ne.s32.totalorder %s292, %s294
    %p298 = scmp.eq.s32.totalorder %s22, 0
    %p299 = por %p297, %p298
    %p300 = scmp.ne.s32.totalorder %s292, %s294
    %p301 = scmp.eq.s32.totalorder %s27, 1
    %p302 = por %p300, %p301
    %p303 = scmp.ne.s32.totalorder %s294, %s295
    %p304 = scmp.eq.s32.totalorder %s27, 0
    %p305 = por %p303, %p304
    %p306 = scmp.ne.s32.totalorder %s294, %s295
    %p307 = scmp.eq.s32.totalorder %s28, 1
    %p308 = por %p306, %p307
    %p310 = scmp.ne.s32.totalorder %s295, %s309
    %p311 = scmp.eq.s32.totalorder %s28, 0
    %p312 = por %p310, %p311
    %s314 = sadd.s32 %s313, 1
    %p317 = scmp.eq.s32.totalorder %s22, 1
    %p318 = scmp.ne.s32.totalorder %s313, %s315
    %p319 = scmp.eq.s32.totalorder %s22, 0
    %p320 = por %p318, %p319
    %p321 = scmp.ne.s32.totalorder %s313, %s315
    %p322 = scmp.eq.s32.totalorder %s27, 1
    %p323 = por %p321, %p322
    %p324 = scmp.ne.s32.totalorder %s315, %s316
    %p325 = scmp.eq.s32.totalorder %s27, 0
    %p326 = por %p324, %p325
    %p327 = scmp.ne.s32.totalorder %s315, %s316
    %p328 = scmp.eq.s32.totalorder %s28, 1
    %p329 = por %p327, %p328
    %p331 = scmp.ne.s32.totalorder %s316, %s330
    %p332 = scmp.eq.s32.totalorder %s28, 0
    %p333 = por %p331, %p332
    %s335 = sadd.s32 %s334, 1
    %p338 = scmp.eq.s32.totalorder %s22, 1
    %p339 = scmp.ne.s32.totalorder %s334, %s336
    %p340 = scmp.eq.s32.totalorder %s22, 0
    %p341 = por %p339, %p340
    %p342 = scmp.ne.s32.totalorder %s334, %s336
    %p343 = scmp.eq.s32.totalorder %s27, 1
    %p344 = por %p342, %p343
    %p345 = scmp.ne.s32.totalorder %s336, %s337
    %p346 = scmp.eq.s32.totalorder %s27, 0
    %p347 = por %p345, %p346
    %p348 = scmp.ne.s32.totalorder %s336, %s337
    %p349 = scmp.eq.s32.totalorder %s28, 1
    %p350 = por %p348, %p349
    %p352 = scmp.ne.s32.totalorder %s337, %s351
    %p353 = scmp.eq.s32.totalorder %s28, 0
    %p354 = por %p352, %p353
    %s356 = sadd.s32 %s355, 1
    %p359 = scmp.eq.s32.totalorder %s22, 1
    %p360 = scmp.ne.s32.totalorder %s355, %s357
    %p361 = scmp.eq.s32.totalorder %s22, 0
    %p362 = por %p360, %p361
    %p363 = scmp.ne.s32.totalorder %s355, %s357
    %p364 = scmp.eq.s32.totalorder %s27, 1
    %p365 = por %p363, %p364
    %p366 = scmp.ne.s32.totalorder %s357, %s358
    %p367 = scmp.eq.s32.totalorder %s27, 0
    %p368 = por %p366, %p367
    %p369 = scmp.ne.s32.totalorder %s357, %s358
    %p370 = scmp.eq.s32.totalorder %s28, 1
    %p371 = por %p369, %p370
    %p373 = scmp.ne.s32.totalorder %s358, %s372
    %p374 = scmp.eq.s32.totalorder %s28, 0
    %p375 = por %p373, %p374
    %s376 = ssub.s32 %s22, %s29
    %p377 = scmp.eq.s32.totalorder %s376, 0
    %s379 = sadd.s32 %s378, 1
    %s380 = scalar_select %p377, %s378, %s379
    %p383 = pneg %p377
    %p384 = scmp.eq.s32.totalorder %s22, 1
    %p385 = por %p383, %p384
    %p386 = scmp.ne.s32.totalorder %s378, %s381
    %p387 = scmp.eq.s32.totalorder %s22, 0
    %p388 = por %p386, %p387
    %p389 = scmp.ne.s32.totalorder %s378, %s381
    %p390 = scmp.eq.s32.totalorder %s27, 1
    %p391 = por %p389, %p390
    %p392 = scmp.ne.s32.totalorder %s381, %s382
    %p393 = scmp.eq.s32.totalorder %s27, 0
    %p394 = por %p392, %p393
    %p395 = scmp.ne.s32.totalorder %s381, %s382
    %p396 = scmp.eq.s32.totalorder %s28, 1
    %p397 = por %p395, %p396
    %p399 = scmp.ne.s32.totalorder %s382, %s398
    %p400 = scmp.eq.s32.totalorder %s28, 0
    %p401 = por %p399, %p400
    %p402 = scmp.le.s32.totalorder 1, %s22
    %p403 = scmp.lt.s32.totalorder %s22, 3
    %p404 = pnand %p402, %p403
    %p405 = pneg %p404
    // Predicated region
    $region9: #{roberta_forward.3} parent=5 // pred_check
      _
    $region10: #{roberta_forward.3} parent=5 // pred_check_branch
      %407 = sbr.rel (%p404) target = $region12
    $region11: #{roberta_forward.3} parent=5 // pred_region
      %s408 = ssub.s32 %s22, 1
      // Predicated region
      $region13: #{roberta_forward.3} parent=11 // pred_check
        %p409 = pneg %p95
      $region14: #{roberta_forward.3} parent=11 // pred_check_branch
        %411 = sbr.rel (%p409) target = $region16
      $region15: #{roberta_forward.3} parent=11 // pred_region
        _
      $region16: #{roberta_forward.3} parent=11 // pred_fallthru
        _
      // Predicated region
      $region17: #{roberta_forward.3} parent=11 // pred_check
        %p412 = pneg %p116
      $region18: #{roberta_forward.3} parent=11 // pred_check_branch
        %414 = sbr.rel (%p412) target = $region20
      $region19: #{roberta_forward.3} parent=11 // pred_region
        _
      $region20: #{roberta_forward.3} parent=11 // pred_fallthru
        _
      // Predicated region
      $region21: #{roberta_forward.3} parent=11 // pred_check
        %p415 = pneg %p137
      $region22: #{roberta_forward.3} parent=11 // pred_check_branch
        %417 = sbr.rel (%p415) target = $region24
      $region23: #{roberta_forward.3} parent=11 // pred_region
        _
      $region24: #{roberta_forward.3} parent=11 // pred_fallthru
        _
      // Predicated region
      $region25: #{roberta_forward.3} parent=11 // pred_check
        %p418 = pneg %p158
      $region26: #{roberta_forward.3} parent=11 // pred_check_branch
        %420 = sbr.rel (%p418) target = $region28
      $region27: #{roberta_forward.3} parent=11 // pred_region
        _
      $region28: #{roberta_forward.3} parent=11 // pred_fallthru
        _
      // Predicated region
      $region29: #{roberta_forward.3} parent=11 // pred_check
        %p421 = pneg %p179
      $region30: #{roberta_forward.3} parent=11 // pred_check_branch
        %423 = sbr.rel (%p421) target = $region32
      $region31: #{roberta_forward.3} parent=11 // pred_region
        _
      $region32: #{roberta_forward.3} parent=11 // pred_fallthru
        _
      // Predicated region
      $region33: #{roberta_forward.3} parent=11 // pred_check
        %p424 = pneg %p200
      $region34: #{roberta_forward.3} parent=11 // pred_check_branch
        %426 = sbr.rel (%p424) target = $region36
      $region35: #{roberta_forward.3} parent=11 // pred_region
        _
      $region36: #{roberta_forward.3} parent=11 // pred_fallthru
        _
      // Predicated region
      $region37: #{roberta_forward.3} parent=11 // pred_check
        %p427 = pneg %p221
      $region38: #{roberta_forward.3} parent=11 // pred_check_branch
        %429 = sbr.rel (%p427) target = $region40
      $region39: #{roberta_forward.3} parent=11 // pred_region
        _
      $region40: #{roberta_forward.3} parent=11 // pred_fallthru
        _
      // Predicated region
      $region41: #{roberta_forward.3} parent=11 // pred_check
        %p430 = pneg %p242
      $region42: #{roberta_forward.3} parent=11 // pred_check_branch
        %432 = sbr.rel (%p430) target = $region44
      $region43: #{roberta_forward.3} parent=11 // pred_region
        _
      $region44: #{roberta_forward.3} parent=11 // pred_fallthru
        _
      // Predicated region
      $region45: #{roberta_forward.3} parent=11 // pred_check
        %p433 = pneg %p263
      $region46: #{roberta_forward.3} parent=11 // pred_check_branch
        %435 = sbr.rel (%p433) target = $region48
      $region47: #{roberta_forward.3} parent=11 // pred_region
        _
      $region48: #{roberta_forward.3} parent=11 // pred_fallthru
        _
      // Predicated region
      $region49: #{roberta_forward.3} parent=11 // pred_check
        %p436 = pneg %p284
      $region50: #{roberta_forward.3} parent=11 // pred_check_branch
        %438 = sbr.rel (%p436) target = $region52
      $region51: #{roberta_forward.3} parent=11 // pred_region
        _
      $region52: #{roberta_forward.3} parent=11 // pred_fallthru
        _
      // Predicated region
      $region53: #{roberta_forward.3} parent=11 // pred_check
        %p439 = pneg %p305
      $region54: #{roberta_forward.3} parent=11 // pred_check_branch
        %441 = sbr.rel (%p439) target = $region56
      $region55: #{roberta_forward.3} parent=11 // pred_region
        _
      $region56: #{roberta_forward.3} parent=11 // pred_fallthru
        _
      // Predicated region
      $region57: #{roberta_forward.3} parent=11 // pred_check
        %p442 = pneg %p326
      $region58: #{roberta_forward.3} parent=11 // pred_check_branch
        %444 = sbr.rel (%p442) target = $region60
      $region59: #{roberta_forward.3} parent=11 // pred_region
        _
      $region60: #{roberta_forward.3} parent=11 // pred_fallthru
        _
      // Predicated region
      $region61: #{roberta_forward.3} parent=11 // pred_check
        %p445 = pneg %p347
      $region62: #{roberta_forward.3} parent=11 // pred_check_branch
        %447 = sbr.rel (%p445) target = $region64
      $region63: #{roberta_forward.3} parent=11 // pred_region
        _
      $region64: #{roberta_forward.3} parent=11 // pred_fallthru
        _
      // Predicated region
      $region65: #{roberta_forward.3} parent=11 // pred_check
        %p448 = pneg %p368
      $region66: #{roberta_forward.3} parent=11 // pred_check_branch
        %450 = sbr.rel (%p448) target = $region68
      $region67: #{roberta_forward.3} parent=11 // pred_region
        _
      $region68: #{roberta_forward.3} parent=11 // pred_fallthru
        _
    $region12: #{roberta_forward.3} parent=5 // pred_fallthru
      _
    %p451 = scmp.lt.s32.totalorder %s22, 2
    // Predicated region
    $region69: #{roberta_forward.3} parent=5 // pred_check
      %p452 = pneg %p451
    $region70: #{roberta_forward.3} parent=5 // pred_check_branch
      %454 = sbr.rel (%p452) target = $region72
    $region71: #{roberta_forward.3} parent=5 // pred_region
      // Predicated region
      $region73: #{roberta_forward.3} parent=71 // pred_check
        %p455 = pneg %p42
      $region74: #{roberta_forward.3} parent=71 // pred_check_branch
        %457 = sbr.rel (%p455) target = $region76
      $region75: #{roberta_forward.3} parent=71 // pred_region
        %p458 = scmp.lt.s32.totalorder %s22, 1
        %s459 = scalar_select %p458, %s22, 1
        %s460 = smul.addr %s459, 8
        %s461 = scalar_lea.vmem %s0, %s460
      $region76: #{roberta_forward.3} parent=71 // pred_fallthru
        _
      // Predicated region
      $region77: #{roberta_forward.3} parent=71 // pred_check
        %p462 = pneg %p68
      $region78: #{roberta_forward.3} parent=71 // pred_check_branch
        %464 = sbr.rel (%p462) target = $region80
      $region79: #{roberta_forward.3} parent=71 // pred_region
        %p465 = scmp.lt.s32.totalorder %s22, 1
        %s466 = scalar_select %p465, %s22, 1
        %s467 = scalar_lea.vmem %s1, %s466
      $region80: #{roberta_forward.3} parent=71 // pred_fallthru
        _
    $region72: #{roberta_forward.3} parent=5 // pred_fallthru
      _
    %p468 = scmp.le.s32.totalorder 1, %s22
    %p469 = scmp.lt.s32.totalorder %s22, 3
    %p470 = pnand %p468, %p469
    %p471 = pneg %p470
    // Predicated region
    $region81: #{roberta_forward.3} parent=5 // pred_check
      _
    $region82: #{roberta_forward.3} parent=5 // pred_check_branch
      %473 = sbr.rel (%p470) target = $region84
    $region83: #{roberta_forward.3} parent=5 // pred_region
      %s474 = ssub.s32 %s22, 1
      %p475 = scmp.lt.s32.totalorder %s27, 1
      %s476 = scalar_select %p475, %s27, 1
      %s477 = smul.addr %s476, 8
      %s478 = scalar_lea.vmem %s0, %s477
      %p479 = pneg %p48
      %p480 = pneg %p45
      %p481 = scmp.lt.s32.totalorder %s27, 1
      %s482 = scalar_select %p481, %s27, 1
      %s483 = scalar_lea.vmem %s1, %s482
      %p484 = pneg %p74
      %p485 = pneg %p71
      %p486 = pneg %p95
      %p487 = pneg %p92
      %p488 = pneg %p116
      %p489 = pneg %p113
      %p490 = pneg %p137
      %p491 = pneg %p134
      %p492 = pneg %p158
      %p493 = pneg %p155
      %p494 = pneg %p179
      %p495 = pneg %p176
      %p496 = pneg %p200
      %p497 = pneg %p197
      %p498 = pneg %p221
      %p499 = pneg %p218
      %p500 = pneg %p242
      %p501 = pneg %p239
      %p502 = pneg %p263
      %p503 = pneg %p260
      %p504 = pneg %p284
      %p505 = pneg %p281
      %p506 = pneg %p305
      %p507 = pneg %p302
      %p508 = pneg %p326
      %p509 = pneg %p323
      %p510 = pneg %p347
      %p511 = pneg %p344
      %p512 = pneg %p368
      %p513 = pneg %p365
      %p514 = pneg %p394
      %p515 = pneg %p391
      %p516 = scmp.lt.s32.totalorder %s27, 1
      %s517 = scalar_select %p516, %s27, 1
      %s518 = smul.addr %s517, 8
      %s519 = scalar_lea.vmem %s16, %s518
      %p520 = scmp.lt.s32.totalorder %s27, 1
      %s521 = scalar_select %p520, %s27, 1
      %s522 = smul.addr %s521, 8
      %s523 = scalar_lea.vmem %s0, %s522
      %p524 = scmp.lt.s32.totalorder %s27, 1
      %s525 = scalar_select %p524, %s27, 1
      %s526 = scalar_lea.vmem %s1, %s525
      %p527 = scmp.lt.s32.totalorder %s27, 1
      %s528 = scalar_select %p527, %s27, 1
      %s529 = smul.addr %s528, 8
      %s530 = scalar_lea.vmem %s16, %s529
      %v532 = vld [vmem:[%s523] sm:$0xff]
      %v533 = vld [vmem:[%s2] sm:$0x1]
      %v534 = vld [vmem:[%s3] sm:$0x1]
      %vm535 = vcmask 261120
      %v536 = vsel %vm535, %v532, 0.0
      %537 = vadd.xlane.f32.xlu0 %v536
      %v538 = vpop.xlane.xlu0 %537
      %v539 = vrcp.pop 32.0
      %v540 = vmul.f32 %v538, %v539
      %v541 = vsub.f32 %v532, %v540
      %v542 = vmul.f32 %v541, %v541
      %v543 = vsel %vm535, %v542, 0.0
      %544 = vadd.xlane.f32.xlu0 %v543
      %v545 = vpop.xlane.xlu0 %544
      %v546 = vmul.f32 %v545, %v539
      %v547 = vadd.f32 %v546, 1e-05
      %v548 = vrsqrt.pop %v547
      %v549 = vmul.f32 %v541, %v548
      %v551 = vlaneseq
      %v552 = vshrl.u32 %v551, 7
      %v553 = vsub.s32 0, %v552
      %v554 = vrot.slane %v533, %v553
      %v556 = vmul.f32 %v549, %v554
      %v558 = vlaneseq
      %v559 = vshrl.u32 %v558, 7
      %v560 = vsub.s32 0, %v559
      %v561 = vrot.slane %v534, %v560
      %v563 = vadd.f32 %v556, %v561
      %v564 = vld [vmem:[%s526] sm:$0x1]
      %v565 = vld [vmem:[%s4] sm:$0xf]
      %v566 = vld [vmem:[%s4 + $0x4] sm:$0xf]
      %v567 = vld [vmem:[%s4 + $0x8] sm:$0xf]
      %v568 = vld [vmem:[%s4 + $0xc] sm:$0xf]
      %v569 = vld [vmem:[%s4 + $0x10] sm:$0xf]
      %v570 = vld [vmem:[%s4 + $0x14] sm:$0xf]
      %v571 = vld [vmem:[%s4 + $0x18] sm:$0xf]
      %v572 = vld [vmem:[%s4 + $0x1c] sm:$0xf]
      %v573 = vld [vmem:[%s4 + $0x20] sm:$0xf]
      %v574 = vld [vmem:[%s4 + $0x24] sm:$0xf]
      %v575 = vld [vmem:[%s4 + $0x28] sm:$0xf]
      %v576 = vld [vmem:[%s4 + $0x2c] sm:$0xf]
      %v577 = vld [vmem:[%s4 + $0x30] sm:$0xf]
      %v578 = vld [vmem:[%s4 + $0x34] sm:$0xf]
      %v579 = vld [vmem:[%s4 + $0x38] sm:$0xf]
      %v580 = vld [vmem:[%s4 + $0x3c] sm:$0xf]
      %v581 = vld [vmem:[%s4 + $0x40] sm:$0xf]
      %v582 = vld [vmem:[%s4 + $0x44] sm:$0xf]
      %v583 = vld [vmem:[%s4 + $0x48] sm:$0xf]
      %v584 = vld [vmem:[%s4 + $0x4c] sm:$0xf]
      %v585 = vld [vmem:[%s4 + $0x50] sm:$0xf]
      %v586 = vld [vmem:[%s4 + $0x54] sm:$0xf]
      %v587 = vld [vmem:[%s4 + $0x58] sm:$0xf]
      %v588 = vld [vmem:[%s4 + $0x5c] sm:$0xf]
      %v589 = vld [vmem:[%s5] sm:$0x1]
      %v590 = vld [vmem:[%s5 + $0x1] sm:$0x1]
      %v591 = vld [vmem:[%s5 + $0x2] sm:$0x1]
      %v592 = vld [vmem:[%s5 + $0x3] sm:$0x1]
      %v593 = vld [vmem:[%s5 + $0x4] sm:$0x1]
      %v594 = vld [vmem:[%s5 + $0x5] sm:$0x1]
      %v595 = vld [vmem:[%s6] sm:$0xf]
      %v596 = vld [vmem:[%s6 + $0x4] sm:$0xf]
      %v597 = vld [vmem:[%s6 + $0x8] sm:$0xf]
      %v598 = vld [vmem:[%s6 + $0xc] sm:$0xf]
      %v599 = vld [vmem:[%s7] sm:$0x1]
      %v600 = vld [vmem:[%s8] sm:$0x1]
      %v601 = vld [vmem:[%s9] sm:$0x1]
      %v602 = vld [vmem:[%s10] sm:$0xf]
      %v603 = vld [vmem:[%s10 + $0x4] sm:$0xf]
      %v604 = vld [vmem:[%s10 + $0x8] sm:$0xf]
      %v605 = vld [vmem:[%s10 + $0xc] sm:$0xf]
      %v606 = vld [vmem:[%s11] sm:$0x1]
      %v607 = vld [vmem:[%s12] sm:$0xf]
      %v608 = vld [vmem:[%s12 + $0x4] sm:$0xf]
      %v609 = vld [vmem:[%s12 + $0x8] sm:$0xf]
      %v610 = vld [vmem:[%s12 + $0xc] sm:$0xf]
      %v611 = vld [vmem:[%s12 + $0x10] sm:$0xf]
      %v612 = vld [vmem:[%s12 + $0x14] sm:$0xf]
      %v613 = vld [vmem:[%s12 + $0x18] sm:$0xf]
      %v614 = vld [vmem:[%s12 + $0x1c] sm:$0xf]
      %v615 = vld [vmem:[%s13] sm:$0x1]
      %v616 = vld [vmem:[%s14] sm:$0x1]
      %v617 = vld [vmem:[%s15] sm:$0x1]
      %vm618 = vcmp.gt.f32.partialorder %v564, 0.5
      %v619 = vsel %vm618, 0.0, -1e+09
      %v620 = vpack.c.bf16 %v563, %v563
      %v627 = vlaneseq
      %v628 = vshrl.u32 %v627, 7
      %v629 = vsub.s32 0, %v628
      %v630 = vrot.slane %v589, %v629
      %v631 = vlaneseq
      %v632 = vshrl.u32 %v631, 7
      %v633 = vsub.s32 0, %v632
      %v634 = vrot.slane %v590, %v633
      %v635 = vlaneseq
      %v636 = vshrl.u32 %v635, 7
      %v637 = vsub.s32 0, %v636
      %v638 = vrot.slane %v591, %v637
      %v639 = vlaneseq
      %v640 = vshrl.u32 %v639, 7
      %v641 = vsub.s32 0, %v640
      %v642 = vrot.slane %v592, %v641
      %v643 = vlaneseq
      %v644 = vshrl.u32 %v643, 7
      %v645 = vsub.s32 0, %v644
      %v646 = vrot.slane %v593, %v645
      %v647 = vlaneseq
      %v648 = vshrl.u32 %v647, 7
      %v649 = vsub.s32 0, %v648
      %v650 = vrot.slane %v594, %v649
      %v661 = vunpack.c.l.b16 %v565
      %v662 = vunpack.c.l.b16 %v566
      %v663 = vunpack.c.l.b16 %v567
      %v664 = vunpack.c.l.b16 %v568
      %v665 = vpack.c.b16 %v662, %v661
      %v666 = vpack.c.b16 %v664, %v663
      %v670 = vsel %vm535, %v620, 0
      %672 = vmatprep.subr.bf16.mxu0 0
      %673 = vmatpush1.bf16.msra.mxu0 0
      %674 = vmatprep.subr.bf16.mxu0 0
      %675 = vmatpush1.bf16.msra.mxu0 0
      %676 = vmatprep.subr.bf16.mxu0 0
      %677 = vmatpush1.bf16.msra.mxu0 0
      %678 = vmatprep.subr.bf16.mxu0 0
      %679 = vmatpush1.bf16.msra.mxu0 0
      %680 = vmatprep.subr.bf16.mxu0 0
      %681 = vmatpush1.bf16.msra.mxu0 0
      %682 = vmatprep.subr.bf16.mxu0 0
      %683 = vmatpush1.bf16.msra.mxu0 0
      %684 = vmatprep.subr.bf16.mxu0 0
      %685 = vmatpush1.bf16.msra.mxu0 %v666
      %686 = vmatprep.subr.bf16.mxu0 0
      %687 = vmatpush1.bf16.msra.mxu0 %v665
      %688 = vmatprep.subr.bf16.mxu0 0
      %689 = vmatpush2.bf16.msra.mxu0 0
      %690 = vmatprep.subr.bf16.mxu0 0
      %691 = vmatpush2.bf16.msra.mxu0 0
      %692 = vmatprep.subr.bf16.mxu0 0
      %693 = vmatpush2.bf16.msra.mxu0 0
      %694 = vmatprep.subr.bf16.mxu0 0
      %695 = vmatpush2.bf16.msra.mxu0 0
      %696 = vmatprep.subr.bf16.mxu0 0
      %697 = vmatpush2.bf16.msra.mxu0 0
      %698 = vmatprep.subr.bf16.mxu0 0
      %699 = vmatpush2.bf16.msra.mxu0 0
      %700 = vmatprep.subr.bf16.mxu0 0
      %701 = vmatpush2.bf16.msra.mxu0 0
      %702 = vmatprep.subr.bf16.mxu0 0
      %703 = vmatpush2.bf16.msra.mxu0 0
      %704 = vmatprep.mubr.bf16.mxu0 0
      %705 = vmatmul.mubr.bf16.gmra.mxu0 %v670
      %v706 = vpop.f32.mrf.mxu0
      %v707 = vadd.f32 %v630, %v706
      %v708 = vpop.f32.mrf.mxu0
      %v709 = vpop.f32.mrf.mxu0
      %v710 = vpop.f32.mrf.mxu0
      %711 = vdwg.mxu0
      %v716 = vunpack.c.l.b16 %v569
      %v717 = vunpack.c.l.b16 %v570
      %v718 = vunpack.c.l.b16 %v571
      %v719 = vunpack.c.l.b16 %v572
      %v720 = vpack.c.b16 %v717, %v716
      %v721 = vpack.c.b16 %v719, %v718
      %724 = vmatprep.subr.bf16.mxu0 0
      %725 = vmatpush1.bf16.msra.mxu0 0
      %726 = vmatprep.subr.bf16.mxu0 0
      %727 = vmatpush1.bf16.msra.mxu0 0
      %728 = vmatprep.subr.bf16.mxu0 0
      %729 = vmatpush1.bf16.msra.mxu0 0
      %730 = vmatprep.subr.bf16.mxu0 0
      %731 = vmatpush1.bf16.msra.mxu0 0
      %732 = vmatprep.subr.bf16.mxu0 0
      %733 = vmatpush1.bf16.msra.mxu0 0
      %734 = vmatprep.subr.bf16.mxu0 0
      %735 = vmatpush1.bf16.msra.mxu0 0
      %736 = vmatprep.subr.bf16.mxu0 0
      %737 = vmatpush1.bf16.msra.mxu0 %v721
      %738 = vmatprep.subr.bf16.mxu0 0
      %739 = vmatpush1.bf16.msra.mxu0 %v720
      %740 = vmatprep.subr.bf16.mxu0 0
      %741 = vmatpush2.bf16.msra.mxu0 0
      %742 = vmatprep.subr.bf16.mxu0 0
      %743 = vmatpush2.bf16.msra.mxu0 0
      %744 = vmatprep.subr.bf16.mxu0 0
      %745 = vmatpush2.bf16.msra.mxu0 0
      %746 = vmatprep.subr.bf16.mxu0 0
      %747 = vmatpush2.bf16.msra.mxu0 0
      %748 = vmatprep.subr.bf16.mxu0 0
      %749 = vmatpush2.bf16.msra.mxu0 0
      %750 = vmatprep.subr.bf16.mxu0 0
      %751 = vmatpush2.bf16.msra.mxu0 0
      %752 = vmatprep.subr.bf16.mxu0 0
      %753 = vmatpush2.bf16.msra.mxu0 0
      %754 = vmatprep.subr.bf16.mxu0 0
      %755 = vmatpush2.bf16.msra.mxu0 0
      %756 = vmatprep.mubr.bf16.mxu0 0
      %757 = vmatmul.mubr.bf16.gmra.mxu0 %v670
      %v758 = vpop.f32.mrf.mxu0
      %v759 = vadd.f32 %v634, %v758
      %v760 = vpop.f32.mrf.mxu0
      %v761 = vpop.f32.mrf.mxu0
      %v762 = vpop.f32.mrf.mxu0
      %763 = vdwg.mxu0
      %v768 = vunpack.c.l.b16 %v573
      %v769 = vunpack.c.l.b16 %v574
      %v770 = vunpack.c.l.b16 %v575
      %v771 = vunpack.c.l.b16 %v576
      %v772 = vpack.c.b16 %v769, %v768
      %v773 = vpack.c.b16 %v771, %v770
      %776 = vmatprep.subr.bf16.mxu0 0
      %777 = vmatpush1.bf16.msra.mxu0 0
      %778 = vmatprep.subr.bf16.mxu0 0
      %779 = vmatpush1.bf16.msra.mxu0 0
      %780 = vmatprep.subr.bf16.mxu0 0
      %781 = vmatpush1.bf16.msra.mxu0 0
      %782 = vmatprep.subr.bf16.mxu0 0
      %783 = vmatpush1.bf16.msra.mxu0 0
      %784 = vmatprep.subr.bf16.mxu0 0
      %785 = vmatpush1.bf16.msra.mxu0 0
      %786 = vmatprep.subr.bf16.mxu0 0
      %787 = vmatpush1.bf16.msra.mxu0 0
      %788 = vmatprep.subr.bf16.mxu0 0
      %789 = vmatpush1.bf16.msra.mxu0 %v773
      %790 = vmatprep.subr.bf16.mxu0 0
      %791 = vmatpush1.bf16.msra.mxu0 %v772
      %792 = vmatprep.subr.bf16.mxu0 0
      %793 = vmatpush2.bf16.msra.mxu0 0
      %794 = vmatprep.subr.bf16.mxu0 0
      %795 = vmatpush2.bf16.msra.mxu0 0
      %796 = vmatprep.subr.bf16.mxu0 0
      %797 = vmatpush2.bf16.msra.mxu0 0
      %798 = vmatprep.subr.bf16.mxu0 0
      %799 = vmatpush2.bf16.msra.mxu0 0
      %800 = vmatprep.subr.bf16.mxu0 0
      %801 = vmatpush2.bf16.msra.mxu0 0
      %802 = vmatprep.subr.bf16.mxu0 0
      %803 = vmatpush2.bf16.msra.mxu0 0
      %804 = vmatprep.subr.bf16.mxu0 0
      %805 = vmatpush2.bf16.msra.mxu0 0
      %806 = vmatprep.subr.bf16.mxu0 0
      %807 = vmatpush2.bf16.msra.mxu0 0
      %808 = vmatprep.mubr.bf16.mxu0 0
      %809 = vmatmul.mubr.bf16.gmra.mxu0 %v670
      %v810 = vpop.f32.mrf.mxu0
      %v811 = vadd.f32 %v638, %v810
      %v812 = vpop.f32.mrf.mxu0
      %v813 = vpop.f32.mrf.mxu0
      %v814 = vpop.f32.mrf.mxu0
      %815 = vdwg.mxu0
      %v820 = vunpack.c.l.b16 %v577
      %v821 = vunpack.c.l.b16 %v578
      %v822 = vunpack.c.l.b16 %v579
      %v823 = vunpack.c.l.b16 %v580
      %v824 = vpack.c.b16 %v821, %v820
      %v825 = vpack.c.b16 %v823, %v822
      %828 = vmatprep.subr.bf16.mxu0 0
      %829 = vmatpush1.bf16.msra.mxu0 0
      %830 = vmatprep.subr.bf16.mxu0 0
      %831 = vmatpush1.bf16.msra.mxu0 0
      %832 = vmatprep.subr.bf16.mxu0 0
      %833 = vmatpush1.bf16.msra.mxu0 0
      %834 = vmatprep.subr.bf16.mxu0 0
      %835 = vmatpush1.bf16.msra.mxu0 0
      %836 = vmatprep.subr.bf16.mxu0 0
      %837 = vmatpush1.bf16.msra.mxu0 0
      %838 = vmatprep.subr.bf16.mxu0 0
      %839 = vmatpush1.bf16.msra.mxu0 0
      %840 = vmatprep.subr.bf16.mxu0 0
      %841 = vmatpush1.bf16.msra.mxu0 %v825
      %842 = vmatprep.subr.bf16.mxu0 0
      %843 = vmatpush1.bf16.msra.mxu0 %v824
      %844 = vmatprep.subr.bf16.mxu0 0
      %845 = vmatpush2.bf16.msra.mxu0 0
      %846 = vmatprep.subr.bf16.mxu0 0
      %847 = vmatpush2.bf16.msra.mxu0 0
      %848 = vmatprep.subr.bf16.mxu0 0
      %849 = vmatpush2.bf16.msra.mxu0 0
      %850 = vmatprep.subr.bf16.mxu0 0
      %851 = vmatpush2.bf16.msra.mxu0 0
      %852 = vmatprep.subr.bf16.mxu0 0
      %853 = vmatpush2.bf16.msra.mxu0 0
      %854 = vmatprep.subr.bf16.mxu0 0
      %855 = vmatpush2.bf16.msra.mxu0 0
      %856 = vmatprep.subr.bf16.mxu0 0
      %857 = vmatpush2.bf16.msra.mxu0 0
      %858 = vmatprep.subr.bf16.mxu0 0
      %859 = vmatpush2.bf16.msra.mxu0 0
      %860 = vmatprep.mubr.bf16.mxu0 0
      %861 = vmatmul.mubr.bf16.gmra.mxu0 %v670
      %v862 = vpop.f32.mrf.mxu0
      %v863 = vadd.f32 %v642, %v862
      %v864 = vpop.f32.mrf.mxu0
      %v865 = vpop.f32.mrf.mxu0
      %v866 = vpop.f32.mrf.mxu0
      %867 = vdwg.mxu0
      %v872 = vunpack.c.l.b16 %v581
      %v873 = vunpack.c.l.b16 %v582
      %v874 = vunpack.c.l.b16 %v583
      %v875 = vunpack.c.l.b16 %v584
      %v876 = vpack.c.b16 %v873, %v872
      %v877 = vpack.c.b16 %v875, %v874
      %880 = vmatprep.subr.bf16.mxu0 0
      %881 = vmatpush1.bf16.msra.mxu0 0
      %882 = vmatprep.subr.bf16.mxu0 0
      %883 = vmatpush1.bf16.msra.mxu0 0
      %884 = vmatprep.subr.bf16.mxu0 0
      %885 = vmatpush1.bf16.msra.mxu0 0
      %886 = vmatprep.subr.bf16.mxu0 0
      %887 = vmatpush1.bf16.msra.mxu0 0
      %888 = vmatprep.subr.bf16.mxu0 0
      %889 = vmatpush1.bf16.msra.mxu0 0
      %890 = vmatprep.subr.bf16.mxu0 0
      %891 = vmatpush1.bf16.msra.mxu0 0
      %892 = vmatprep.subr.bf16.mxu0 0
      %893 = vmatpush1.bf16.msra.mxu0 %v877
      %894 = vmatprep.subr.bf16.mxu0 0
      %895 = vmatpush1.bf16.msra.mxu0 %v876
      %896 = vmatprep.subr.bf16.mxu0 0
      %897 = vmatpush2.bf16.msra.mxu0 0
      %898 = vmatprep.subr.bf16.mxu0 0
      %899 = vmatpush2.bf16.msra.mxu0 0
      %900 = vmatprep.subr.bf16.mxu0 0
      %901 = vmatpush2.bf16.msra.mxu0 0
      %902 = vmatprep.subr.bf16.mxu0 0
      %903 = vmatpush2.bf16.msra.mxu0 0
      %904 = vmatprep.subr.bf16.mxu0 0
      %905 = vmatpush2.bf16.msra.mxu0 0
      %906 = vmatprep.subr.bf16.mxu0 0
      %907 = vmatpush2.bf16.msra.mxu0 0
      %908 = vmatprep.subr.bf16.mxu0 0
      %909 = vmatpush2.bf16.msra.mxu0 0
      %910 = vmatprep.subr.bf16.mxu0 0
      %911 = vmatpush2.bf16.msra.mxu0 0
      %912 = vmatprep.mubr.bf16.mxu0 0
      %913 = vmatmul.mubr.bf16.gmra.mxu0 %v670
      %v914 = vpop.f32.mrf.mxu0
      %v915 = vadd.f32 %v646, %v914
      %v916 = vpop.f32.mrf.mxu0
      %v917 = vpop.f32.mrf.mxu0
      %v918 = vpop.f32.mrf.mxu0
      %919 = vdwg.mxu0
      %v924 = vunpack.c.l.b16 %v585
      %v925 = vunpack.c.l.b16 %v586
      %v926 = vunpack.c.l.b16 %v587
      %v927 = vunpack.c.l.b16 %v588
      %v928 = vpack.c.b16 %v925, %v924
      %v929 = vpack.c.b16 %v927, %v926
      %932 = vmatprep.subr.bf16.mxu0 0
      %933 = vmatpush1.bf16.msra.mxu0 0
      %934 = vmatprep.subr.bf16.mxu0 0
      %935 = vmatpush1.bf16.msra.mxu0 0
      %936 = vmatprep.subr.bf16.mxu0 0
      %937 = vmatpush1.bf16.msra.mxu0 0
      %938 = vmatprep.subr.bf16.mxu0 0
      %939 = vmatpush1.bf16.msra.mxu0 0
      %940 = vmatprep.subr.bf16.mxu0 0
      %941 = vmatpush1.bf16.msra.mxu0 0
      %942 = vmatprep.subr.bf16.mxu0 0
      %943 = vmatpush1.bf16.msra.mxu0 0
      %944 = vmatprep.subr.bf16.mxu0 0
      %945 = vmatpush1.bf16.msra.mxu0 %v929
      %946 = vmatprep.subr.bf16.mxu0 0
      %947 = vmatpush1.bf16.msra.mxu0 %v928
      %948 = vmatprep.subr.bf16.mxu0 0
      %949 = vmatpush2.bf16.msra.mxu0 0
      %950 = vmatprep.subr.bf16.mxu0 0
      %951 = vmatpush2.bf16.msra.mxu0 0
      %952 = vmatprep.subr.bf16.mxu0 0
      %953 = vmatpush2.bf16.msra.mxu0 0
      %954 = vmatprep.subr.bf16.mxu0 0
      %955 = vmatpush2.bf16.msra.mxu0 0
      %956 = vmatprep.subr.bf16.mxu0 0
      %957 = vmatpush2.bf16.msra.mxu0 0
      %958 = vmatprep.subr.bf16.mxu0 0
      %959 = vmatpush2.bf16.msra.mxu0 0
      %960 = vmatprep.subr.bf16.mxu0 0
      %961 = vmatpush2.bf16.msra.mxu0 0
      %962 = vmatprep.subr.bf16.mxu0 0
      %963 = vmatpush2.bf16.msra.mxu0 0
      %964 = vmatprep.mubr.bf16.mxu0 0
      %965 = vmatmul.mubr.bf16.gmra.mxu0 %v670
      %v966 = vpop.f32.mrf.mxu0
      %v967 = vadd.f32 %v650, %v966
      %v968 = vpop.f32.mrf.mxu0
      %v969 = vpop.f32.mrf.mxu0
      %v970 = vpop.f32.mrf.mxu0
      %971 = vdwg.mxu0
      %v972 = vpack.c.bf16 %v707, %v707
      %v973 = vpack.c.bf16 %v759, %v759
      %v974 = vpack.c.bf16 %v811, %v811
      %v975 = vpack.c.bf16 %v863, %v863
      %v977 = vlaneseq
      %v978 = vshrl.u32 %v977, 7
      %v979 = vsub.s32 0, %v978
      %v980 = vrot.slane %v619, %v979
      %vm982 = vcmask 130048
      %v984 = vsel %vm982, %v972, 0
      %v987 = vsel %vm982, %v974, 0
      %989 = vmatprep.subr.bf16.mxu0 0
      %990 = vmatpush1.bf16.xpose.msra.mxu0 0
      %991 = vmatprep.subr.bf16.mxu0 0
      %992 = vmatpush1.bf16.xpose.msra.mxu0 0
      %993 = vmatprep.subr.bf16.mxu0 0
      %994 = vmatpush1.bf16.xpose.msra.mxu0 0
      %995 = vmatprep.subr.bf16.mxu0 0
      %996 = vmatpush1.bf16.xpose.msra.mxu0 0
      %997 = vmatprep.subr.bf16.mxu0 0
      %998 = vmatpush1.bf16.xpose.msra.mxu0 0
      %999 = vmatprep.subr.bf16.mxu0 0
      %1000 = vmatpush1.bf16.xpose.msra.mxu0 0
      %1001 = vmatprep.subr.bf16.mxu0 0
      %1002 = vmatpush1.bf16.xpose.msra.mxu0 0
      %1003 = vmatprep.subr.bf16.mxu0 0
      %1004 = vmatpush1.bf16.xpose.msra.mxu0 %v987
      %1005 = vmatprep.subr.bf16.mxu0 0
      %1006 = vmatpush2.bf16.xpose.msra.mxu0 0
      %1007 = vmatprep.subr.bf16.mxu0 0
      %1008 = vmatpush2.bf16.xpose.msra.mxu0 0
      %1009 = vmatprep.subr.bf16.mxu0 0
      %1010 = vmatpush2.bf16.xpose.msra.mxu0 0
      %1011 = vmatprep.subr.bf16.mxu0 0
      %1012 = vmatpush2.bf16.xpose.msra.mxu0 0
      %1013 = vmatprep.subr.bf16.mxu0 0
      %1014 = vmatpush2.bf16.xpose.msra.mxu0 0
      %1015 = vmatprep.subr.bf16.mxu0 0
      %1016 = vmatpush2.bf16.xpose.msra.mxu0 0
      %1017 = vmatprep.subr.bf16.mxu0 0
      %1018 = vmatpush2.bf16.xpose.msra.mxu0 0
      %1019 = vmatprep.subr.bf16.mxu0 0
      %1020 = vmatpush2.bf16.xpose.msra.mxu0 0
      %1021 = vmatprep.mubr.bf16.mxu0 0
      %1022 = vmatmul.mubr.bf16.gmra.mxu0 %v984
      %v1023 = vpop.f32.mrf.mxu0
      %v1024 = vadd.f32 %v980, %v1023
      %v1025 = vpop.f32.mrf.mxu0
      %v1026 = vpop.f32.mrf.mxu0
      %v1027 = vpop.f32.mrf.mxu0
      %1028 = vdwg.mxu0
      %v1030 = vsel %vm982, %v973, 0
      %v1033 = vsel %vm982, %v975, 0
      %1035 = vmatprep.subr.bf16.mxu0 0
      %1036 = vmatpush1.bf16.xpose.msra.mxu0 0
      %1037 = vmatprep.subr.bf16.mxu0 0
      %1038 = vmatpush1.bf16.xpose.msra.mxu0 0
      %1039 = vmatprep.subr.bf16.mxu0 0
      %1040 = vmatpush1.bf16.xpose.msra.mxu0 0
      %1041 = vmatprep.subr.bf16.mxu0 0
      %1042 = vmatpush1.bf16.xpose.msra.mxu0 0
      %1043 = vmatprep.subr.bf16.mxu0 0
      %1044 = vmatpush1.bf16.xpose.msra.mxu0 0
      %1045 = vmatprep.subr.bf16.mxu0 0
      %1046 = vmatpush1.bf16.xpose.msra.mxu0 0
      %1047 = vmatprep.subr.bf16.mxu0 0
      %1048 = vmatpush1.bf16.xpose.msra.mxu0 0
      %1049 = vmatprep.subr.bf16.mxu0 0
      %1050 = vmatpush1.bf16.xpose.msra.mxu0 %v1033
      %1051 = vmatprep.subr.bf16.mxu0 0
      %1052 = vmatpush2.bf16.xpose.msra.mxu0 0
      %1053 = vmatprep.subr.bf16.mxu0 0
      %1054 = vmatpush2.bf16.xpose.msra.mxu0 0
      %1055 = vmatprep.subr.bf16.mxu0 0
      %1056 = vmatpush2.bf16.xpose.msra.mxu0 0
      %1057 = vmatprep.subr.bf16.mxu0 0
      %1058 = vmatpush2.bf16.xpose.msra.mxu0 0
      %1059 = vmatprep.subr.bf16.mxu0 0
      %1060 = vmatpush2.bf16.xpose.msra.mxu0 0
      %1061 = vmatprep.subr.bf16.mxu0 0
      %1062 = vmatpush2.bf16.xpose.msra.mxu0 0
      %1063 = vmatprep.subr.bf16.mxu0 0
      %1064 = vmatpush2.bf16.xpose.msra.mxu0 0
      %1065 = vmatprep.subr.bf16.mxu0 0
      %1066 = vmatpush2.bf16.xpose.msra.mxu0 0
      %1067 = vmatprep.mubr.bf16.mxu0 0
      %1068 = vmatmul.mubr.bf16.gmra.mxu0 %v1030
      %v1069 = vpop.f32.mrf.mxu0
      %v1070 = vadd.f32 %v980, %v1069
      %v1071 = vpop.f32.mrf.mxu0
      %v1072 = vpop.f32.mrf.mxu0
      %v1073 = vpop.f32.mrf.mxu0
      %1074 = vdwg.mxu0
      %vm1075 = vcmask 64512
      %v1076 = vsel %vm1075, %v1024, -inf
      %1077 = vmax.xlane.f32.xlu0 %v1076
      %v1078 = vpop.xlane.xlu0 %1077
      %v1079 = vsel %vm1075, %v1070, -inf
      %1080 = vmax.xlane.f32.xlu0 %v1079
      %v1081 = vpop.xlane.xlu0 %1080
      %v1082 = vsub.f32 %v1024, %v1078
      %v1083 = vsub.f32 %v1070, %v1081
      %v1084 = vmul.f32 %v1082, 1.442695
      %v1085 = vpow.pop %v1084
      %v1086 = vmul.f32 %v1083, 1.442695
      %v1087 = vpow.pop %v1086
      %v1088 = vsel %vm1075, %v1085, 0.0
      %1089 = vadd.xlane.f32.xlu0 %v1088
      %v1090 = vpop.xlane.xlu0 %1089
      %v1091 = vsel %vm1075, %v1087, 0.0
      %1092 = vadd.xlane.f32.xlu0 %v1091
      %v1093 = vpop.xlane.xlu0 %1092
      %v1094 = vrcp.pop %v1090
      %v1095 = vmul.f32 %v1085, %v1094
      %v1096 = vrcp.pop %v1093
      %v1097 = vmul.f32 %v1087, %v1096
      %v1098 = vpack.c.bf16 %v1095, %v1095
      %v1099 = vpack.c.bf16 %v1097, %v1097
      %v1100 = vpack.c.bf16 %v915, %v915
      %v1101 = vpack.c.bf16 %v967, %v967
      %v1103 = vsel %vm1075, %v1098, 0
      %vm1105 = vcmask 1043456
      %v1107 = vsel %vm1105, %v1100, 0
      %1109 = vmatprep.subr.bf16.mxu0 0
      %1110 = vmatpush1.bf16.msra.mxu0 0
      %1111 = vmatprep.subr.bf16.mxu0 0
      %1112 = vmatpush1.bf16.msra.mxu0 0
      %1113 = vmatprep.subr.bf16.mxu0 0
      %1114 = vmatpush1.bf16.msra.mxu0 0
      %1115 = vmatprep.subr.bf16.mxu0 0
      %1116 = vmatpush1.bf16.msra.mxu0 0
      %1117 = vmatprep.subr.bf16.mxu0 0
      %1118 = vmatpush1.bf16.msra.mxu0 0
      %1119 = vmatprep.subr.bf16.mxu0 0
      %1120 = vmatpush1.bf16.msra.mxu0 0
      %1121 = vmatprep.subr.bf16.mxu0 0
      %1122 = vmatpush1.bf16.msra.mxu0 0
      %1123 = vmatprep.subr.bf16.mxu0 0
      %1124 = vmatpush1.bf16.msra.mxu0 %v1107
      %1125 = vmatprep.subr.bf16.mxu0 0
      %1126 = vmatpush2.bf16.msra.mxu0 0
      %1127 = vmatprep.subr.bf16.mxu0 0
      %1128 = vmatpush2.bf16.msra.mxu0 0
      %1129 = vmatprep.subr.bf16.mxu0 0
      %1130 = vmatpush2.bf16.msra.mxu0 0
      %1131 = vmatprep.subr.bf16.mxu0 0
      %1132 = vmatpush2.bf16.msra.mxu0 0
      %1133 = vmatprep.subr.bf16.mxu0 0
      %1134 = vmatpush2.bf16.msra.mxu0 0
      %1135 = vmatprep.subr.bf16.mxu0 0
      %1136 = vmatpush2.bf16.msra.mxu0 0
      %1137 = vmatprep.subr.bf16.mxu0 0
      %1138 = vmatpush2.bf16.msra.mxu0 0
      %1139 = vmatprep.subr.bf16.mxu0 0
      %1140 = vmatpush2.bf16.msra.mxu0 0
      %1141 = vmatprep.mubr.bf16.mxu0 0
      %1142 = vmatmul.mubr.bf16.gmra.mxu0 %v1103
      %v1143 = vpop.f32.mrf.mxu0
      %v1144 = vadd.f32 0.0, %v1143
      %v1145 = vpop.f32.mrf.mxu0
      %v1146 = vpop.f32.mrf.mxu0
      %v1147 = vpop.f32.mrf.mxu0
      %1148 = vdwg.mxu0
      %v1150 = vsel %vm1075, %v1099, 0
      %v1153 = vsel %vm1105, %v1101, 0
      %1155 = vmatprep.subr.bf16.mxu0 0
      %1156 = vmatpush1.bf16.msra.mxu0 0
      %1157 = vmatprep.subr.bf16.mxu0 0
      %1158 = vmatpush1.bf16.msra.mxu0 0
      %1159 = vmatprep.subr.bf16.mxu0 0
      %1160 = vmatpush1.bf16.msra.mxu0 0
      %1161 = vmatprep.subr.bf16.mxu0 0
      %1162 = vmatpush1.bf16.msra.mxu0 0
      %1163 = vmatprep.subr.bf16.mxu0 0
      %1164 = vmatpush1.bf16.msra.mxu0 0
      %1165 = vmatprep.subr.bf16.mxu0 0
      %1166 = vmatpush1.bf16.msra.mxu0 0
      %1167 = vmatprep.subr.bf16.mxu0 0
      %1168 = vmatpush1.bf16.msra.mxu0 0
      %1169 = vmatprep.subr.bf16.mxu0 0
      %1170 = vmatpush1.bf16.msra.mxu0 %v1153
      %1171 = vmatprep.subr.bf16.mxu0 0
      %1172 = vmatpush2.bf16.msra.mxu0 0
      %1173 = vmatprep.subr.bf16.mxu0 0
      %1174 = vmatpush2.bf16.msra.mxu0 0
      %1175 = vmatprep.subr.bf16.mxu0 0
      %1176 = vmatpush2.bf16.msra.mxu0 0
      %1177 = vmatprep.subr.bf16.mxu0 0
      %1178 = vmatpush2.bf16.msra.mxu0 0
      %1179 = vmatprep.subr.bf16.mxu0 0
      %1180 = vmatpush2.bf16.msra.mxu0 0
      %1181 = vmatprep.subr.bf16.mxu0 0
      %1182 = vmatpush2.bf16.msra.mxu0 0
      %1183 = vmatprep.subr.bf16.mxu0 0
      %1184 = vmatpush2.bf16.msra.mxu0 0
      %1185 = vmatprep.subr.bf16.mxu0 0
      %1186 = vmatpush2.bf16.msra.mxu0 0
      %1187 = vmatprep.mubr.bf16.mxu0 0
      %1188 = vmatmul.mubr.bf16.gmra.mxu0 %v1150
      %v1189 = vpop.f32.mrf.mxu0
      %v1190 = vadd.f32 0.0, %v1189
      %v1191 = vpop.f32.mrf.mxu0
      %v1192 = vpop.f32.mrf.mxu0
      %v1193 = vpop.f32.mrf.mxu0
      %1194 = vdwg.mxu0
      %v1195 = vpack.c.bf16 %v1144, %v1144
      %v1196 = vpack.c.bf16 %v1190, %v1190
      %v1199 = vunpack.c.l.b16 %v595
      %v1200 = vunpack.c.l.b16 %v596
      %v1201 = vpack.c.b16 %v1200, %v1199
      %v1204 = vsel %vm982, %v1195, 0
      %1206 = vmatprep.subr.bf16.mxu0 0
      %1207 = vmatpush1.bf16.msra.mxu0 0
      %1208 = vmatprep.subr.bf16.mxu0 0
      %1209 = vmatpush1.bf16.msra.mxu0 0
      %1210 = vmatprep.subr.bf16.mxu0 0
      %1211 = vmatpush1.bf16.msra.mxu0 0
      %1212 = vmatprep.subr.bf16.mxu0 0
      %1213 = vmatpush1.bf16.msra.mxu0 0
      %1214 = vmatprep.subr.bf16.mxu0 0
      %1215 = vmatpush1.bf16.msra.mxu0 0
      %1216 = vmatprep.subr.bf16.mxu0 0
      %1217 = vmatpush1.bf16.msra.mxu0 0
      %1218 = vmatprep.subr.bf16.mxu0 0
      %1219 = vmatpush1.bf16.msra.mxu0 0
      %1220 = vmatprep.subr.bf16.mxu0 0
      %1221 = vmatpush1.bf16.msra.mxu0 %v1201
      %1222 = vmatprep.subr.bf16.mxu0 0
      %1223 = vmatpush2.bf16.msra.mxu0 0
      %1224 = vmatprep.subr.bf16.mxu0 0
      %1225 = vmatpush2.bf16.msra.mxu0 0
      %1226 = vmatprep.subr.bf16.mxu0 0
      %1227 = vmatpush2.bf16.msra.mxu0 0
      %1228 = vmatprep.subr.bf16.mxu0 0
      %1229 = vmatpush2.bf16.msra.mxu0 0
      %1230 = vmatprep.subr.bf16.mxu0 0
      %1231 = vmatpush2.bf16.msra.mxu0 0
      %1232 = vmatprep.subr.bf16.mxu0 0
      %1233 = vmatpush2.bf16.msra.mxu0 0
      %1234 = vmatprep.subr.bf16.mxu0 0
      %1235 = vmatpush2.bf16.msra.mxu0 0
      %1236 = vmatprep.subr.bf16.mxu0 0
      %1237 = vmatpush2.bf16.msra.mxu0 0
      %1238 = vmatprep.mubr.bf16.mxu0 0
      %1239 = vmatmul.mubr.bf16.gmra.mxu0 %v1204
      %v1240 = vpop.f32.mrf.mxu0
      %v1241 = vadd.f32 0.0, %v1240
      %v1242 = vpop.f32.mrf.mxu0
      %v1243 = vpop.f32.mrf.mxu0
      %v1244 = vpop.f32.mrf.mxu0
      %1245 = vdwg.mxu0
      %v1248 = vunpack.c.l.b16 %v597
      %v1249 = vunpack.c.l.b16 %v598
      %v1250 = vpack.c.b16 %v1249, %v1248
      %v1253 = vsel %vm982, %v1196, 0
      %1255 = vmatprep.subr.bf16.mxu0 0
      %1256 = vmatpush1.bf16.msra.mxu0 0
      %1257 = vmatprep.subr.bf16.mxu0 0
      %1258 = vmatpush1.bf16.msra.mxu0 0
      %1259 = vmatprep.subr.bf16.mxu0 0
      %1260 = vmatpush1.bf16.msra.mxu0 0
      %1261 = vmatprep.subr.bf16.mxu0 0
      %1262 = vmatpush1.bf16.msra.mxu0 0
      %1263 = vmatprep.subr.bf16.mxu0 0
      %1264 = vmatpush1.bf16.msra.mxu0 0
      %1265 = vmatprep.subr.bf16.mxu0 0
      %1266 = vmatpush1.bf16.msra.mxu0 0
      %1267 = vmatprep.subr.bf16.mxu0 0
      %1268 = vmatpush1.bf16.msra.mxu0 0
      %1269 = vmatprep.subr.bf16.mxu0 0
      %1270 = vmatpush1.bf16.msra.mxu0 %v1250
      %1271 = vmatprep.subr.bf16.mxu0 0
      %1272 = vmatpush2.bf16.msra.mxu0 0
      %1273 = vmatprep.subr.bf16.mxu0 0
      %1274 = vmatpush2.bf16.msra.mxu0 0
      %1275 = vmatprep.subr.bf16.mxu0 0
      %1276 = vmatpush2.bf16.msra.mxu0 0
      %1277 = vmatprep.subr.bf16.mxu0 0
      %1278 = vmatpush2.bf16.msra.mxu0 0
      %1279 = vmatprep.subr.bf16.mxu0 0
      %1280 = vmatpush2.bf16.msra.mxu0 0
      %1281 = vmatprep.subr.bf16.mxu0 0
      %1282 = vmatpush2.bf16.msra.mxu0 0
      %1283 = vmatprep.subr.bf16.mxu0 0
      %1284 = vmatpush2.bf16.msra.mxu0 0
      %1285 = vmatprep.subr.bf16.mxu0 0
      %1286 = vmatpush2.bf16.msra.mxu0 0
      %1287 = vmatprep.mubr.bf16.mxu0 0
      %1288 = vmatmul.mubr.bf16.gmra.mxu0 %v1253
      %v1289 = vpop.f32.mrf.mxu0
      %v1290 = vadd.f32 0.0, %v1289
      %v1291 = vpop.f32.mrf.mxu0
      %v1292 = vpop.f32.mrf.mxu0
      %v1293 = vpop.f32.mrf.mxu0
      %1294 = vdwg.mxu0
      %v1295 = vsel %vm535, %v1241, 0.0
      %v1296 = vsel %vm535, %v1290, 0.0
      %v1297 = vadd.f32 %v1295, %v1296
      %v1299 = vlaneseq
      %v1300 = vshrl.u32 %v1299, 7
      %v1301 = vsub.s32 0, %v1300
      %v1302 = vrot.slane %v599, %v1301
      %v1304 = vadd.f32 %v1297, %v1302
      %v1305 = vadd.f32 %v1304, %v563
      %v1306 = vsel %vm535, %v1305, 0.0
      %1307 = vadd.xlane.f32.xlu0 %v1306
      %v1308 = vpop.xlane.xlu0 %1307
      %v1309 = vmul.f32 %v1308, %v539
      %v1310 = vsub.f32 %v1305, %v1309
      %v1311 = vmul.f32 %v1310, %v1310
      %v1312 = vsel %vm535, %v1311, 0.0
      %1313 = vadd.xlane.f32.xlu0 %v1312
      %v1314 = vpop.xlane.xlu0 %1313
      %v1315 = vmul.f32 %v1314, %v539
      %v1316 = vadd.f32 %v1315, 1e-05
      %v1317 = vrsqrt.pop %v1316
      %v1318 = vmul.f32 %v1310, %v1317
      %v1320 = vlaneseq
      %v1321 = vshrl.u32 %v1320, 7
      %v1322 = vsub.s32 0, %v1321
      %v1323 = vrot.slane %v600, %v1322
      %v1325 = vmul.f32 %v1318, %v1323
      %v1327 = vlaneseq
      %v1328 = vshrl.u32 %v1327, 7
      %v1329 = vsub.s32 0, %v1328
      %v1330 = vrot.slane %v601, %v1329
      %v1332 = vadd.f32 %v1325, %v1330
      %v1333 = vpack.c.bf16 %v1332, %v1332
      %v1335 = vlaneseq
      %v1336 = vshrl.u32 %v1335, 7
      %v1337 = vsub.s32 0, %v1336
      %v1338 = vrot.slane %v606, %v1337
      %v1344 = vunpack.c.l.b16 %v602
      %v1345 = vunpack.c.l.b16 %v603
      %v1346 = vunpack.c.l.b16 %v604
      %v1347 = vunpack.c.l.b16 %v605
      %v1348 = vpack.c.b16 %v1345, %v1344
      %v1349 = vpack.c.b16 %v1347, %v1346
      %v1353 = vsel %vm535, %v1333, 0
      %1355 = vmatprep.subr.bf16.mxu0 0
      %1356 = vmatpush1.bf16.msra.mxu0 0
      %1357 = vmatprep.subr.bf16.mxu0 0
      %1358 = vmatpush1.bf16.msra.mxu0 0
      %1359 = vmatprep.subr.bf16.mxu0 0
      %1360 = vmatpush1.bf16.msra.mxu0 0
      %1361 = vmatprep.subr.bf16.mxu0 0
      %1362 = vmatpush1.bf16.msra.mxu0 0
      %1363 = vmatprep.subr.bf16.mxu0 0
      %1364 = vmatpush1.bf16.msra.mxu0 0
      %1365 = vmatprep.subr.bf16.mxu0 0
      %1366 = vmatpush1.bf16.msra.mxu0 0
      %1367 = vmatprep.subr.bf16.mxu0 0
      %1368 = vmatpush1.bf16.msra.mxu0 %v1349
      %1369 = vmatprep.subr.bf16.mxu0 0
      %1370 = vmatpush1.bf16.msra.mxu0 %v1348
      %1371 = vmatprep.subr.bf16.mxu0 0
      %1372 = vmatpush2.bf16.msra.mxu0 0
      %1373 = vmatprep.subr.bf16.mxu0 0
      %1374 = vmatpush2.bf16.msra.mxu0 0
      %1375 = vmatprep.subr.bf16.mxu0 0
      %1376 = vmatpush2.bf16.msra.mxu0 0
      %1377 = vmatprep.subr.bf16.mxu0 0
      %1378 = vmatpush2.bf16.msra.mxu0 0
      %1379 = vmatprep.subr.bf16.mxu0 0
      %1380 = vmatpush2.bf16.msra.mxu0 0
      %1381 = vmatprep.subr.bf16.mxu0 0
      %1382 = vmatpush2.bf16.msra.mxu0 0
      %1383 = vmatprep.subr.bf16.mxu0 0
      %1384 = vmatpush2.bf16.msra.mxu0 0
      %1385 = vmatprep.subr.bf16.mxu0 0
      %1386 = vmatpush2.bf16.msra.mxu0 0
      %1387 = vmatprep.mubr.bf16.mxu0 0
      %1388 = vmatmul.mubr.bf16.gmra.mxu0 %v1353
      %v1389 = vpop.f32.mrf.mxu0
      %v1390 = vadd.f32 %v1338, %v1389
      %v1391 = vpop.f32.mrf.mxu0
      %v1392 = vpop.f32.mrf.mxu0
      %v1393 = vpop.f32.mrf.mxu0
      %1394 = vdwg.mxu0
      %v1395 = vmul.f32 %v1390, %v1390
      %v1396 = vmul.f32 %v1390, %v1395
      %v1397 = vmul.f32 %v1396, 0.044715
      %v1398 = vadd.f32 %v1390, %v1397
      %v1399 = vmul.f32 %v1398, 0.7978846
      %v1400 = vtanh.pop %v1399
      %v1401 = vadd.f32 %v1400, 1.0
      %v1402 = vmul.f32 %v1401, 0.5
      %v1403 = vmul.f32 %v1390, %v1402
      %v1404 = vpack.c.bf16 %v1403, %v1403
      %v1406 = vlaneseq
      %v1407 = vshrl.u32 %v1406, 7
      %v1408 = vsub.s32 0, %v1407
      %v1409 = vrot.slane %v615, %v1408
      %v1419 = vunpack.c.l.b16 %v607
      %v1420 = vunpack.c.l.b16 %v608
      %v1421 = vunpack.c.l.b16 %v609
      %v1422 = vunpack.c.l.b16 %v610
      %v1423 = vunpack.c.l.b16 %v611
      %v1424 = vunpack.c.l.b16 %v612
      %v1425 = vunpack.c.l.b16 %v613
      %v1426 = vunpack.c.l.b16 %v614
      %v1427 = vpack.c.b16 %v1420, %v1419
      %v1428 = vpack.c.b16 %v1422, %v1421
      %v1429 = vpack.c.b16 %v1424, %v1423
      %v1430 = vpack.c.b16 %v1426, %v1425
      %vm1435 = vcmask 523264
      %v1437 = vsel %vm1435, %v1404, 0
      %1439 = vmatprep.subr.bf16.mxu0 0
      %1440 = vmatpush1.bf16.msra.mxu0 0
      %1441 = vmatprep.subr.bf16.mxu0 0
      %1442 = vmatpush1.bf16.msra.mxu0 0
      %1443 = vmatprep.subr.bf16.mxu0 0
      %1444 = vmatpush1.bf16.msra.mxu0 0
      %1445 = vmatprep.subr.bf16.mxu0 0
      %1446 = vmatpush1.bf16.msra.mxu0 0
      %1447 = vmatprep.subr.bf16.mxu0 0
      %1448 = vmatpush1.bf16.msra.mxu0 %v1430
      %1449 = vmatprep.subr.bf16.mxu0 0
      %1450 = vmatpush1.bf16.msra.mxu0 %v1429
      %1451 = vmatprep.subr.bf16.mxu0 0
      %1452 = vmatpush1.bf16.msra.mxu0 %v1428
      %1453 = vmatprep.subr.bf16.mxu0 0
      %1454 = vmatpush1.bf16.msra.mxu0 %v1427
      %1455 = vmatprep.subr.bf16.mxu0 0
      %1456 = vmatpush2.bf16.msra.mxu0 0
      %1457 = vmatprep.subr.bf16.mxu0 0
      %1458 = vmatpush2.bf16.msra.mxu0 0
      %1459 = vmatprep.subr.bf16.mxu0 0
      %1460 = vmatpush2.bf16.msra.mxu0 0
      %1461 = vmatprep.subr.bf16.mxu0 0
      %1462 = vmatpush2.bf16.msra.mxu0 0
      %1463 = vmatprep.subr.bf16.mxu0 0
      %1464 = vmatpush2.bf16.msra.mxu0 0
      %1465 = vmatprep.subr.bf16.mxu0 0
      %1466 = vmatpush2.bf16.msra.mxu0 0
      %1467 = vmatprep.subr.bf16.mxu0 0
      %1468 = vmatpush2.bf16.msra.mxu0 0
      %1469 = vmatprep.subr.bf16.mxu0 0
      %1470 = vmatpush2.bf16.msra.mxu0 0
      %1471 = vmatprep.mubr.bf16.mxu0 0
      %1472 = vmatmul.mubr.bf16.gmra.mxu0 %v1437
      %v1473 = vpop.f32.mrf.mxu0
      %v1474 = vadd.f32 %v1409, %v1473
      %v1475 = vpop.f32.mrf.mxu0
      %v1476 = vpop.f32.mrf.mxu0
      %v1477 = vpop.f32.mrf.mxu0
      %1478 = vdwg.mxu0
      %v1479 = vadd.f32 %v1474, %v1332
      %v1480 = vsel %vm535, %v1479, 0.0
      %1481 = vadd.xlane.f32.xlu0 %v1480
      %v1482 = vpop.xlane.xlu0 %1481
      %v1483 = vmul.f32 %v1482, %v539
      %v1484 = vsub.f32 %v1479, %v1483
      %v1485 = vmul.f32 %v1484, %v1484
      %v1486 = vsel %vm535, %v1485, 0.0
      %1487 = vadd.xlane.f32.xlu0 %v1486
      %v1488 = vpop.xlane.xlu0 %1487
      %v1489 = vmul.f32 %v1488, %v539
      %v1490 = vadd.f32 %v1489, 1e-05
      %v1491 = vrsqrt.pop %v1490
      %v1492 = vmul.f32 %v1484, %v1491
      %v1494 = vlaneseq
      %v1495 = vshrl.u32 %v1494, 7
      %v1496 = vsub.s32 0, %v1495
      %v1497 = vrot.slane %v616, %v1496
      %v1499 = vmul.f32 %v1492, %v1497
      %v1501 = vlaneseq
      %v1502 = vshrl.u32 %v1501, 7
      %v1503 = vsub.s32 0, %v1502
      %v1504 = vrot.slane %v617, %v1503
      %v1506 = vadd.f32 %v1499, %v1504
      %1507 = vst.msk [vmem:[%s530] sm:$0xff] %vm535, %v1506
      %p1508 = scmp.lt.s32.totalorder %s27, 1
      %s1509 = scalar_select %p1508, %s27, 1
      %s1510 = smul.addr %s1509, 8
      %s1511 = scalar_lea.vmem %s16, %s1510
      // Predicated region
      $region85: #{roberta_forward.3} parent=83 // pred_check
        %p1512 = pneg %p391
      $region86: #{roberta_forward.3} parent=83 // pred_check_branch
        %1514 = sbr.rel (%p1512) target = $region88
      $region87: #{roberta_forward.3} parent=83 // pred_region
        _
      $region88: #{roberta_forward.3} parent=83 // pred_fallthru
        _
    $region84: #{roberta_forward.3} parent=5 // pred_fallthru
      _
    %p1515 = scmp.le.s32.totalorder 2, %s22
    // Predicated region
    $region89: #{roberta_forward.3} parent=5 // pred_check
      %p1516 = pneg %p1515
    $region90: #{roberta_forward.3} parent=5 // pred_check_branch
      %1518 = sbr.rel (%p1516) target = $region92
    $region91: #{roberta_forward.3} parent=5 // pred_region
      %s1519 = ssub.s32 %s22, 2
      // Predicated region
      $region93: #{roberta_forward.3} parent=91 // pred_check
        %p1520 = pneg %p397
      $region94: #{roberta_forward.3} parent=91 // pred_check_branch
        %1522 = sbr.rel (%p1520) target = $region96
      $region95: #{roberta_forward.3} parent=91 // pred_region
        %p1523 = scmp.lt.s32.totalorder %s28, 1
        %s1524 = scalar_select %p1523, %s28, 1
        %s1525 = smul.addr %s1524, 8
        %s1526 = scalar_lea.vmem %s16, %s1525
      $region96: #{roberta_forward.3} parent=91 // pred_fallthru
        _
    $region92: #{roberta_forward.3} parent=5 // pred_fallthru
      _
  $region6: #{roberta_forward.3} parent=0 // loop_footer
    %s26 = sadd.s32 1, %s22
  $region7: #{roberta_forward.3} parent=0 // loop_footer_branch
    %21 = sbr.rel target = $region3
  $region8: #{roberta_forward.3} parent=0 // loop_exit
    _

</llo_original>
